<compile_context>
chip_gen: v7x
topology: tpu7x:2x2x1
jax: 0.10.0
libtpu: 0.0.40
codegen_flags: <defaults>
</compile_context>

<pallas_src>
import numpy as np
import jax
import jax.numpy as jnp
from jax.experimental import pallas as pl
from jax.experimental.pallas import tpu as pltpu

EPS = 1e-5        # nn.BatchNorm2d default eps
NEG_SLOPE = 0.01  # nn.LeakyReLU default negative_slope

IN_H = IN_W = 16  # example spatial size: 16 -> conv 14 -> pool 7 -> conv 5 -> conv 3


def _round_up(a, m):
    return (a + m - 1) // m * m


# --------------------------------------------------------------------------- #
# Kernel
# --------------------------------------------------------------------------- #
def pnet_kernel(x_ref,
                w1a_ref, w1b_ref, w1c_ref, t1_ref,
                w2a_ref, w2b_ref, w2c_ref, t2_ref,
                w3a_ref, w3b_ref, w3c_ref, t3_ref,
                wh_ref, bh_ref, wd_ref, bd_ref,
                out_ref):
    x = x_ref[...]                                   # (R, 48); R = 16*tb

    def rshift(m, k):
        # row r of the result = row r + k of m (flat over the whole batch
        # tile; the k wrapped rows only ever land in rows that are discarded).
        return jnp.concatenate([m[k:, :], m[:k, :]], axis=0)

    def leaky(v):
        return jnp.maximum(v, NEG_SLOPE * v)

    def conv3x3(m, wa_ref, wb_ref, wc_ref, t_ref, step):
        # 3x3 VALID conv (+ folded conv-bias/BN scale+shift + LeakyReLU) as 3
        # accumulated MXU matmuls, one per kernel row.
        y = (jnp.dot(m, wa_ref[...], preferred_element_type=jnp.float32)
             + jnp.dot(rshift(m, step), wb_ref[...],
                       preferred_element_type=jnp.float32)
             + jnp.dot(rshift(m, 2 * step), wc_ref[...],
                       preferred_element_type=jnp.float32))
        return leaky(y + t_ref[...])

    # conv1 + BN1 + LeakyReLU : rows = (b, h), lanes = ow*10 + c  (14*10=140).
    y1 = conv3x3(x, w1a_ref, w1b_ref, w1c_ref, t1_ref, 1)        # (R, 140)

    # MaxPool2d(2, 2): lane-offset max for W, row-offset max for H.  The pooled
    # map stays on the stride-2 grid (even rows / even w); the stride-2 pick is
    # folded into the conv2 Toeplitz weights, so no compaction is needed.
    wmax = jnp.maximum(y1[:, :130], y1[:, 10:])                   # (R, 130)
    hmax = jnp.maximum(wmax, rshift(wmax, 1))                     # (R, 130)

    # conv2 + BN2 + LeakyReLU : valid rows 0,2,..,8 per sample, lanes = ow*16+c.
    y2 = conv3x3(hmax, w2a_ref, w2b_ref, w2c_ref, t2_ref, 2)      # (R, 80)
    # conv3 + BN3 + LeakyReLU : valid rows 0,2,4 per sample, lanes = ow*32+c.
    y3 = conv3x3(y2, w3a_ref, w3b_ref, w3c_ref, t3_ref, 2)        # (R, 96)

    # Fused 1x1 heads, block-diag over the 3 ow positions:
    #   lanes = ow*16 + [face(2) | bbox(4) | lmark(10)].
    h = jnp.dot(y3, wh_ref[...], preferred_element_type=jnp.float32) + bh_ref[...]
    # Pairwise logit differences for the analytic 2-class log-softmax.
    d = jnp.dot(y3, wd_ref[...], preferred_element_type=jnp.float32) + bd_ref[...]

    # log_softmax_i = -softplus(l_other - l_i); stable softplus with plain exp/log.
    logp = -(jnp.maximum(d, 0.0) + jnp.log(1.0 + jnp.exp(-jnp.abs(d))))
    sig = 1.0 / (1.0 + jnp.exp(-h))
    lane = jax.lax.broadcasted_iota(jnp.int32, (1, h.shape[-1]), 1)
    out48 = jnp.where((lane & 15) < 2, logp, sig)                 # (R, 48)

    # Lane-dense (128-wide) store: pad the 48 data lanes with zeros.
    pad = jnp.zeros((out48.shape[0], 128 - out48.shape[1]), jnp.float32)
    out_ref[...] = jnp.concatenate([out48, pad], axis=-1)         # (R, 128)


# --------------------------------------------------------------------------- #
# Wrapper: weight preparation + pallas_call
# --------------------------------------------------------------------------- #
def _conv_toeplitz(w_oihw, scale, n_in_lanes, w_out, pos):
    """Per-kh block-Toeplitz matrices (n_in_lanes, w_out*cout) for a 3x3 conv.

    Input lanes = w*cin + ci ; output lanes = ow*cout + co.
    pos(ow, kw) is the input spatial position feeding output ow at tap kw.
    The per-output-channel BN scale is folded into the weight columns.
    """
    cout, cin, KH, KW = w_oihw.shape
    wk = jnp.transpose(w_oihw, (2, 3, 1, 0)).astype(jnp.float32) * scale  # (KH,KW,cin,cout)
    mats = []
    for kh in range(KH):
        m = jnp.zeros((n_in_lanes, w_out * cout), jnp.float32)
        for ow in range(w_out):
            for kw in range(KW):
                r0 = pos(ow, kw) * cin
                m = m.at[r0:r0 + cin, ow * cout:(ow + 1) * cout].set(wk[kh, kw])
        mats.append(m)
    return mats


def _bn_fold(bias, gamma, beta, mean, var, w_out):
    """Fold conv bias + eval-mode BN into (scale-for-weights, per-lane shift)."""
    s = gamma / jnp.sqrt(var + EPS)
    t = (bias - mean) * s + beta
    return s, jnp.tile(t, w_out).reshape(1, -1).astype(jnp.float32)


@jax.jit
def pnet_forward(x_nchw, params):
    n = x_nchw.shape[0]
    tb = min(256, _round_up(n, 8))          # batch samples per grid step
    n_pad = _round_up(n, tb)

    # NCHW -> NHWC -> (n_pad*16, 48): rows = (b, h), lanes = w*3 + c.
    x = jnp.transpose(x_nchw, (0, 2, 3, 1)).astype(jnp.float32).reshape(n, IN_H, IN_W * 3)
    if n_pad > n:
        x = jnp.pad(x, ((0, n_pad - n), (0, 0), (0, 0)))
    x2 = x.reshape(n_pad * IN_H, IN_W * 3)

    # Toeplitz conv weights (BN scale folded); stride-2 pooling grid folded
    # into conv2's weights (its inputs live on even w of the 130-lane map).
    s1, t1 = _bn_fold(params['b1'], *params['bn1'], 14)
    w1s = _conv_toeplitz(params['w1'], s1, 48, 14, lambda ow, kw: ow + kw)        # 3x(48,140)
    s2, t2 = _bn_fold(params['b2'], *params['bn2'], 5)
    w2s = _conv_toeplitz(params['w2'], s2, 130, 5, lambda ow, kw: 2 * (ow + kw))  # 3x(130,80)
    s3, t3 = _bn_fold(params['b3'], *params['bn3'], 3)
    w3s = _conv_toeplitz(params['w3'], s3, 80, 3, lambda ow, kw: ow + kw)         # 3x(80,96)

    # Fused 1x1 heads: block-diag (96, 48) = [face(2)|bbox(4)|lmark(10)] per ow,
    # plus pairwise logit-difference weights for the 2-class log-softmax.
    wh_small = jnp.concatenate([params['wf'][:, :, 0, 0].T,
                                params['wb'][:, :, 0, 0].T,
                                params['wl'][:, :, 0, 0].T], axis=1).astype(jnp.float32)
    bh_small = jnp.concatenate([params['bf'], params['bb'], params['bl']]).astype(jnp.float32)
    wf_t = params['wf'][:, :, 0, 0].T.astype(jnp.float32)                          # (32, 2)
    wd_small = jnp.stack([wf_t[:, 1] - wf_t[:, 0], wf_t[:, 0] - wf_t[:, 1]], axis=1)
    bd_small = jnp.stack([params['bf'][1] - params['bf'][0],
                          params['bf'][0] - params['bf'][1]]).astype(jnp.float32)
    wh = jnp.zeros((96, 48), jnp.float32)
    wd = jnp.zeros((96, 48), jnp.float32)
    bd = jnp.zeros((48,), jnp.float32)
    for j in range(3):
        wh = wh.at[32 * j:32 * (j + 1), 16 * j:16 * (j + 1)].set(wh_small)
        wd = wd.at[32 * j:32 * (j + 1), 16 * j:16 * j + 2].set(wd_small)
        bd = bd.at[16 * j:16 * j + 2].set(bd_small)
    bh = jnp.tile(bh_small, 3).reshape(1, -1)
    bd = bd.reshape(1, -1)

    weights = (w1s[0], w1s[1], w1s[2], t1,
               w2s[0], w2s[1], w2s[2], t2,
               w3s[0], w3s[1], w3s[2], t3,
               wh, bh, wd, bd)

    in_specs = [pl.BlockSpec((16 * tb, 48), lambda i: (i, 0))]
    in_specs += [pl.BlockSpec(w.shape, lambda i: (0, 0)) for w in weights]

    macs = 16 * (48 * 140 * 3 + 130 * 80 * 3 + 80 * 96 * 3 + 96 * 48 * 2)
    cost = pl.CostEstimate(
        flops=2 * macs * n_pad,
        transcendentals=3 * 16 * 48 * n_pad,
        bytes_accessed=n_pad * 16 * (48 + 128) * 4
                       + sum(int(np.prod(w.shape)) * 4 for w in weights))

    out = pl.pallas_call(
        pnet_kernel,
        grid=(n_pad // tb,),
        in_specs=in_specs,
        out_specs=pl.BlockSpec((16 * tb, 128), lambda i: (i, 0)),
        out_shape=jax.ShapeDtypeStruct((n_pad * 16, 128), jnp.float32),
        compiler_params=pltpu.CompilerParams(
            dimension_semantics=("parallel",),
            vmem_limit_bytes=64 * 1024 * 1024),
        cost_estimate=cost,
    )(x2, *weights)

    # Valid head outputs live at rows h = 0, 2, 4 of each sample's 16 rows and
    # lanes [0, 48): -> (n, oh, ow, [face(2)|bbox(4)|lmark(10)]).
    out = out.reshape(n_pad, 16, 128)[:n, 0:5:2, :48].reshape(n, 3, 3, 16)
    # Match PyTorch's .view(n, -1) on NCHW tensors (channel-major flatten).
    face = jnp.transpose(out[..., 0:2], (0, 3, 1, 2)).reshape(n, -1)
    bbox = jnp.transpose(out[..., 2:6], (0, 3, 1, 2)).reshape(n, -1)
    lmark = jnp.transpose(out[..., 6:16], (0, 3, 1, 2)).reshape(n, -1)
    return face, bbox, lmark


# ---------------- pure-JAX reference (NCHW, mirrors the PyTorch module) ------
def ref_forward(x, p):
    def conv(h, w, b):
        y = jax.lax.conv_general_dilated(h, w, (1, 1), 'VALID',
                                         dimension_numbers=('NCHW', 'OIHW', 'NCHW'))
        return y + b[None, :, None, None]

    def bn(h, gamma, beta, mean, var):
        return ((h - mean[None, :, None, None]) /
                jnp.sqrt(var[None, :, None, None] + EPS) *
                gamma[None, :, None, None] + beta[None, :, None, None])

    def leaky(h):
        return jnp.where(h >= 0, h, NEG_SLOPE * h)

    def maxpool(h):
        return jax.lax.reduce_window(h, -jnp.inf, jax.lax.max,
                                     (1, 1, 2, 2), (1, 1, 2, 2), 'VALID')

    h = leaky(bn(conv(x, p['w1'], p['b1']), *p['bn1']))
    h = maxpool(h)
    h = leaky(bn(conv(h, p['w2'], p['b2']), *p['bn2']))
    h = leaky(bn(conv(h, p['w3'], p['b3']), *p['bn3']))
    n = x.shape[0]
    face = jax.nn.log_softmax(conv(h, p['wf'], p['bf']), axis=1).reshape(n, -1)
    bbox = jax.nn.sigmoid(conv(h, p['wb'], p['bb'])).reshape(n, -1)
    lmark = jax.nn.sigmoid(conv(h, p['wl'], p['bl'])).reshape(n, -1)
    return face, bbox, lmark


def make_params(key):
    ks = iter(jax.random.split(key, 32))

    def conv_p(cout, cin, kh, kw):
        w = 0.1 * jax.random.normal(next(ks), (cout, cin, kh, kw), jnp.float32)
        b = 0.05 * jax.random.normal(next(ks), (cout,), jnp.float32)
        return w, b

    def bn_p(c):
        gamma = 1.0 + 0.1 * jax.random.normal(next(ks), (c,), jnp.float32)
        beta = 0.05 * jax.random.normal(next(ks), (c,), jnp.float32)
        mean = 0.1 * jax.random.normal(next(ks), (c,), jnp.float32)
        var = 1.0 + 0.1 * jnp.abs(jax.random.normal(next(ks), (c,), jnp.float32))
        return gamma, beta, mean, var

    p = {}
    p['w1'], p['b1'] = conv_p(10, 3, 3, 3);  p['bn1'] = bn_p(10)
    p['w2'], p['b2'] = conv_p(16, 10, 3, 3); p['bn2'] = bn_p(16)
    p['w3'], p['b3'] = conv_p(32, 16, 3, 3); p['bn3'] = bn_p(32)
    p['wf'], p['bf'] = conv_p(2, 32, 1, 1)
    p['wb'], p['bb'] = conv_p(4, 32, 1, 1)
    p['wl'], p['bl'] = conv_p(10, 32, 1, 1)
    return p


if __name__ == "__main__":
    key = jax.random.PRNGKey(0)
    k_x, k_p = jax.random.split(key)
    params = make_params(k_p)
    x = jax.random.normal(k_x, (2, 3, IN_H, IN_W), jnp.float32)   # NCHW like PyTorch

    out = pnet_forward(x, params)
    jax.block_until_ready(out)

    ref = ref_forward(x, params)
    for a, b in zip(out, ref):
        np.testing.assert_allclose(np.asarray(a), np.asarray(b), rtol=1e-4, atol=2e-4)

    print("KERNEL_OK")
</pallas_src>

<mosaic_0001>
module attributes {stable_mosaic.version = 11 : i64} {
  func.func @pnet_kernel(%arg0: i32, %arg1: memref<128x48xf32, #tpu.memory_space<vmem>>, %arg2: memref<48x140xf32, #tpu.memory_space<vmem>>, %arg3: memref<48x140xf32, #tpu.memory_space<vmem>>, %arg4: memref<48x140xf32, #tpu.memory_space<vmem>>, %arg5: memref<1x140xf32, #tpu.memory_space<vmem>>, %arg6: memref<130x80xf32, #tpu.memory_space<vmem>>, %arg7: memref<130x80xf32, #tpu.memory_space<vmem>>, %arg8: memref<130x80xf32, #tpu.memory_space<vmem>>, %arg9: memref<1x80xf32, #tpu.memory_space<vmem>>, %arg10: memref<80x96xf32, #tpu.memory_space<vmem>>, %arg11: memref<80x96xf32, #tpu.memory_space<vmem>>, %arg12: memref<80x96xf32, #tpu.memory_space<vmem>>, %arg13: memref<1x96xf32, #tpu.memory_space<vmem>>, %arg14: memref<96x48xf32, #tpu.memory_space<vmem>>, %arg15: memref<1x48xf32, #tpu.memory_space<vmem>>, %arg16: memref<96x48xf32, #tpu.memory_space<vmem>>, %arg17: memref<1x48xf32, #tpu.memory_space<vmem>>, %arg18: memref<128x128xf32, #tpu.memory_space<vmem>>) attributes {dimension_semantics = [#tpu.dimension_semantics<parallel>], iteration_bounds = array<i64: 1>, scalar_prefetch = 0 : i64, scratch_operands = 0 : i64, tpu.core_type = #tpu.core_type<tc>, window_params = [{transform_indices = @transform_0, window_bounds = array<i64: 128, 48>}, {pipeline_mode = #tpu.pipeline_mode<synchronous>, transform_indices = @transform_1, window_bounds = array<i64: 48, 140>}, {pipeline_mode = #tpu.pipeline_mode<synchronous>, transform_indices = @transform_2, window_bounds = array<i64: 48, 140>}, {pipeline_mode = #tpu.pipeline_mode<synchronous>, transform_indices = @transform_3, window_bounds = array<i64: 48, 140>}, {pipeline_mode = #tpu.pipeline_mode<synchronous>, transform_indices = @transform_4, window_bounds = array<i64: 1, 140>}, {pipeline_mode = #tpu.pipeline_mode<synchronous>, transform_indices = @transform_5, window_bounds = array<i64: 130, 80>}, {pipeline_mode = #tpu.pipeline_mode<synchronous>, transform_indices = @transform_6, window_bounds = array<i64: 130, 80>}, {pipeline_mode = #tpu.pipeline_mode<synchronous>, transform_indices = @transform_7, window_bounds = array<i64: 130, 80>}, {pipeline_mode = #tpu.pipeline_mode<synchronous>, transform_indices = @transform_8, window_bounds = array<i64: 1, 80>}, {pipeline_mode = #tpu.pipeline_mode<synchronous>, transform_indices = @transform_9, window_bounds = array<i64: 80, 96>}, {pipeline_mode = #tpu.pipeline_mode<synchronous>, transform_indices = @transform_10, window_bounds = array<i64: 80, 96>}, {pipeline_mode = #tpu.pipeline_mode<synchronous>, transform_indices = @transform_11, window_bounds = array<i64: 80, 96>}, {pipeline_mode = #tpu.pipeline_mode<synchronous>, transform_indices = @transform_12, window_bounds = array<i64: 1, 96>}, {pipeline_mode = #tpu.pipeline_mode<synchronous>, transform_indices = @transform_13, window_bounds = array<i64: 96, 48>}, {pipeline_mode = #tpu.pipeline_mode<synchronous>, transform_indices = @transform_14, window_bounds = array<i64: 1, 48>}, {pipeline_mode = #tpu.pipeline_mode<synchronous>, transform_indices = @transform_15, window_bounds = array<i64: 96, 48>}, {pipeline_mode = #tpu.pipeline_mode<synchronous>, transform_indices = @transform_16, window_bounds = array<i64: 1, 48>}, {transform_indices = @transform_17, window_bounds = array<i64: 128, 128>}]} {
    %c0 = arith.constant 0 : index
    %c0_0 = arith.constant 0 : index
    %0 = vector.load %arg1[%c0, %c0_0] : memref<128x48xf32, #tpu.memory_space<vmem>>, vector<128x48xf32>
    %c0_1 = arith.constant 0 : index
    %c0_2 = arith.constant 0 : index
    %1 = vector.load %arg2[%c0_1, %c0_2] : memref<48x140xf32, #tpu.memory_space<vmem>>, vector<48x140xf32>
    %cst = arith.constant dense<0.000000e+00> : vector<128x140xf32>
    %2 = tpu.matmul %0, %1, %cst {dimension_numbers = #tpu.dot_dimension_numbers<[1], [0], [0], [1], [0, 0, 1, 1], [], []>} : vector<128x48xf32>, vector<48x140xf32>, vector<128x140xf32> -> vector<128x140xf32>
    %3 = vector.extract_strided_slice %0 {offsets = [1, 0], sizes = [127, 48], strides = [1, 1]} : vector<128x48xf32> to vector<127x48xf32>
    %4 = vector.extract_strided_slice %0 {offsets = [0, 0], sizes = [1, 48], strides = [1, 1]} : vector<128x48xf32> to vector<1x48xf32>
    %5 = tpu.concatenate %3, %4 in 0 : vector<127x48xf32>, vector<1x48xf32> -> vector<128x48xf32>
    %c0_3 = arith.constant 0 : index
    %c0_4 = arith.constant 0 : index
    %6 = vector.load %arg3[%c0_3, %c0_4] : memref<48x140xf32, #tpu.memory_space<vmem>>, vector<48x140xf32>
    %cst_5 = arith.constant dense<0.000000e+00> : vector<128x140xf32>
    %7 = tpu.matmul %5, %6, %cst_5 {dimension_numbers = #tpu.dot_dimension_numbers<[1], [0], [0], [1], [0, 0, 1, 1], [], []>} : vector<128x48xf32>, vector<48x140xf32>, vector<128x140xf32> -> vector<128x140xf32>
    %8 = arith.addf %2, %7 : vector<128x140xf32>
    %9 = vector.extract_strided_slice %0 {offsets = [2, 0], sizes = [126, 48], strides = [1, 1]} : vector<128x48xf32> to vector<126x48xf32>
    %10 = vector.extract_strided_slice %0 {offsets = [0, 0], sizes = [2, 48], strides = [1, 1]} : vector<128x48xf32> to vector<2x48xf32>
    %11 = tpu.concatenate %9, %10 in 0 : vector<126x48xf32>, vector<2x48xf32> -> vector<128x48xf32>
    %c0_6 = arith.constant 0 : index
    %c0_7 = arith.constant 0 : index
    %12 = vector.load %arg4[%c0_6, %c0_7] : memref<48x140xf32, #tpu.memory_space<vmem>>, vector<48x140xf32>
    %cst_8 = arith.constant dense<0.000000e+00> : vector<128x140xf32>
    %13 = tpu.matmul %11, %12, %cst_8 {dimension_numbers = #tpu.dot_dimension_numbers<[1], [0], [0], [1], [0, 0, 1, 1], [], []>} : vector<128x48xf32>, vector<48x140xf32>, vector<128x140xf32> -> vector<128x140xf32>
    %14 = arith.addf %8, %13 : vector<128x140xf32>
    %c0_9 = arith.constant 0 : index
    %c0_10 = arith.constant 0 : index
    %15 = vector.load %arg5[%c0_9, %c0_10] : memref<1x140xf32, #tpu.memory_space<vmem>>, vector<1x140xf32>
    %16 = vector.broadcast %15 : vector<1x140xf32> to vector<128x140xf32>
    %17 = arith.addf %14, %16 : vector<128x140xf32>
    %cst_11 = arith.constant 0.00999999977 : f32
    %18 = vector.broadcast %cst_11 : f32 to vector<128x140xf32>
    %19 = arith.mulf %18, %17 : vector<128x140xf32>
    %20 = arith.maximumf %17, %19 : vector<128x140xf32>
    %21 = vector.extract_strided_slice %20 {offsets = [0, 0], sizes = [128, 130], strides = [1, 1]} : vector<128x140xf32> to vector<128x130xf32>
    %22 = vector.extract_strided_slice %20 {offsets = [0, 10], sizes = [128, 130], strides = [1, 1]} : vector<128x140xf32> to vector<128x130xf32>
    %23 = arith.maximumf %21, %22 : vector<128x130xf32>
    %24 = vector.extract_strided_slice %23 {offsets = [1, 0], sizes = [127, 130], strides = [1, 1]} : vector<128x130xf32> to vector<127x130xf32>
    %25 = vector.extract_strided_slice %23 {offsets = [0, 0], sizes = [1, 130], strides = [1, 1]} : vector<128x130xf32> to vector<1x130xf32>
    %26 = tpu.concatenate %24, %25 in 0 : vector<127x130xf32>, vector<1x130xf32> -> vector<128x130xf32>
    %27 = arith.maximumf %23, %26 : vector<128x130xf32>
    %c0_12 = arith.constant 0 : index
    %c0_13 = arith.constant 0 : index
    %28 = vector.load %arg6[%c0_12, %c0_13] : memref<130x80xf32, #tpu.memory_space<vmem>>, vector<130x80xf32>
    %cst_14 = arith.constant dense<0.000000e+00> : vector<128x80xf32>
    %29 = tpu.matmul %27, %28, %cst_14 {dimension_numbers = #tpu.dot_dimension_numbers<[1], [0], [0], [1], [0, 0, 1, 1], [], []>} : vector<128x130xf32>, vector<130x80xf32>, vector<128x80xf32> -> vector<128x80xf32>
    %30 = vector.extract_strided_slice %27 {offsets = [2, 0], sizes = [126, 130], strides = [1, 1]} : vector<128x130xf32> to vector<126x130xf32>
    %31 = vector.extract_strided_slice %27 {offsets = [0, 0], sizes = [2, 130], strides = [1, 1]} : vector<128x130xf32> to vector<2x130xf32>
    %32 = tpu.concatenate %30, %31 in 0 : vector<126x130xf32>, vector<2x130xf32> -> vector<128x130xf32>
    %c0_15 = arith.constant 0 : index
    %c0_16 = arith.constant 0 : index
    %33 = vector.load %arg7[%c0_15, %c0_16] : memref<130x80xf32, #tpu.memory_space<vmem>>, vector<130x80xf32>
    %cst_17 = arith.constant dense<0.000000e+00> : vector<128x80xf32>
    %34 = tpu.matmul %32, %33, %cst_17 {dimension_numbers = #tpu.dot_dimension_numbers<[1], [0], [0], [1], [0, 0, 1, 1], [], []>} : vector<128x130xf32>, vector<130x80xf32>, vector<128x80xf32> -> vector<128x80xf32>
    %35 = arith.addf %29, %34 : vector<128x80xf32>
    %36 = vector.extract_strided_slice %27 {offsets = [4, 0], sizes = [124, 130], strides = [1, 1]} : vector<128x130xf32> to vector<124x130xf32>
    %37 = vector.extract_strided_slice %27 {offsets = [0, 0], sizes = [4, 130], strides = [1, 1]} : vector<128x130xf32> to vector<4x130xf32>
    %38 = tpu.concatenate %36, %37 in 0 : vector<124x130xf32>, vector<4x130xf32> -> vector<128x130xf32>
    %c0_18 = arith.constant 0 : index
    %c0_19 = arith.constant 0 : index
    %39 = vector.load %arg8[%c0_18, %c0_19] : memref<130x80xf32, #tpu.memory_space<vmem>>, vector<130x80xf32>
    %cst_20 = arith.constant dense<0.000000e+00> : vector<128x80xf32>
    %40 = tpu.matmul %38, %39, %cst_20 {dimension_numbers = #tpu.dot_dimension_numbers<[1], [0], [0], [1], [0, 0, 1, 1], [], []>} : vector<128x130xf32>, vector<130x80xf32>, vector<128x80xf32> -> vector<128x80xf32>
    %41 = arith.addf %35, %40 : vector<128x80xf32>
    %c0_21 = arith.constant 0 : index
    %c0_22 = arith.constant 0 : index
    %42 = vector.load %arg9[%c0_21, %c0_22] : memref<1x80xf32, #tpu.memory_space<vmem>>, vector<1x80xf32>
    %43 = vector.broadcast %42 : vector<1x80xf32> to vector<128x80xf32>
    %44 = arith.addf %41, %43 : vector<128x80xf32>
    %cst_23 = arith.constant 0.00999999977 : f32
    %45 = vector.broadcast %cst_23 : f32 to vector<128x80xf32>
    %46 = arith.mulf %45, %44 : vector<128x80xf32>
    %47 = arith.maximumf %44, %46 : vector<128x80xf32>
    %c0_24 = arith.constant 0 : index
    %c0_25 = arith.constant 0 : index
    %48 = vector.load %arg10[%c0_24, %c0_25] : memref<80x96xf32, #tpu.memory_space<vmem>>, vector<80x96xf32>
    %cst_26 = arith.constant dense<0.000000e+00> : vector<128x96xf32>
    %49 = tpu.matmul %47, %48, %cst_26 {dimension_numbers = #tpu.dot_dimension_numbers<[1], [0], [0], [1], [0, 0, 1, 1], [], []>} : vector<128x80xf32>, vector<80x96xf32>, vector<128x96xf32> -> vector<128x96xf32>
    %50 = vector.extract_strided_slice %47 {offsets = [2, 0], sizes = [126, 80], strides = [1, 1]} : vector<128x80xf32> to vector<126x80xf32>
    %51 = vector.extract_strided_slice %47 {offsets = [0, 0], sizes = [2, 80], strides = [1, 1]} : vector<128x80xf32> to vector<2x80xf32>
    %52 = tpu.concatenate %50, %51 in 0 : vector<126x80xf32>, vector<2x80xf32> -> vector<128x80xf32>
    %c0_27 = arith.constant 0 : index
    %c0_28 = arith.constant 0 : index
    %53 = vector.load %arg11[%c0_27, %c0_28] : memref<80x96xf32, #tpu.memory_space<vmem>>, vector<80x96xf32>
    %cst_29 = arith.constant dense<0.000000e+00> : vector<128x96xf32>
    %54 = tpu.matmul %52, %53, %cst_29 {dimension_numbers = #tpu.dot_dimension_numbers<[1], [0], [0], [1], [0, 0, 1, 1], [], []>} : vector<128x80xf32>, vector<80x96xf32>, vector<128x96xf32> -> vector<128x96xf32>
    %55 = arith.addf %49, %54 : vector<128x96xf32>
    %56 = vector.extract_strided_slice %47 {offsets = [4, 0], sizes = [124, 80], strides = [1, 1]} : vector<128x80xf32> to vector<124x80xf32>
    %57 = vector.extract_strided_slice %47 {offsets = [0, 0], sizes = [4, 80], strides = [1, 1]} : vector<128x80xf32> to vector<4x80xf32>
    %58 = tpu.concatenate %56, %57 in 0 : vector<124x80xf32>, vector<4x80xf32> -> vector<128x80xf32>
    %c0_30 = arith.constant 0 : index
    %c0_31 = arith.constant 0 : index
    %59 = vector.load %arg12[%c0_30, %c0_31] : memref<80x96xf32, #tpu.memory_space<vmem>>, vector<80x96xf32>
    %cst_32 = arith.constant dense<0.000000e+00> : vector<128x96xf32>
    %60 = tpu.matmul %58, %59, %cst_32 {dimension_numbers = #tpu.dot_dimension_numbers<[1], [0], [0], [1], [0, 0, 1, 1], [], []>} : vector<128x80xf32>, vector<80x96xf32>, vector<128x96xf32> -> vector<128x96xf32>
    %61 = arith.addf %55, %60 : vector<128x96xf32>
    %c0_33 = arith.constant 0 : index
    %c0_34 = arith.constant 0 : index
    %62 = vector.load %arg13[%c0_33, %c0_34] : memref<1x96xf32, #tpu.memory_space<vmem>>, vector<1x96xf32>
    %63 = vector.broadcast %62 : vector<1x96xf32> to vector<128x96xf32>
    %64 = arith.addf %61, %63 : vector<128x96xf32>
    %cst_35 = arith.constant 0.00999999977 : f32
    %65 = vector.broadcast %cst_35 : f32 to vector<128x96xf32>
    %66 = arith.mulf %65, %64 : vector<128x96xf32>
    %67 = arith.maximumf %64, %66 : vector<128x96xf32>
    %c0_36 = arith.constant 0 : index
    %c0_37 = arith.constant 0 : index
    %68 = vector.load %arg14[%c0_36, %c0_37] : memref<96x48xf32, #tpu.memory_space<vmem>>, vector<96x48xf32>
    %cst_38 = arith.constant dense<0.000000e+00> : vector<128x48xf32>
    %69 = tpu.matmul %67, %68, %cst_38 {dimension_numbers = #tpu.dot_dimension_numbers<[1], [0], [0], [1], [0, 0, 1, 1], [], []>} : vector<128x96xf32>, vector<96x48xf32>, vector<128x48xf32> -> vector<128x48xf32>
    %c0_39 = arith.constant 0 : index
    %c0_40 = arith.constant 0 : index
    %70 = vector.load %arg15[%c0_39, %c0_40] : memref<1x48xf32, #tpu.memory_space<vmem>>, vector<1x48xf32>
    %71 = vector.broadcast %70 : vector<1x48xf32> to vector<128x48xf32>
    %72 = arith.addf %69, %71 : vector<128x48xf32>
    %c0_41 = arith.constant 0 : index
    %c0_42 = arith.constant 0 : index
    %73 = vector.load %arg16[%c0_41, %c0_42] : memref<96x48xf32, #tpu.memory_space<vmem>>, vector<96x48xf32>
    %cst_43 = arith.constant dense<0.000000e+00> : vector<128x48xf32>
    %74 = tpu.matmul %67, %73, %cst_43 {dimension_numbers = #tpu.dot_dimension_numbers<[1], [0], [0], [1], [0, 0, 1, 1], [], []>} : vector<128x96xf32>, vector<96x48xf32>, vector<128x48xf32> -> vector<128x48xf32>
    %c0_44 = arith.constant 0 : index
    %c0_45 = arith.constant 0 : index
    %75 = vector.load %arg17[%c0_44, %c0_45] : memref<1x48xf32, #tpu.memory_space<vmem>>, vector<1x48xf32>
    %76 = vector.broadcast %75 : vector<1x48xf32> to vector<128x48xf32>
    %77 = arith.addf %74, %76 : vector<128x48xf32>
    %cst_46 = arith.constant 0.000000e+00 : f32
    %78 = vector.broadcast %cst_46 : f32 to vector<128x48xf32>
    %79 = arith.maximumf %77, %78 : vector<128x48xf32>
    %80 = math.absf %77 : vector<128x48xf32>
    %cst_47 = arith.constant 0.000000e+00 : f32
    %81 = vector.broadcast %cst_47 : f32 to vector<128x48xf32>
    %82 = arith.subf %81, %80 : vector<128x48xf32>
    %83 = math.exp %82 : vector<128x48xf32>
    %cst_48 = arith.constant 1.000000e+00 : f32
    %84 = vector.broadcast %cst_48 : f32 to vector<128x48xf32>
    %85 = arith.addf %84, %83 : vector<128x48xf32>
    %86 = math.log %85 : vector<128x48xf32>
    %87 = arith.addf %79, %86 : vector<128x48xf32>
    %cst_49 = arith.constant 0.000000e+00 : f32
    %88 = vector.broadcast %cst_49 : f32 to vector<128x48xf32>
    %89 = arith.subf %88, %87 : vector<128x48xf32>
    %cst_50 = arith.constant 0.000000e+00 : f32
    %90 = vector.broadcast %cst_50 : f32 to vector<128x48xf32>
    %91 = arith.subf %90, %72 : vector<128x48xf32>
    %92 = math.exp %91 : vector<128x48xf32>
    %cst_51 = arith.constant 1.000000e+00 : f32
    %93 = vector.broadcast %cst_51 : f32 to vector<128x48xf32>
    %94 = arith.addf %93, %92 : vector<128x48xf32>
    %cst_52 = arith.constant 1.000000e+00 : f32
    %95 = vector.broadcast %cst_52 : f32 to vector<128x48xf32>
    %96 = arith.divf %95, %94 : vector<128x48xf32>
    %97 = tpu.iota {dimensions = array<i32: 1>} : vector<1x48xi32>
    %c15_i32 = arith.constant 15 : i32
    %98 = vector.broadcast %c15_i32 : i32 to vector<1x48xi32>
    %99 = arith.andi %97, %98 : vector<1x48xi32>
    %c2_i32 = arith.constant 2 : i32
    %100 = vector.broadcast %c2_i32 : i32 to vector<1x48xi32>
    %101 = arith.cmpi slt, %99, %100 : vector<1x48xi32>
    %102 = vector.shape_cast %101 : vector<1x48xi1> to vector<1x48xi1>
    %103 = vector.broadcast %102 : vector<1x48xi1> to vector<128x48xi1>
    %104 = arith.select %103, %89, %96 : vector<128x48xi1>, vector<128x48xf32>
    %cst_53 = arith.constant 0.000000e+00 : f32
    %105 = vector.broadcast %cst_53 : f32 to vector<128x80xf32>
    %106 = tpu.concatenate %104, %105 in 1 : vector<128x48xf32>, vector<128x80xf32> -> vector<128x128xf32>
    %c0_54 = arith.constant 0 : index
    %c0_55 = arith.constant 0 : index
    %107 = vector.load %arg18[%c0_54, %c0_55] : memref<128x128xf32, #tpu.memory_space<vmem>>, vector<128x128xf32>
    tpu.vector_store %arg18[%c0_54, %c0_55], %106 {strides = array<i32>} : memref<128x128xf32, #tpu.memory_space<vmem>>, vector<128x128xf32>,
    return
  }
  func.func @transform_0(%arg0: i32) -> (i32, i32) {
    %c0_i32 = arith.constant 0 : i32
    %c0_i32_0 = arith.constant 0 : i32
    return %arg0, %c0_i32 : i32, i32
  }
  func.func @transform_1(%arg0: i32) -> (i32, i32) {
    %c0_i32 = arith.constant 0 : i32
    %c0_i32_0 = arith.constant 0 : i32
    %c0_i32_1 = arith.constant 0 : i32
    return %c0_i32, %c0_i32_0 : i32, i32
  }
  func.func @transform_2(%arg0: i32) -> (i32, i32) {
    %c0_i32 = arith.constant 0 : i32
    %c0_i32_0 = arith.constant 0 : i32
    %c0_i32_1 = arith.constant 0 : i32
    return %c0_i32, %c0_i32_0 : i32, i32
  }
  func.func @transform_3(%arg0: i32) -> (i32, i32) {
    %c0_i32 = arith.constant 0 : i32
    %c0_i32_0 = arith.constant 0 : i32
    %c0_i32_1 = arith.constant 0 : i32
    return %c0_i32, %c0_i32_0 : i32, i32
  }
  func.func @transform_4(%arg0: i32) -> (i32, i32) {
    %c0_i32 = arith.constant 0 : i32
    %c0_i32_0 = arith.constant 0 : i32
    %c0_i32_1 = arith.constant 0 : i32
    return %c0_i32, %c0_i32_0 : i32, i32
  }
  func.func @transform_5(%arg0: i32) -> (i32, i32) {
    %c0_i32 = arith.constant 0 : i32
    %c0_i32_0 = arith.constant 0 : i32
    %c0_i32_1 = arith.constant 0 : i32
    return %c0_i32, %c0_i32_0 : i32, i32
  }
  func.func @transform_6(%arg0: i32) -> (i32, i32) {
    %c0_i32 = arith.constant 0 : i32
    %c0_i32_0 = arith.constant 0 : i32
    %c0_i32_1 = arith.constant 0 : i32
    return %c0_i32, %c0_i32_0 : i32, i32
  }
  func.func @transform_7(%arg0: i32) -> (i32, i32) {
    %c0_i32 = arith.constant 0 : i32
    %c0_i32_0 = arith.constant 0 : i32
    %c0_i32_1 = arith.constant 0 : i32
    return %c0_i32, %c0_i32_0 : i32, i32
  }
  func.func @transform_8(%arg0: i32) -> (i32, i32) {
    %c0_i32 = arith.constant 0 : i32
    %c0_i32_0 = arith.constant 0 : i32
    %c0_i32_1 = arith.constant 0 : i32
    return %c0_i32, %c0_i32_0 : i32, i32
  }
  func.func @transform_9(%arg0: i32) -> (i32, i32) {
    %c0_i32 = arith.constant 0 : i32
    %c0_i32_0 = arith.constant 0 : i32
    %c0_i32_1 = arith.constant 0 : i32
    return %c0_i32, %c0_i32_0 : i32, i32
  }
  func.func @transform_10(%arg0: i32) -> (i32, i32) {
    %c0_i32 = arith.constant 0 : i32
    %c0_i32_0 = arith.constant 0 : i32
    %c0_i32_1 = arith.constant 0 : i32
    return %c0_i32, %c0_i32_0 : i32, i32
  }
  func.func @transform_11(%arg0: i32) -> (i32, i32) {
    %c0_i32 = arith.constant 0 : i32
    %c0_i32_0 = arith.constant 0 : i32
    %c0_i32_1 = arith.constant 0 : i32
    return %c0_i32, %c0_i32_0 : i32, i32
  }
  func.func @transform_12(%arg0: i32) -> (i32, i32) {
    %c0_i32 = arith.constant 0 : i32
    %c0_i32_0 = arith.constant 0 : i32
    %c0_i32_1 = arith.constant 0 : i32
    return %c0_i32, %c0_i32_0 : i32, i32
  }
  func.func @transform_13(%arg0: i32) -> (i32, i32) {
    %c0_i32 = arith.constant 0 : i32
    %c0_i32_0 = arith.constant 0 : i32
    %c0_i32_1 = arith.constant 0 : i32
    return %c0_i32, %c0_i32_0 : i32, i32
  }
  func.func @transform_14(%arg0: i32) -> (i32, i32) {
    %c0_i32 = arith.constant 0 : i32
    %c0_i32_0 = arith.constant 0 : i32
    %c0_i32_1 = arith.constant 0 : i32
    return %c0_i32, %c0_i32_0 : i32, i32
  }
  func.func @transform_15(%arg0: i32) -> (i32, i32) {
    %c0_i32 = arith.constant 0 : i32
    %c0_i32_0 = arith.constant 0 : i32
    %c0_i32_1 = arith.constant 0 : i32
    return %c0_i32, %c0_i32_0 : i32, i32
  }
  func.func @transform_16(%arg0: i32) -> (i32, i32) {
    %c0_i32 = arith.constant 0 : i32
    %c0_i32_0 = arith.constant 0 : i32
    %c0_i32_1 = arith.constant 0 : i32
    return %c0_i32, %c0_i32_0 : i32, i32
  }
  func.func @transform_17(%arg0: i32) -> (i32, i32) {
    %c0_i32 = arith.constant 0 : i32
    %c0_i32_0 = arith.constant 0 : i32
    return %arg0, %c0_i32 : i32, i32
  }
}

</mosaic_0001>

<llo_original>
// kernel: tile.23
$region0: #{tile.23}
  #allocation0 [shape = 's32[1]{0}', space=sflag, size = 0x4, scoped, tag = 'scoped memory for tile.23']
  %s0 = inlined_call_operand.vmem [shape: f32[10], index: 0, kind: input, shape index: {}]
  %s1 = inlined_call_operand.vmem [shape: f32[14,10], index: 1, kind: output, shape index: {}]
  // Predicated region
  $region2: #{tile.23} parent=0 // pred_check
    _
  $region3: #{tile.23} parent=0 // pred_check_branch
    %3 = sbr.rel (0) target = $region5
  $region4: #{tile.23} parent=0 // pred_region
    _
  $region5: #{tile.23} parent=0 // pred_fallthru
    _
  %v4 = vld [vmem:[%s0] ss:$0 sm:$0xff]
  %5 = vst [vmem:[%s1] sm:$0xff] %v4
  %s6 = scalar_lea.vmem %s1, 8
  %7 = vst [vmem:[%s6] sm:$0xff] %v4

// kernel: tile.24
$region0: #{tile.24}
  %s0 = inlined_call_operand.vmem [shape: f32[14,10], index: 0, kind: input, shape index: {}]
  %s1 = inlined_call_operand.hbm [shape: f32[1,140], index: 1, kind: output, shape index: {}]
  $region1: #{tile.24} parent=0
    #allocation0 [shape = 'u8[1024]{0}', space=vmem, size = 0x400, scoped, tag = 'operand span for operand 1']
    #allocation1 [shape = 's32[1]{0}', space=sflag, size = 0x4, scoped, tag = 'scoped memory for tile.24']
    #allocation2 [shape = 'u8[8192]{0}', space=vmem, size = 0x2000, scoped, tag = 'scoped mem for output reshape']
    %2 = vsyncpa [#allocation1], 0
    %v3 = vld [vmem:[%s0] sm:$0x1]
    %vm4 = vcmask 80896
    %5 = vst.msk [vmem:[#allocation2] sm:$0x1] %vm4, %v3
    %s6 = scalar_lea.vmem %s0, 12
    %v7 = vld [vmem:[%s6] sm:$0x1]
    %s8 = scalar_lea.vmem %s0, 12
    %v9 = vld [vmem:[%s8] sm:$0x1]
    %vm10 = vcmask 64512
    %v11 = vsel %vm10, %v9, %v7
    %12 = vrot.lane.b32.xlu0 %v11, 120
    %v13 = vpop.permute.xlu0 %12
    %vm14 = vcmask 15360
    %s15 = scalar_lea.vmem [#allocation2], 8
    %16 = vst.msk [vmem:[%s15] sm:$0x1] %vm14, %v13
    %vm17 = vcmask 1048512
    %18 = vst.msk [vmem:[#allocation2] sm:$0x1] %vm17, %v13
    %s19 = scalar_lea.vmem %s0, 11
    %v20 = vld [vmem:[%s19] sm:$0x1]
    %21 = vrot.lane.b32.xlu0 %v20, 110
    %v22 = vpop.permute.xlu0 %21
    %vm23 = vcmask 982896
    %24 = vst.msk [vmem:[#allocation2] sm:$0x1] %vm23, %v22
    %s25 = scalar_lea.vmem %s0, 10
    %v26 = vld [vmem:[%s25] sm:$0x1]
    %27 = vrot.lane.b32.xlu0 %v26, 100
    %v28 = vpop.permute.xlu0 %27
    %vm29 = vcmask 900896
    %30 = vst.msk [vmem:[#allocation2] sm:$0x1] %vm29, %v28
    %s31 = scalar_lea.vmem %s0, 9
    %v32 = vld [vmem:[%s31] sm:$0x1]
    %33 = vrot.lane.b32.xlu0 %v32, 90
    %v34 = vpop.permute.xlu0 %33
    %vm35 = vcmask 818896
    %36 = vst.msk [vmem:[#allocation2] sm:$0x1] %vm35, %v34
    %s37 = scalar_lea.vmem %s0, 8
    %v38 = vld [vmem:[%s37] sm:$0x1]
    %39 = vrot.lane.b32.xlu0 %v38, 80
    %v40 = vpop.permute.xlu0 %39
    %vm41 = vcmask 736896
    %42 = vst.msk [vmem:[#allocation2] sm:$0x1] %vm41, %v40
    %s43 = scalar_lea.vmem %s0, 7
    %v44 = vld [vmem:[%s43] sm:$0x1]
    %45 = vrot.lane.b32.xlu0 %v44, 70
    %v46 = vpop.permute.xlu0 %45
    %vm47 = vcmask 654896
    %48 = vst.msk [vmem:[#allocation2] sm:$0x1] %vm47, %v46
    %s49 = scalar_lea.vmem %s0, 6
    %v50 = vld [vmem:[%s49] sm:$0x1]
    %51 = vrot.lane.b32.xlu0 %v50, 60
    %v52 = vpop.permute.xlu0 %51
    %vm53 = vcmask 572896
    %54 = vst.msk [vmem:[#allocation2] sm:$0x1] %vm53, %v52
    %s55 = scalar_lea.vmem %s0, 5
    %v56 = vld [vmem:[%s55] sm:$0x1]
    %57 = vrot.lane.b32.xlu0 %v56, 50
    %v58 = vpop.permute.xlu0 %57
    %vm59 = vcmask 490896
    %60 = vst.msk [vmem:[#allocation2] sm:$0x1] %vm59, %v58
    %s61 = scalar_lea.vmem %s0, 4
    %v62 = vld [vmem:[%s61] sm:$0x1]
    %63 = vrot.lane.b32.xlu0 %v62, 40
    %v64 = vpop.permute.xlu0 %63
    %vm65 = vcmask 408896
    %66 = vst.msk [vmem:[#allocation2] sm:$0x1] %vm65, %v64
    %s67 = scalar_lea.vmem %s0, 3
    %v68 = vld [vmem:[%s67] sm:$0x1]
    %69 = vrot.lane.b32.xlu0 %v68, 30
    %v70 = vpop.permute.xlu0 %69
    %vm71 = vcmask 326896
    %72 = vst.msk [vmem:[#allocation2] sm:$0x1] %vm71, %v70
    %s73 = scalar_lea.vmem %s0, 2
    %v74 = vld [vmem:[%s73] sm:$0x1]
    %75 = vrot.lane.b32.xlu0 %v74, 20
    %v76 = vpop.permute.xlu0 %75
    %vm77 = vcmask 244896
    %78 = vst.msk [vmem:[#allocation2] sm:$0x1] %vm77, %v76
    %s79 = scalar_lea.vmem %s0, 1
    %v80 = vld [vmem:[%s79] sm:$0x1]
    %81 = vrot.lane.b32.xlu0 %v80, 10
    %v82 = vpop.permute.xlu0 %81
    %vm83 = vcmask 162896
    %84 = vst.msk [vmem:[#allocation2] sm:$0x1] %vm83, %v82
    %s85 = scalar_lea.vmem %s0, 13
    %v86 = vld [vmem:[%s85] sm:$0x1]
    %87 = vrot.lane.b32.xlu0 %v86, 2
    %v88 = vpop.permute.xlu0 %87
    %vm89 = vcmask 97296
    %s90 = scalar_lea.vmem [#allocation2], 8
    %91 = vst.msk [vmem:[%s90] sm:$0x1] %vm89, %v88
    %s93 = sshllo.u32 0, 1
    %v95 = vld [vmem:[#allocation2] sm:%s93]
    %s96 = sshllo.u32 0, 1
    %97 = vst [vmem:[#allocation0] sm:%s96] %v95
    %s98 = scalar_lea.vmem [#allocation2], 8
    %v99 = vld [vmem:[%s98] sm:%s93]
    %s100 = sshllo.u32 0, 1
    %s101 = scalar_lea.vmem [#allocation0], 1
    %102 = vst [vmem:[%s101] sm:%s100] %v99
    %s104 = ssub.s32 32, 32
    %105 = vsyncadd [#allocation1], %s104
    %s107 = sshll.u32 [#allocation0], 4
    %s108 = int_to_ptr.vmem [resolvable:$true] %s107
    %110 = dma.vmem_to_hbm [thread:$0]  %s108, 32, %s1, [#allocation1]
    %111 = dma.done [#allocation1], 32
    %112 = vsyncpa [#allocation1], 1

// kernel: tile.28
$region0: #{tile.28}
  #allocation0 [shape = 's32[1]{0}', space=sflag, size = 0x4, scoped, tag = 'scoped memory for tile.28']
  %s0 = inlined_call_operand.vmem [shape: f32[16], index: 0, kind: input, shape index: {}]
  %s1 = inlined_call_operand.vmem [shape: f32[5,16], index: 1, kind: output, shape index: {}]
  // Predicated region
  $region2: #{tile.28} parent=0 // pred_check
    _
  $region3: #{tile.28} parent=0 // pred_check_branch
    %3 = sbr.rel (0) target = $region5
  $region4: #{tile.28} parent=0 // pred_region
    _
  $region5: #{tile.28} parent=0 // pred_fallthru
    _
  %v4 = vld [vmem:[%s0] ss:$0 sm:$0xff]
  %5 = vst [vmem:[%s1] sm:$0xff] %v4

// kernel: tile.29
$region0: #{tile.29}
  %s0 = inlined_call_operand.vmem [shape: f32[5,16], index: 0, kind: input, shape index: {}]
  %s1 = inlined_call_operand.hbm [shape: f32[1,80], index: 1, kind: output, shape index: {}]
  $region1: #{tile.29} parent=0
    #allocation0 [shape = 'u8[512]{0}', space=vmem, size = 0x400, scoped, tag = 'operand span for operand 1']
    #allocation1 [shape = 's32[1]{0}', space=sflag, size = 0x4, scoped, tag = 'scoped memory for tile.29']
    #allocation2 [shape = 'u8[4096]{0}', space=vmem, size = 0x1000, scoped, tag = 'scoped mem for output reshape']
    %2 = vsyncpa [#allocation1], 0
    %v3 = vld [vmem:[%s0] sm:$0x1]
    %vm4 = vcmask 130048
    %5 = vst.msk [vmem:[#allocation2] sm:$0x1] %vm4, %v3
    %s6 = scalar_lea.vmem %s0, 4
    %v7 = vld [vmem:[%s6] sm:$0x1]
    %8 = vrot.lane.b32.xlu0 %v7, 64
    %v9 = vpop.permute.xlu0 %8
    %vm10 = vcmask 654848
    %11 = vst.msk [vmem:[#allocation2] sm:$0x1] %vm10, %v9
    %s12 = scalar_lea.vmem %s0, 3
    %v13 = vld [vmem:[%s12] sm:$0x1]
    %14 = vrot.lane.b32.xlu0 %v13, 48
    %v15 = vpop.permute.xlu0 %14
    %vm16 = vcmask 523648
    %17 = vst.msk [vmem:[#allocation2] sm:$0x1] %vm16, %v15
    %s18 = scalar_lea.vmem %s0, 2
    %v19 = vld [vmem:[%s18] sm:$0x1]
    %20 = vrot.lane.b32.xlu0 %v19, 32
    %v21 = vpop.permute.xlu0 %20
    %vm22 = vcmask 392448
    %23 = vst.msk [vmem:[#allocation2] sm:$0x1] %vm22, %v21
    %s24 = scalar_lea.vmem %s0, 1
    %v25 = vld [vmem:[%s24] sm:$0x1]
    %26 = vrot.lane.b32.xlu0 %v25, 16
    %v27 = vpop.permute.xlu0 %26
    %vm28 = vcmask 261248
    %29 = vst.msk [vmem:[#allocation2] sm:$0x1] %vm28, %v27
    %s31 = sshllo.u32 0, 1
    %v33 = vld [vmem:[#allocation2] sm:%s31]
    %s34 = sshllo.u32 0, 1
    %35 = vst [vmem:[#allocation0] sm:%s34] %v33
    %s37 = ssub.s32 16, 16
    %38 = vsyncadd [#allocation1], %s37
    %s40 = sshll.u32 [#allocation0], 4
    %s41 = int_to_ptr.vmem [resolvable:$true] %s40
    %43 = dma.vmem_to_hbm [thread:$0]  %s41, 16, %s1, [#allocation1]
    %44 = dma.done [#allocation1], 16
    %45 = vsyncpa [#allocation1], 1

// kernel: tile.33
$region0: #{tile.33}
  #allocation0 [shape = 's32[1]{0}', space=sflag, size = 0x4, scoped, tag = 'scoped memory for tile.33']
  %s0 = inlined_call_operand.vmem [shape: f32[32], index: 0, kind: input, shape index: {}]
  %s1 = inlined_call_operand.vmem [shape: f32[3,32], index: 1, kind: output, shape index: {}]
  // Predicated region
  $region2: #{tile.33} parent=0 // pred_check
    _
  $region3: #{tile.33} parent=0 // pred_check_branch
    %3 = sbr.rel (0) target = $region5
  $region4: #{tile.33} parent=0 // pred_region
    _
  $region5: #{tile.33} parent=0 // pred_fallthru
    _
  %v4 = vld [vmem:[%s0] ss:$0 sm:$0xff]
  %5 = vst [vmem:[%s1] sm:$0xf] %v4

// kernel: tile.34
$region0: #{tile.34}
  %s0 = inlined_call_operand.vmem [shape: f32[3,32], index: 0, kind: input, shape index: {}]
  %s1 = inlined_call_operand.hbm [shape: f32[1,96], index: 1, kind: output, shape index: {}]
  $region1: #{tile.34} parent=0
    #allocation0 [shape = 'u8[512]{0}', space=vmem, size = 0x400, scoped, tag = 'operand span for operand 1']
    #allocation1 [shape = 's32[1]{0}', space=sflag, size = 0x4, scoped, tag = 'scoped memory for tile.34']
    #allocation2 [shape = 'u8[4096]{0}', space=vmem, size = 0x1000, scoped, tag = 'scoped mem for output reshape']
    #allocation3 [shape = 'u8[4096]{0}', space=vmem, size = 0x1000, scoped, tag = 'scoped mem for input reshape']
    %2 = vsyncpa [#allocation1], 0
    %s4 = sshllo.u32 0, 4
    %v5 = vld [vmem:[%s0] sm:%s4]
    %6 = vst [vmem:[#allocation3] sm:%s4] %v5
    %v7 = vld [vmem:[#allocation3] sm:$0x1]
    %vm8 = vcmask 261120
    %9 = vst.msk [vmem:[#allocation2] sm:$0x1] %vm8, %v7
    %s10 = scalar_lea.vmem [#allocation3], 2
    %v11 = vld [vmem:[%s10] sm:$0x1]
    %12 = vrot.lane.b32.xlu0 %v11, 64
    %v13 = vpop.permute.xlu0 %12
    %vm14 = vcmask 785920
    %15 = vst.msk [vmem:[#allocation2] sm:$0x1] %vm14, %v13
    %s16 = scalar_lea.vmem [#allocation3], 1
    %v17 = vld [vmem:[%s16] sm:$0x1]
    %18 = vrot.lane.b32.xlu0 %v17, 32
    %v19 = vpop.permute.xlu0 %18
    %vm20 = vcmask 523520
    %21 = vst.msk [vmem:[#allocation2] sm:$0x1] %vm20, %v19
    %s23 = sshllo.u32 0, 1
    %v25 = vld [vmem:[#allocation2] sm:%s23]
    %s26 = sshllo.u32 0, 1
    %27 = vst [vmem:[#allocation0] sm:%s26] %v25
    %s29 = ssub.s32 16, 16
    %30 = vsyncadd [#allocation1], %s29
    %s32 = sshll.u32 [#allocation0], 4
    %s33 = int_to_ptr.vmem [resolvable:$true] %s32
    %35 = dma.vmem_to_hbm [thread:$0]  %s33, 16, %s1, [#allocation1]
    %36 = dma.done [#allocation1], 16
    %37 = vsyncpa [#allocation1], 1

// kernel: tile.38
$region0: #{tile.38}
  #allocation0 [shape = 's32[1]{0}', space=sflag, size = 0x4, scoped, tag = 'scoped memory for tile.38']
  %s0 = inlined_call_operand.vmem [shape: f32[16], index: 0, kind: input, shape index: {}]
  %s1 = inlined_call_operand.vmem [shape: f32[3,16], index: 1, kind: output, shape index: {}]
  // Predicated region
  $region2: #{tile.38} parent=0 // pred_check
    _
  $region3: #{tile.38} parent=0 // pred_check_branch
    %3 = sbr.rel (0) target = $region5
  $region4: #{tile.38} parent=0 // pred_region
    _
  $region5: #{tile.38} parent=0 // pred_fallthru
    _
  %v4 = vld [vmem:[%s0] ss:$0 sm:$0xff]
  %5 = vst [vmem:[%s1] sm:$0xf] %v4

// kernel: tile.39
$region0: #{tile.39}
  %s0 = inlined_call_operand.vmem [shape: f32[3,16], index: 0, kind: input, shape index: {}]
  %s1 = inlined_call_operand.hbm [shape: f32[1,48], index: 1, kind: output, shape index: {}]
  $region1: #{tile.39} parent=0
    #allocation0 [shape = 'u8[512]{0}', space=vmem, size = 0x400, scoped, tag = 'operand span for operand 1']
    #allocation1 [shape = 's32[1]{0}', space=sflag, size = 0x4, scoped, tag = 'scoped memory for tile.39']
    #allocation2 [shape = 'u8[4096]{0}', space=vmem, size = 0x1000, scoped, tag = 'scoped mem for output reshape']
    #allocation3 [shape = 'u8[4096]{0}', space=vmem, size = 0x1000, scoped, tag = 'scoped mem for input reshape']
    %2 = vsyncpa [#allocation1], 0
    %s4 = sshllo.u32 0, 4
    %v5 = vld [vmem:[%s0] sm:%s4]
    %6 = vst [vmem:[#allocation3] sm:%s4] %v5
    %v7 = vld [vmem:[#allocation3] sm:$0x1]
    %vm8 = vcmask 130048
    %9 = vst.msk [vmem:[#allocation2] sm:$0x1] %vm8, %v7
    %s10 = scalar_lea.vmem [#allocation3], 2
    %v11 = vld [vmem:[%s10] sm:$0x1]
    %12 = vrot.lane.b32.xlu0 %v11, 32
    %v13 = vpop.permute.xlu0 %12
    %vm14 = vcmask 392448
    %15 = vst.msk [vmem:[#allocation2] sm:$0x1] %vm14, %v13
    %s16 = scalar_lea.vmem [#allocation3], 1
    %v17 = vld [vmem:[%s16] sm:$0x1]
    %18 = vrot.lane.b32.xlu0 %v17, 16
    %v19 = vpop.permute.xlu0 %18
    %vm20 = vcmask 261248
    %21 = vst.msk [vmem:[#allocation2] sm:$0x1] %vm20, %v19
    %s23 = sshllo.u32 0, 1
    %v25 = vld [vmem:[#allocation2] sm:%s23]
    %s26 = sshllo.u32 0, 1
    %27 = vst [vmem:[#allocation0] sm:%s26] %v25
    %s29 = ssub.s32 16, 16
    %30 = vsyncadd [#allocation1], %s29
    %s32 = sshll.u32 [#allocation0], 4
    %s33 = int_to_ptr.vmem [resolvable:$true] %s32
    %35 = dma.vmem_to_hbm [thread:$0]  %s33, 16, %s1, [#allocation1]
    %36 = dma.done [#allocation1], 16
    %37 = vsyncpa [#allocation1], 1

// kernel: pnet_forward.1
$region0: #{pnet_forward.1}
  #allocation0 [shape = 'u32[]', space=smem, size = 0x4, offset = 0x4, fixed_abs, tag = 'smem constant byte address 0x4 - core index']
  #allocation1 [shape = 'u32[144,128]{1,0:T(1,128)}', space=vmem, size = 0x12000, scoped, tag = 'internal scratch']
  %s0 = inlined_call_operand.hbm [shape: f32[128,48], index: 0, kind: input, shape index: {}]
  %s1 = inlined_call_operand.hbm [shape: f32[48,140], index: 1, kind: input, shape index: {}]
  %s2 = inlined_call_operand.hbm [shape: f32[48,140], index: 2, kind: input, shape index: {}]
  %s3 = inlined_call_operand.hbm [shape: f32[48,140], index: 3, kind: input, shape index: {}]
  %s4 = inlined_call_operand.hbm [shape: f32[1,140], index: 4, kind: input, shape index: {}]
  %s5 = inlined_call_operand.hbm [shape: f32[130,80], index: 5, kind: input, shape index: {}]
  %s6 = inlined_call_operand.hbm [shape: f32[130,80], index: 6, kind: input, shape index: {}]
  %s7 = inlined_call_operand.hbm [shape: f32[130,80], index: 7, kind: input, shape index: {}]
  %s8 = inlined_call_operand.hbm [shape: f32[1,80], index: 8, kind: input, shape index: {}]
  %s9 = inlined_call_operand.hbm [shape: f32[80,96], index: 9, kind: input, shape index: {}]
  %s10 = inlined_call_operand.hbm [shape: f32[80,96], index: 10, kind: input, shape index: {}]
  %s11 = inlined_call_operand.hbm [shape: f32[80,96], index: 11, kind: input, shape index: {}]
  %s12 = inlined_call_operand.hbm [shape: f32[1,96], index: 12, kind: input, shape index: {}]
  %s13 = inlined_call_operand.hbm [shape: f32[96,48], index: 13, kind: input, shape index: {}]
  %s14 = inlined_call_operand.hbm [shape: f32[1,48], index: 14, kind: input, shape index: {}]
  %s15 = inlined_call_operand.hbm [shape: f32[96,48], index: 15, kind: input, shape index: {}]
  %s16 = inlined_call_operand.hbm [shape: f32[1,48], index: 16, kind: input, shape index: {}]
  %s17 = inlined_call_operand.hbm [shape: f32[128,128], index: 17, kind: output, shape index: {}]
  %s18 = sld [smem:[#allocation0]]
  $region146: #{pnet_forward.1} parent=0
    _
  %s20 = ssub.s32 1, %s18
  %s21 = scalar_select 0, %s20, %s18
  $region1: #{pnet_forward.1} parent=0
    #allocation2 [shape = 'u8[65536]{0}', space=vmem, size = 0x10000, scoped, tag = 'input window, operand 0, single buffered']
    #allocation3 [shape = 's32[1]{0}', space=sflag, size = 0x4, scoped, tag = 'scoped memory for pnet_forward.1']
    #allocation4 [shape = 's32[1]{0}', space=sflag, size = 0x4, scoped, tag = 'scoped memory for pnet_forward.1']
    #allocation5 [shape = 'u8[49152]{0}', space=vmem, size = 0xc000, scoped, tag = 'input window, operand 1, single buffered']
    #allocation6 [shape = 's32[1]{0}', space=sflag, size = 0x4, scoped, tag = 'scoped memory for pnet_forward.1']
    #allocation7 [shape = 'u8[49152]{0}', space=vmem, size = 0xc000, scoped, tag = 'input window, operand 2, single buffered']
    #allocation8 [shape = 'u8[49152]{0}', space=vmem, size = 0xc000, scoped, tag = 'input window, operand 3, single buffered']
    #allocation9 [shape = 's32[1]{0}', space=sflag, size = 0x4, scoped, tag = 'scoped memory for pnet_forward.1']
    #allocation10 [shape = 'u8[1024]{0}', space=vmem, size = 0x400, scoped, tag = 'input window, operand 4, single buffered']
    #allocation11 [shape = 'u8[69632]{0}', space=vmem, size = 0x11000, scoped, tag = 'input window, operand 5, single buffered']
    #allocation12 [shape = 's32[1]{0}', space=sflag, size = 0x4, scoped, tag = 'scoped memory for pnet_forward.1']
    #allocation13 [shape = 'u8[69632]{0}', space=vmem, size = 0x11000, scoped, tag = 'input window, operand 6, single buffered']
    #allocation14 [shape = 'u8[69632]{0}', space=vmem, size = 0x11000, scoped, tag = 'input window, operand 7, single buffered']
    #allocation15 [shape = 's32[1]{0}', space=sflag, size = 0x4, scoped, tag = 'scoped memory for pnet_forward.1']
    #allocation16 [shape = 'u8[512]{0}', space=vmem, size = 0x400, scoped, tag = 'input window, operand 8, single buffered']
    #allocation17 [shape = 'u8[40960]{0}', space=vmem, size = 0xa000, scoped, tag = 'input window, operand 9, single buffered']
    #allocation18 [shape = 's32[1]{0}', space=sflag, size = 0x4, scoped, tag = 'scoped memory for pnet_forward.1']
    #allocation19 [shape = 'u8[40960]{0}', space=vmem, size = 0xa000, scoped, tag = 'input window, operand 10, single buffered']
    #allocation20 [shape = 'u8[40960]{0}', space=vmem, size = 0xa000, scoped, tag = 'input window, operand 11, single buffered']
    #allocation21 [shape = 's32[1]{0}', space=sflag, size = 0x4, scoped, tag = 'scoped memory for pnet_forward.1']
    #allocation22 [shape = 'u8[512]{0}', space=vmem, size = 0x400, scoped, tag = 'input window, operand 12, single buffered']
    #allocation23 [shape = 'u8[49152]{0}', space=vmem, size = 0xc000, scoped, tag = 'input window, operand 13, single buffered']
    #allocation24 [shape = 's32[1]{0}', space=sflag, size = 0x4, scoped, tag = 'scoped memory for pnet_forward.1']
    #allocation25 [shape = 'u8[512]{0}', space=vmem, size = 0x400, scoped, tag = 'input window, operand 14, single buffered']
    #allocation26 [shape = 'u8[49152]{0}', space=vmem, size = 0xc000, scoped, tag = 'input window, operand 15, single buffered']
    #allocation27 [shape = 's32[1]{0}', space=sflag, size = 0x4, scoped, tag = 'scoped memory for pnet_forward.1']
    #allocation28 [shape = 'u8[512]{0}', space=vmem, size = 0x400, scoped, tag = 'input window, operand 16, single buffered']
    #allocation29 [shape = 'u8[65536]{0}', space=vmem, size = 0x10000, scoped, tag = 'output window, operand 0, single buffered']
    %22 = vsyncpa [#allocation3], 0
    %23 = vsyncpa [#allocation6], 0
    %24 = vsyncpa [#allocation9], 0
    %25 = vsyncpa [#allocation12], 0
    %26 = vsyncpa [#allocation15], 0
    %27 = vsyncpa [#allocation18], 0
    %28 = vsyncpa [#allocation21], 0
    %29 = vsyncpa [#allocation24], 0
    %30 = vsyncpa [#allocation27], 0
    %31 = vsyncpa [#allocation4], 0
    // Predicated region
    $region2: #{pnet_forward.1} parent=1 // pred_check
      _
    $region3: #{pnet_forward.1} parent=1 // pred_check_branch
      %33 = sbr.rel (0) target = $region5
    $region4: #{pnet_forward.1} parent=1 // pred_region
      %s35 = ssub.s32 2048, 2048
      %36 = vsyncadd [#allocation3], %s35
      %s37 = sshll.u32 [#allocation2], 4
      %s38 = int_to_ptr.vmem [resolvable:$true] %s37
      %43 = dma.hbm_to_vmem [thread:$0]  %s0, 2048, %s38, [#allocation3], 128, 128, 8
    $region5: #{pnet_forward.1} parent=1 // pred_fallthru
      _
    // Predicated region
    $region6: #{pnet_forward.1} parent=1 // pred_check
      _
    $region7: #{pnet_forward.1} parent=1 // pred_check_branch
      %45 = sbr.rel (0) target = $region9
    $region8: #{pnet_forward.1} parent=1 // pred_region
      %s47 = ssub.s32 1536, 1536
      %48 = vsyncadd [#allocation6], %s47
      %s49 = sshll.u32 [#allocation5], 4
      %s50 = int_to_ptr.vmem [resolvable:$true] %s49
      %55 = dma.hbm_to_vmem [thread:$0]  %s1, 1536, %s50, [#allocation6], 256, 256, 16
    $region9: #{pnet_forward.1} parent=1 // pred_fallthru
      _
    // Predicated region
    $region10: #{pnet_forward.1} parent=1 // pred_check
      _
    $region11: #{pnet_forward.1} parent=1 // pred_check_branch
      %57 = sbr.rel (0) target = $region13
    $region12: #{pnet_forward.1} parent=1 // pred_region
      %s59 = ssub.s32 1536, 1536
      %60 = vsyncadd [#allocation6], %s59
      %s61 = sshll.u32 [#allocation7], 4
      %s62 = int_to_ptr.vmem [resolvable:$true] %s61
      %67 = dma.hbm_to_vmem [thread:$0]  %s2, 1536, %s62, [#allocation6], 256, 256, 16
    $region13: #{pnet_forward.1} parent=1 // pred_fallthru
      _
    // Predicated region
    $region14: #{pnet_forward.1} parent=1 // pred_check
      _
    $region15: #{pnet_forward.1} parent=1 // pred_check_branch
      %69 = sbr.rel (0) target = $region17
    $region16: #{pnet_forward.1} parent=1 // pred_region
      %s71 = ssub.s32 1536, 1536
      %72 = vsyncadd [#allocation9], %s71
      %s73 = sshll.u32 [#allocation8], 4
      %s74 = int_to_ptr.vmem [resolvable:$true] %s73
      %79 = dma.hbm_to_vmem [thread:$0]  %s3, 1536, %s74, [#allocation9], 256, 256, 16
    $region17: #{pnet_forward.1} parent=1 // pred_fallthru
      _
    // Predicated region
    $region18: #{pnet_forward.1} parent=1 // pred_check
      _
    $region19: #{pnet_forward.1} parent=1 // pred_check_branch
      %81 = sbr.rel (0) target = $region21
    $region20: #{pnet_forward.1} parent=1 // pred_region
      %s83 = ssub.s32 32, 32
      %84 = vsyncadd [#allocation9], %s83
      %s86 = sshll.u32 [#allocation10], 4
      %s87 = int_to_ptr.vmem [resolvable:$true] %s86
      %89 = dma.hbm_to_vmem [thread:$0]  %s4, 32, %s87, [#allocation9]
    $region21: #{pnet_forward.1} parent=1 // pred_fallthru
      _
    // Predicated region
    $region22: #{pnet_forward.1} parent=1 // pred_check
      _
    $region23: #{pnet_forward.1} parent=1 // pred_check_branch
      %91 = sbr.rel (0) target = $region25
    $region24: #{pnet_forward.1} parent=1 // pred_region
      %s93 = ssub.s32 2176, 2176
      %94 = vsyncadd [#allocation12], %s93
      %s95 = sshll.u32 [#allocation11], 4
      %s96 = int_to_ptr.vmem [resolvable:$true] %s95
      %101 = dma.hbm_to_vmem [thread:$0]  %s5, 2176, %s96, [#allocation12], 128, 128, 8
    $region25: #{pnet_forward.1} parent=1 // pred_fallthru
      _
    // Predicated region
    $region26: #{pnet_forward.1} parent=1 // pred_check
      _
    $region27: #{pnet_forward.1} parent=1 // pred_check_branch
      %103 = sbr.rel (0) target = $region29
    $region28: #{pnet_forward.1} parent=1 // pred_region
      %s105 = ssub.s32 2176, 2176
      %106 = vsyncadd [#allocation12], %s105
      %s107 = sshll.u32 [#allocation13], 4
      %s108 = int_to_ptr.vmem [resolvable:$true] %s107
      %113 = dma.hbm_to_vmem [thread:$0]  %s6, 2176, %s108, [#allocation12], 128, 128, 8
    $region29: #{pnet_forward.1} parent=1 // pred_fallthru
      _
    // Predicated region
    $region30: #{pnet_forward.1} parent=1 // pred_check
      _
    $region31: #{pnet_forward.1} parent=1 // pred_check_branch
      %115 = sbr.rel (0) target = $region33
    $region32: #{pnet_forward.1} parent=1 // pred_region
      %s117 = ssub.s32 2176, 2176
      %118 = vsyncadd [#allocation15], %s117
      %s119 = sshll.u32 [#allocation14], 4
      %s120 = int_to_ptr.vmem [resolvable:$true] %s119
      %125 = dma.hbm_to_vmem [thread:$0]  %s7, 2176, %s120, [#allocation15], 128, 128, 8
    $region33: #{pnet_forward.1} parent=1 // pred_fallthru
      _
    // Predicated region
    $region34: #{pnet_forward.1} parent=1 // pred_check
      _
    $region35: #{pnet_forward.1} parent=1 // pred_check_branch
      %127 = sbr.rel (0) target = $region37
    $region36: #{pnet_forward.1} parent=1 // pred_region
      %s129 = ssub.s32 16, 16
      %130 = vsyncadd [#allocation15], %s129
      %s132 = sshll.u32 [#allocation16], 4
      %s133 = int_to_ptr.vmem [resolvable:$true] %s132
      %135 = dma.hbm_to_vmem [thread:$0]  %s8, 16, %s133, [#allocation15]
    $region37: #{pnet_forward.1} parent=1 // pred_fallthru
      _
    // Predicated region
    $region38: #{pnet_forward.1} parent=1 // pred_check
      _
    $region39: #{pnet_forward.1} parent=1 // pred_check_branch
      %137 = sbr.rel (0) target = $region41
    $region40: #{pnet_forward.1} parent=1 // pred_region
      %s139 = ssub.s32 1280, 1280
      %140 = vsyncadd [#allocation18], %s139
      %s141 = sshll.u32 [#allocation17], 4
      %s142 = int_to_ptr.vmem [resolvable:$true] %s141
      %147 = dma.hbm_to_vmem [thread:$0]  %s9, 1280, %s142, [#allocation18], 128, 128, 8
    $region41: #{pnet_forward.1} parent=1 // pred_fallthru
      _
    // Predicated region
    $region42: #{pnet_forward.1} parent=1 // pred_check
      _
    $region43: #{pnet_forward.1} parent=1 // pred_check_branch
      %149 = sbr.rel (0) target = $region45
    $region44: #{pnet_forward.1} parent=1 // pred_region
      %s151 = ssub.s32 1280, 1280
      %152 = vsyncadd [#allocation18], %s151
      %s153 = sshll.u32 [#allocation19], 4
      %s154 = int_to_ptr.vmem [resolvable:$true] %s153
      %159 = dma.hbm_to_vmem [thread:$0]  %s10, 1280, %s154, [#allocation18], 128, 128, 8
    $region45: #{pnet_forward.1} parent=1 // pred_fallthru
      _
    // Predicated region
    $region46: #{pnet_forward.1} parent=1 // pred_check
      _
    $region47: #{pnet_forward.1} parent=1 // pred_check_branch
      %161 = sbr.rel (0) target = $region49
    $region48: #{pnet_forward.1} parent=1 // pred_region
      %s163 = ssub.s32 1280, 1280
      %164 = vsyncadd [#allocation21], %s163
      %s165 = sshll.u32 [#allocation20], 4
      %s166 = int_to_ptr.vmem [resolvable:$true] %s165
      %171 = dma.hbm_to_vmem [thread:$0]  %s11, 1280, %s166, [#allocation21], 128, 128, 8
    $region49: #{pnet_forward.1} parent=1 // pred_fallthru
      _
    // Predicated region
    $region50: #{pnet_forward.1} parent=1 // pred_check
      _
    $region51: #{pnet_forward.1} parent=1 // pred_check_branch
      %173 = sbr.rel (0) target = $region53
    $region52: #{pnet_forward.1} parent=1 // pred_region
      %s175 = ssub.s32 16, 16
      %176 = vsyncadd [#allocation21], %s175
      %s178 = sshll.u32 [#allocation22], 4
      %s179 = int_to_ptr.vmem [resolvable:$true] %s178
      %181 = dma.hbm_to_vmem [thread:$0]  %s12, 16, %s179, [#allocation21]
    $region53: #{pnet_forward.1} parent=1 // pred_fallthru
      _
    // Predicated region
    $region54: #{pnet_forward.1} parent=1 // pred_check
      _
    $region55: #{pnet_forward.1} parent=1 // pred_check_branch
      %183 = sbr.rel (0) target = $region57
    $region56: #{pnet_forward.1} parent=1 // pred_region
      %s185 = ssub.s32 1536, 1536
      %186 = vsyncadd [#allocation24], %s185
      %s187 = sshll.u32 [#allocation23], 4
      %s188 = int_to_ptr.vmem [resolvable:$true] %s187
      %193 = dma.hbm_to_vmem [thread:$0]  %s13, 1536, %s188, [#allocation24], 128, 128, 8
    $region57: #{pnet_forward.1} parent=1 // pred_fallthru
      _
    // Predicated region
    $region58: #{pnet_forward.1} parent=1 // pred_check
      _
    $region59: #{pnet_forward.1} parent=1 // pred_check_branch
      %195 = sbr.rel (0) target = $region61
    $region60: #{pnet_forward.1} parent=1 // pred_region
      %s197 = ssub.s32 16, 16
      %198 = vsyncadd [#allocation24], %s197
      %s200 = sshll.u32 [#allocation25], 4
      %s201 = int_to_ptr.vmem [resolvable:$true] %s200
      %203 = dma.hbm_to_vmem [thread:$0]  %s14, 16, %s201, [#allocation24]
    $region61: #{pnet_forward.1} parent=1 // pred_fallthru
      _
    // Predicated region
    $region62: #{pnet_forward.1} parent=1 // pred_check
      _
    $region63: #{pnet_forward.1} parent=1 // pred_check_branch
      %205 = sbr.rel (0) target = $region65
    $region64: #{pnet_forward.1} parent=1 // pred_region
      %s207 = ssub.s32 1536, 1536
      %208 = vsyncadd [#allocation27], %s207
      %s209 = sshll.u32 [#allocation26], 4
      %s210 = int_to_ptr.vmem [resolvable:$true] %s209
      %215 = dma.hbm_to_vmem [thread:$0]  %s15, 1536, %s210, [#allocation27], 128, 128, 8
    $region65: #{pnet_forward.1} parent=1 // pred_fallthru
      _
    // Predicated region
    $region66: #{pnet_forward.1} parent=1 // pred_check
      _
    $region67: #{pnet_forward.1} parent=1 // pred_check_branch
      %217 = sbr.rel (0) target = $region69
    $region68: #{pnet_forward.1} parent=1 // pred_region
      %s219 = ssub.s32 16, 16
      %220 = vsyncadd [#allocation27], %s219
      %s222 = sshll.u32 [#allocation28], 4
      %s223 = int_to_ptr.vmem [resolvable:$true] %s222
      %225 = dma.hbm_to_vmem [thread:$0]  %s16, 16, %s223, [#allocation27]
    $region69: #{pnet_forward.1} parent=1 // pred_fallthru
      _
    // Predicated region
    $region70: #{pnet_forward.1} parent=1 // pred_check
      _
    $region71: #{pnet_forward.1} parent=1 // pred_check_branch
      %227 = sbr.rel (0) target = $region73
    $region72: #{pnet_forward.1} parent=1 // pred_region
      %228 = dma.done [#allocation3], 2048
    $region73: #{pnet_forward.1} parent=1 // pred_fallthru
      _
    // Predicated region
    $region74: #{pnet_forward.1} parent=1 // pred_check
      _
    $region75: #{pnet_forward.1} parent=1 // pred_check_branch
      %230 = sbr.rel (0) target = $region77
    $region76: #{pnet_forward.1} parent=1 // pred_region
      %231 = dma.done [#allocation6], 1536
    $region77: #{pnet_forward.1} parent=1 // pred_fallthru
      _
    // Predicated region
    $region78: #{pnet_forward.1} parent=1 // pred_check
      _
    $region79: #{pnet_forward.1} parent=1 // pred_check_branch
      %233 = sbr.rel (0) target = $region81
    $region80: #{pnet_forward.1} parent=1 // pred_region
      %234 = dma.done [#allocation6], 1536
    $region81: #{pnet_forward.1} parent=1 // pred_fallthru
      _
    // Predicated region
    $region82: #{pnet_forward.1} parent=1 // pred_check
      _
    $region83: #{pnet_forward.1} parent=1 // pred_check_branch
      %236 = sbr.rel (0) target = $region85
    $region84: #{pnet_forward.1} parent=1 // pred_region
      %237 = dma.done [#allocation9], 1536
    $region85: #{pnet_forward.1} parent=1 // pred_fallthru
      _
    // Predicated region
    $region86: #{pnet_forward.1} parent=1 // pred_check
      _
    $region87: #{pnet_forward.1} parent=1 // pred_check_branch
      %239 = sbr.rel (0) target = $region89
    $region88: #{pnet_forward.1} parent=1 // pred_region
      %240 = dma.done [#allocation9], 32
    $region89: #{pnet_forward.1} parent=1 // pred_fallthru
      _
    // Predicated region
    $region90: #{pnet_forward.1} parent=1 // pred_check
      _
    $region91: #{pnet_forward.1} parent=1 // pred_check_branch
      %242 = sbr.rel (0) target = $region93
    $region92: #{pnet_forward.1} parent=1 // pred_region
      %243 = dma.done [#allocation12], 2176
    $region93: #{pnet_forward.1} parent=1 // pred_fallthru
      _
    // Predicated region
    $region94: #{pnet_forward.1} parent=1 // pred_check
      _
    $region95: #{pnet_forward.1} parent=1 // pred_check_branch
      %245 = sbr.rel (0) target = $region97
    $region96: #{pnet_forward.1} parent=1 // pred_region
      %246 = dma.done [#allocation12], 2176
    $region97: #{pnet_forward.1} parent=1 // pred_fallthru
      _
    // Predicated region
    $region98: #{pnet_forward.1} parent=1 // pred_check
      _
    $region99: #{pnet_forward.1} parent=1 // pred_check_branch
      %248 = sbr.rel (0) target = $region101
    $region100: #{pnet_forward.1} parent=1 // pred_region
      %249 = dma.done [#allocation15], 2176
    $region101: #{pnet_forward.1} parent=1 // pred_fallthru
      _
    // Predicated region
    $region102: #{pnet_forward.1} parent=1 // pred_check
      _
    $region103: #{pnet_forward.1} parent=1 // pred_check_branch
      %251 = sbr.rel (0) target = $region105
    $region104: #{pnet_forward.1} parent=1 // pred_region
      %252 = dma.done [#allocation15], 16
    $region105: #{pnet_forward.1} parent=1 // pred_fallthru
      _
    // Predicated region
    $region106: #{pnet_forward.1} parent=1 // pred_check
      _
    $region107: #{pnet_forward.1} parent=1 // pred_check_branch
      %254 = sbr.rel (0) target = $region109
    $region108: #{pnet_forward.1} parent=1 // pred_region
      %255 = dma.done [#allocation18], 1280
    $region109: #{pnet_forward.1} parent=1 // pred_fallthru
      _
    // Predicated region
    $region110: #{pnet_forward.1} parent=1 // pred_check
      _
    $region111: #{pnet_forward.1} parent=1 // pred_check_branch
      %257 = sbr.rel (0) target = $region113
    $region112: #{pnet_forward.1} parent=1 // pred_region
      %258 = dma.done [#allocation18], 1280
    $region113: #{pnet_forward.1} parent=1 // pred_fallthru
      _
    // Predicated region
    $region114: #{pnet_forward.1} parent=1 // pred_check
      _
    $region115: #{pnet_forward.1} parent=1 // pred_check_branch
      %260 = sbr.rel (0) target = $region117
    $region116: #{pnet_forward.1} parent=1 // pred_region
      %261 = dma.done [#allocation21], 1280
    $region117: #{pnet_forward.1} parent=1 // pred_fallthru
      _
    // Predicated region
    $region118: #{pnet_forward.1} parent=1 // pred_check
      _
    $region119: #{pnet_forward.1} parent=1 // pred_check_branch
      %263 = sbr.rel (0) target = $region121
    $region120: #{pnet_forward.1} parent=1 // pred_region
      %264 = dma.done [#allocation21], 16
    $region121: #{pnet_forward.1} parent=1 // pred_fallthru
      _
    // Predicated region
    $region122: #{pnet_forward.1} parent=1 // pred_check
      _
    $region123: #{pnet_forward.1} parent=1 // pred_check_branch
      %266 = sbr.rel (0) target = $region125
    $region124: #{pnet_forward.1} parent=1 // pred_region
      %267 = dma.done [#allocation24], 1536
    $region125: #{pnet_forward.1} parent=1 // pred_fallthru
      _
    // Predicated region
    $region126: #{pnet_forward.1} parent=1 // pred_check
      _
    $region127: #{pnet_forward.1} parent=1 // pred_check_branch
      %269 = sbr.rel (0) target = $region129
    $region128: #{pnet_forward.1} parent=1 // pred_region
      %270 = dma.done [#allocation24], 16
    $region129: #{pnet_forward.1} parent=1 // pred_fallthru
      _
    // Predicated region
    $region130: #{pnet_forward.1} parent=1 // pred_check
      _
    $region131: #{pnet_forward.1} parent=1 // pred_check_branch
      %272 = sbr.rel (0) target = $region133
    $region132: #{pnet_forward.1} parent=1 // pred_region
      %273 = dma.done [#allocation27], 1536
    $region133: #{pnet_forward.1} parent=1 // pred_fallthru
      _
    // Predicated region
    $region134: #{pnet_forward.1} parent=1 // pred_check
      _
    $region135: #{pnet_forward.1} parent=1 // pred_check_branch
      %275 = sbr.rel (0) target = $region137
    $region136: #{pnet_forward.1} parent=1 // pred_region
      %276 = dma.done [#allocation27], 16
    $region137: #{pnet_forward.1} parent=1 // pred_fallthru
      _
    %v277 = vld [vmem:[#allocation2] sm:$0xff]
    %v278 = vld [vmem:[#allocation2 + $0x8] sm:$0xff]
    %v279 = vld [vmem:[#allocation2 + $0x10] sm:$0xff]
    %v280 = vld [vmem:[#allocation2 + $0x18] sm:$0xff]
    %v281 = vld [vmem:[#allocation2 + $0x20] sm:$0xff]
    %v282 = vld [vmem:[#allocation2 + $0x28] sm:$0xff]
    %v283 = vld [vmem:[#allocation2 + $0x30] sm:$0xff]
    %v284 = vld [vmem:[#allocation2 + $0x38] sm:$0xff]
    %v285 = vld [vmem:[#allocation2 + $0x40] sm:$0xff]
    %v286 = vld [vmem:[#allocation2 + $0x48] sm:$0xff]
    %v287 = vld [vmem:[#allocation2 + $0x50] sm:$0xff]
    %v288 = vld [vmem:[#allocation2 + $0x58] sm:$0xff]
    %v289 = vld [vmem:[#allocation2 + $0x60] sm:$0xff]
    %v290 = vld [vmem:[#allocation2 + $0x68] sm:$0xff]
    %v291 = vld [vmem:[#allocation2 + $0x70] sm:$0xff]
    %v292 = vld [vmem:[#allocation2 + $0x78] sm:$0xff]
    %v293 = vld [vmem:[#allocation5] sm:$0xff]
    %v294 = vld [vmem:[#allocation5 + $0x8] sm:$0xff]
    %v295 = vld [vmem:[#allocation5 + $0x10] sm:$0xff]
    %v296 = vld [vmem:[#allocation5 + $0x18] sm:$0xff]
    %v297 = vld [vmem:[#allocation5 + $0x20] sm:$0xff]
    %v298 = vld [vmem:[#allocation5 + $0x28] sm:$0xff]
    %v299 = vld [vmem:[#allocation5 + $0x30] sm:$0xff]
    %v300 = vld [vmem:[#allocation5 + $0x38] sm:$0xff]
    %v301 = vld [vmem:[#allocation5 + $0x40] sm:$0xff]
    %v302 = vld [vmem:[#allocation5 + $0x48] sm:$0xff]
    %v303 = vld [vmem:[#allocation5 + $0x50] sm:$0xff]
    %v304 = vld [vmem:[#allocation5 + $0x58] sm:$0xff]
    %vm321 = vcmask 1046528
    %v322 = vrot.slane %v277, 1
    %v323 = vrot.slane %v278, 1
    %v324 = vsel %vm321, %v322, %v323
    %v325 = vrot.slane %v279, 1
    %v326 = vsel %vm321, %v323, %v325
    %v327 = vrot.slane %v280, 1
    %v328 = vsel %vm321, %v325, %v327
    %v329 = vrot.slane %v281, 1
    %v330 = vsel %vm321, %v327, %v329
    %v331 = vrot.slane %v282, 1
    %v332 = vsel %vm321, %v329, %v331
    %v333 = vrot.slane %v283, 1
    %v334 = vsel %vm321, %v331, %v333
    %v335 = vrot.slane %v284, 1
    %v336 = vsel %vm321, %v333, %v335
    %v337 = vrot.slane %v285, 1
    %v338 = vsel %vm321, %v335, %v337
    %v339 = vrot.slane %v286, 1
    %v340 = vsel %vm321, %v337, %v339
    %v341 = vrot.slane %v287, 1
    %v342 = vsel %vm321, %v339, %v341
    %v343 = vrot.slane %v288, 1
    %v344 = vsel %vm321, %v341, %v343
    %v345 = vrot.slane %v289, 1
    %v346 = vsel %vm321, %v343, %v345
    %v347 = vrot.slane %v290, 1
    %v348 = vsel %vm321, %v345, %v347
    %v349 = vrot.slane %v291, 1
    %v350 = vsel %vm321, %v347, %v349
    %v351 = vrot.slane %v292, 1
    %v352 = vsel %vm321, %v349, %v351
    %v355 = vsel %vm321, %v351, %v322
    %v356 = vld [vmem:[#allocation7] sm:$0xff]
    %v357 = vld [vmem:[#allocation7 + $0x8] sm:$0xff]
    %v358 = vld [vmem:[#allocation7 + $0x10] sm:$0xff]
    %v359 = vld [vmem:[#allocation7 + $0x18] sm:$0xff]
    %v360 = vld [vmem:[#allocation7 + $0x20] sm:$0xff]
    %v361 = vld [vmem:[#allocation7 + $0x28] sm:$0xff]
    %v362 = vld [vmem:[#allocation7 + $0x30] sm:$0xff]
    %v363 = vld [vmem:[#allocation7 + $0x38] sm:$0xff]
    %v364 = vld [vmem:[#allocation7 + $0x40] sm:$0xff]
    %v365 = vld [vmem:[#allocation7 + $0x48] sm:$0xff]
    %v366 = vld [vmem:[#allocation7 + $0x50] sm:$0xff]
    %v367 = vld [vmem:[#allocation7 + $0x58] sm:$0xff]
    %vm368 = vcmask 392192
    %v369 = vsel %vm368, %v324, 0
    %v371 = vsel %vm368, %v326, 0
    %v373 = vsel %vm368, %v328, 0
    %v375 = vsel %vm368, %v330, 0
    %v377 = vsel %vm368, %v332, 0
    %v379 = vsel %vm368, %v334, 0
    %v381 = vsel %vm368, %v336, 0
    %v383 = vsel %vm368, %v338, 0
    %v385 = vsel %vm368, %v340, 0
    %v387 = vsel %vm368, %v342, 0
    %v389 = vsel %vm368, %v344, 0
    %v391 = vsel %vm368, %v346, 0
    %v393 = vsel %vm368, %v348, 0
    %v395 = vsel %vm368, %v350, 0
    %v397 = vsel %vm368, %v352, 0
    %v400 = vsel %vm368, %v355, 0
    %402 = vmatprep.subr.mxu0 %v357
    %403 = vmatpush1.msra.mxu0 %v356
    %404 = vmatprep.subr.mxu0 %v359
    %405 = vmatpush1.msra.mxu0 %v358
    %406 = vmatprep.subr.mxu0 %v361
    %407 = vmatpush1.msra.mxu0 %v360
    %408 = vmatprep.subr.mxu0 %v363
    %409 = vmatpush1.msra.mxu0 %v362
    %410 = vmatprep.subr.mxu0 %v365
    %411 = vmatpush1.msra.mxu0 %v364
    %412 = vmatprep.subr.mxu0 %v367
    %413 = vmatpush1.msra.mxu0 %v366
    %414 = vmatprep.subr.mxu0 0.0
    %415 = vmatpush1.msra.mxu0 0.0
    %416 = vmatprep.subr.mxu0 0.0
    %417 = vmatpush1.msra.mxu0 0.0
    %418 = vmatprep.subr.mxu0 0.0
    %419 = vmatpush1.msra.mxu0 0.0
    %420 = vmatprep.subr.mxu0 0.0
    %421 = vmatpush1.msra.mxu0 0.0
    %422 = vmatprep.subr.mxu0 0.0
    %423 = vmatpush1.msra.mxu0 0.0
    %424 = vmatprep.subr.mxu0 0.0
    %425 = vmatpush1.msra.mxu0 0.0
    %426 = vmatprep.subr.mxu0 0.0
    %427 = vmatpush1.msra.mxu0 0.0
    %428 = vmatprep.subr.mxu0 0.0
    %429 = vmatpush1.msra.mxu0 0.0
    %430 = vmatprep.subr.mxu0 0.0
    %431 = vmatpush1.msra.mxu0 0.0
    %432 = vmatprep.subr.mxu0 0.0
    %433 = vmatpush1.msra.mxu0 0.0
    %434 = vmatprep.subr.mxu0 0.0
    %435 = vmatpush1.msra.mxu0 0.0
    %436 = vmatprep.subr.mxu0 0.0
    %437 = vmatpush1.msra.mxu0 0.0
    %438 = vmatprep.subr.mxu0 0.0
    %439 = vmatpush1.msra.mxu0 0.0
    %440 = vmatprep.subr.mxu0 0.0
    %441 = vmatpush1.msra.mxu0 0.0
    %442 = vmatprep.subr.mxu0 0.0
    %443 = vmatpush1.msra.mxu0 0.0
    %444 = vmatprep.subr.mxu0 0.0
    %445 = vmatpush1.msra.mxu0 0.0
    %446 = vmatprep.subr.mxu0 0.0
    %447 = vmatpush1.msra.mxu0 0.0
    %448 = vmatprep.subr.mxu0 0.0
    %449 = vmatpush1.msra.mxu0 0.0
    %450 = vmatprep.subr.mxu0 0.0
    %451 = vmatpush1.msra.mxu0 0.0
    %452 = vmatprep.subr.mxu0 0.0
    %453 = vmatpush1.msra.mxu0 0.0
    %454 = vmatprep.subr.mxu0 0.0
    %455 = vmatpush1.msra.mxu0 0.0
    %456 = vmatprep.subr.mxu0 0.0
    %457 = vmatpush1.msra.mxu0 0.0
    %458 = vmatprep.subr.mxu0 0.0
    %459 = vmatpush1.msra.mxu0 0.0
    %460 = vmatprep.subr.mxu0 0.0
    %461 = vmatpush1.msra.mxu0 0.0
    %462 = vmatprep.subr.mxu0 0.0
    %463 = vmatpush1.msra.mxu0 0.0
    %464 = vmatprep.subr.mxu0 0.0
    %465 = vmatpush1.msra.mxu0 0.0
    %466 = vmatprep.mubr.f32.mxu0 0.0
    %467 = vmatmul.mubr.f32.gmra.mrb[0].mxu0 %v369
    %v468 = vpop.f32.mrb[0].mxu0
    %v469 = vadd.f32 0.0, %v468
    %v470 = vpop.f32.mrb[0].mxu0
    %v471 = vadd.f32 0.0, %v470
    %472 = vmatprep.mubr.f32.mxu0 0.0
    %473 = vmatmul.mubr.f32.gmra.mrb[0].mxu0 %v371
    %v474 = vpop.f32.mrb[0].mxu0
    %v475 = vadd.f32 0.0, %v474
    %v476 = vpop.f32.mrb[0].mxu0
    %v477 = vadd.f32 0.0, %v476
    %478 = vmatprep.mubr.f32.mxu0 0.0
    %479 = vmatmul.mubr.f32.gmra.mrb[0].mxu0 %v373
    %v480 = vpop.f32.mrb[0].mxu0
    %v481 = vadd.f32 0.0, %v480
    %v482 = vpop.f32.mrb[0].mxu0
    %v483 = vadd.f32 0.0, %v482
    %484 = vmatprep.mubr.f32.mxu0 0.0
    %485 = vmatmul.mubr.f32.gmra.mrb[0].mxu0 %v375
    %v486 = vpop.f32.mrb[0].mxu0
    %v487 = vadd.f32 0.0, %v486
    %v488 = vpop.f32.mrb[0].mxu0
    %v489 = vadd.f32 0.0, %v488
    %490 = vmatprep.mubr.f32.mxu0 0.0
    %491 = vmatmul.mubr.f32.gmra.mrb[0].mxu0 %v377
    %v492 = vpop.f32.mrb[0].mxu0
    %v493 = vadd.f32 0.0, %v492
    %v494 = vpop.f32.mrb[0].mxu0
    %v495 = vadd.f32 0.0, %v494
    %496 = vmatprep.mubr.f32.mxu0 0.0
    %497 = vmatmul.mubr.f32.gmra.mrb[0].mxu0 %v379
    %v498 = vpop.f32.mrb[0].mxu0
    %v499 = vadd.f32 0.0, %v498
    %v500 = vpop.f32.mrb[0].mxu0
    %v501 = vadd.f32 0.0, %v500
    %502 = vmatprep.mubr.f32.mxu0 0.0
    %503 = vmatmul.mubr.f32.gmra.mrb[0].mxu0 %v381
    %v504 = vpop.f32.mrb[0].mxu0
    %v505 = vadd.f32 0.0, %v504
    %v506 = vpop.f32.mrb[0].mxu0
    %v507 = vadd.f32 0.0, %v506
    %508 = vmatprep.mubr.f32.mxu0 0.0
    %509 = vmatmul.mubr.f32.gmra.mrb[0].mxu0 %v383
    %v510 = vpop.f32.mrb[0].mxu0
    %v511 = vadd.f32 0.0, %v510
    %v512 = vpop.f32.mrb[0].mxu0
    %v513 = vadd.f32 0.0, %v512
    %514 = vmatprep.mubr.f32.mxu0 0.0
    %515 = vmatmul.mubr.f32.gmra.mrb[0].mxu0 %v385
    %v516 = vpop.f32.mrb[0].mxu0
    %v517 = vadd.f32 0.0, %v516
    %v518 = vpop.f32.mrb[0].mxu0
    %v519 = vadd.f32 0.0, %v518
    %520 = vmatprep.mubr.f32.mxu0 0.0
    %521 = vmatmul.mubr.f32.gmra.mrb[0].mxu0 %v387
    %v522 = vpop.f32.mrb[0].mxu0
    %v523 = vadd.f32 0.0, %v522
    %v524 = vpop.f32.mrb[0].mxu0
    %v525 = vadd.f32 0.0, %v524
    %526 = vmatprep.mubr.f32.mxu0 0.0
    %527 = vmatmul.mubr.f32.gmra.mrb[0].mxu0 %v389
    %v528 = vpop.f32.mrb[0].mxu0
    %v529 = vadd.f32 0.0, %v528
    %v530 = vpop.f32.mrb[0].mxu0
    %v531 = vadd.f32 0.0, %v530
    %532 = vmatprep.mubr.f32.mxu0 0.0
    %533 = vmatmul.mubr.f32.gmra.mrb[0].mxu0 %v391
    %v534 = vpop.f32.mrb[0].mxu0
    %v535 = vadd.f32 0.0, %v534
    %v536 = vpop.f32.mrb[0].mxu0
    %v537 = vadd.f32 0.0, %v536
    %538 = vmatprep.mubr.f32.mxu0 0.0
    %539 = vmatmul.mubr.f32.gmra.mrb[0].mxu0 %v393
    %v540 = vpop.f32.mrb[0].mxu0
    %v541 = vadd.f32 0.0, %v540
    %v542 = vpop.f32.mrb[0].mxu0
    %v543 = vadd.f32 0.0, %v542
    %544 = vmatprep.mubr.f32.mxu0 0.0
    %545 = vmatmul.mubr.f32.gmra.mrb[0].mxu0 %v395
    %v546 = vpop.f32.mrb[0].mxu0
    %v547 = vadd.f32 0.0, %v546
    %v548 = vpop.f32.mrb[0].mxu0
    %v549 = vadd.f32 0.0, %v548
    %550 = vmatprep.mubr.f32.mxu0 0.0
    %551 = vmatmul.mubr.f32.gmra.mrb[0].mxu0 %v397
    %v552 = vpop.f32.mrb[0].mxu0
    %v553 = vadd.f32 0.0, %v552
    %v554 = vpop.f32.mrb[0].mxu0
    %v555 = vadd.f32 0.0, %v554
    %556 = vmatprep.mubr.f32.mxu0 0.0
    %557 = vmatmul.mubr.f32.gmra.mrb[0].mxu0 %v400
    %v558 = vpop.f32.mrb[0].mxu0
    %v559 = vadd.f32 0.0, %v558
    %v560 = vpop.f32.mrb[0].mxu0
    %v561 = vadd.f32 0.0, %v560
    %562 = vdwg.mxu0
    %v563 = vsel %vm368, %v277, 0
    %v565 = vsel %vm368, %v278, 0
    %v567 = vsel %vm368, %v279, 0
    %v569 = vsel %vm368, %v280, 0
    %v571 = vsel %vm368, %v281, 0
    %v573 = vsel %vm368, %v282, 0
    %v575 = vsel %vm368, %v283, 0
    %v577 = vsel %vm368, %v284, 0
    %v579 = vsel %vm368, %v285, 0
    %v581 = vsel %vm368, %v286, 0
    %v583 = vsel %vm368, %v287, 0
    %v585 = vsel %vm368, %v288, 0
    %v587 = vsel %vm368, %v289, 0
    %v589 = vsel %vm368, %v290, 0
    %v591 = vsel %vm368, %v291, 0
    %v593 = vsel %vm368, %v292, 0
    %595 = vmatprep.subr.mxu0 %v294
    %596 = vmatpush1.msra.mxu0 %v293
    %597 = vmatprep.subr.mxu0 %v296
    %598 = vmatpush1.msra.mxu0 %v295
    %599 = vmatprep.subr.mxu0 %v298
    %600 = vmatpush1.msra.mxu0 %v297
    %601 = vmatprep.subr.mxu0 %v300
    %602 = vmatpush1.msra.mxu0 %v299
    %603 = vmatprep.subr.mxu0 %v302
    %604 = vmatpush1.msra.mxu0 %v301
    %605 = vmatprep.subr.mxu0 %v304
    %606 = vmatpush1.msra.mxu0 %v303
    %607 = vmatprep.subr.mxu0 0.0
    %608 = vmatpush1.msra.mxu0 0.0
    %609 = vmatprep.subr.mxu0 0.0
    %610 = vmatpush1.msra.mxu0 0.0
    %611 = vmatprep.subr.mxu0 0.0
    %612 = vmatpush1.msra.mxu0 0.0
    %613 = vmatprep.subr.mxu0 0.0
    %614 = vmatpush1.msra.mxu0 0.0
    %615 = vmatprep.subr.mxu0 0.0
    %616 = vmatpush1.msra.mxu0 0.0
    %617 = vmatprep.subr.mxu0 0.0
    %618 = vmatpush1.msra.mxu0 0.0
    %619 = vmatprep.subr.mxu0 0.0
    %620 = vmatpush1.msra.mxu0 0.0
    %621 = vmatprep.subr.mxu0 0.0
    %622 = vmatpush1.msra.mxu0 0.0
    %623 = vmatprep.subr.mxu0 0.0
    %624 = vmatpush1.msra.mxu0 0.0
    %625 = vmatprep.subr.mxu0 0.0
    %626 = vmatpush1.msra.mxu0 0.0
    %627 = vmatprep.subr.mxu0 0.0
    %628 = vmatpush1.msra.mxu0 0.0
    %629 = vmatprep.subr.mxu0 0.0
    %630 = vmatpush1.msra.mxu0 0.0
    %631 = vmatprep.subr.mxu0 0.0
    %632 = vmatpush1.msra.mxu0 0.0
    %633 = vmatprep.subr.mxu0 0.0
    %634 = vmatpush1.msra.mxu0 0.0
    %635 = vmatprep.subr.mxu0 0.0
    %636 = vmatpush1.msra.mxu0 0.0
    %637 = vmatprep.subr.mxu0 0.0
    %638 = vmatpush1.msra.mxu0 0.0
    %639 = vmatprep.subr.mxu0 0.0
    %640 = vmatpush1.msra.mxu0 0.0
    %641 = vmatprep.subr.mxu0 0.0
    %642 = vmatpush1.msra.mxu0 0.0
    %643 = vmatprep.subr.mxu0 0.0
    %644 = vmatpush1.msra.mxu0 0.0
    %645 = vmatprep.subr.mxu0 0.0
    %646 = vmatpush1.msra.mxu0 0.0
    %647 = vmatprep.subr.mxu0 0.0
    %648 = vmatpush1.msra.mxu0 0.0
    %649 = vmatprep.subr.mxu0 0.0
    %650 = vmatpush1.msra.mxu0 0.0
    %651 = vmatprep.subr.mxu0 0.0
    %652 = vmatpush1.msra.mxu0 0.0
    %653 = vmatprep.subr.mxu0 0.0
    %654 = vmatpush1.msra.mxu0 0.0
    %655 = vmatprep.subr.mxu0 0.0
    %656 = vmatpush1.msra.mxu0 0.0
    %657 = vmatprep.subr.mxu0 0.0
    %658 = vmatpush1.msra.mxu0 0.0
    %659 = vmatprep.mubr.f32.mxu0 0.0
    %660 = vmatmul.mubr.f32.gmra.mrb[0].mxu0 %v563
    %v661 = vpop.f32.mrb[0].mxu0
    %v662 = vadd.f32 %v469, %v661
    %v663 = vpop.f32.mrb[0].mxu0
    %v664 = vadd.f32 %v471, %v663
    %665 = vmatprep.mubr.f32.mxu0 0.0
    %666 = vmatmul.mubr.f32.gmra.mrb[0].mxu0 %v565
    %v667 = vpop.f32.mrb[0].mxu0
    %v668 = vadd.f32 %v475, %v667
    %v669 = vpop.f32.mrb[0].mxu0
    %v670 = vadd.f32 %v477, %v669
    %671 = vmatprep.mubr.f32.mxu0 0.0
    %672 = vmatmul.mubr.f32.gmra.mrb[0].mxu0 %v567
    %v673 = vpop.f32.mrb[0].mxu0
    %v674 = vadd.f32 %v481, %v673
    %v675 = vpop.f32.mrb[0].mxu0
    %v676 = vadd.f32 %v483, %v675
    %677 = vmatprep.mubr.f32.mxu0 0.0
    %678 = vmatmul.mubr.f32.gmra.mrb[0].mxu0 %v569
    %v679 = vpop.f32.mrb[0].mxu0
    %v680 = vadd.f32 %v487, %v679
    %v681 = vpop.f32.mrb[0].mxu0
    %v682 = vadd.f32 %v489, %v681
    %683 = vmatprep.mubr.f32.mxu0 0.0
    %684 = vmatmul.mubr.f32.gmra.mrb[0].mxu0 %v571
    %v685 = vpop.f32.mrb[0].mxu0
    %v686 = vadd.f32 %v493, %v685
    %v687 = vpop.f32.mrb[0].mxu0
    %v688 = vadd.f32 %v495, %v687
    %689 = vmatprep.mubr.f32.mxu0 0.0
    %690 = vmatmul.mubr.f32.gmra.mrb[0].mxu0 %v573
    %v691 = vpop.f32.mrb[0].mxu0
    %v692 = vadd.f32 %v499, %v691
    %v693 = vpop.f32.mrb[0].mxu0
    %v694 = vadd.f32 %v501, %v693
    %695 = vmatprep.mubr.f32.mxu0 0.0
    %696 = vmatmul.mubr.f32.gmra.mrb[0].mxu0 %v575
    %v697 = vpop.f32.mrb[0].mxu0
    %v698 = vadd.f32 %v505, %v697
    %v699 = vpop.f32.mrb[0].mxu0
    %v700 = vadd.f32 %v507, %v699
    %701 = vmatprep.mubr.f32.mxu0 0.0
    %702 = vmatmul.mubr.f32.gmra.mrb[0].mxu0 %v577
    %v703 = vpop.f32.mrb[0].mxu0
    %v704 = vadd.f32 %v511, %v703
    %v705 = vpop.f32.mrb[0].mxu0
    %v706 = vadd.f32 %v513, %v705
    %707 = vmatprep.mubr.f32.mxu0 0.0
    %708 = vmatmul.mubr.f32.gmra.mrb[0].mxu0 %v579
    %v709 = vpop.f32.mrb[0].mxu0
    %v710 = vadd.f32 %v517, %v709
    %v711 = vpop.f32.mrb[0].mxu0
    %v712 = vadd.f32 %v519, %v711
    %713 = vmatprep.mubr.f32.mxu0 0.0
    %714 = vmatmul.mubr.f32.gmra.mrb[0].mxu0 %v581
    %v715 = vpop.f32.mrb[0].mxu0
    %v716 = vadd.f32 %v523, %v715
    %v717 = vpop.f32.mrb[0].mxu0
    %v718 = vadd.f32 %v525, %v717
    %719 = vmatprep.mubr.f32.mxu0 0.0
    %720 = vmatmul.mubr.f32.gmra.mrb[0].mxu0 %v583
    %v721 = vpop.f32.mrb[0].mxu0
    %v722 = vadd.f32 %v529, %v721
    %v723 = vpop.f32.mrb[0].mxu0
    %v724 = vadd.f32 %v531, %v723
    %725 = vmatprep.mubr.f32.mxu0 0.0
    %726 = vmatmul.mubr.f32.gmra.mrb[0].mxu0 %v585
    %v727 = vpop.f32.mrb[0].mxu0
    %v728 = vadd.f32 %v535, %v727
    %v729 = vpop.f32.mrb[0].mxu0
    %v730 = vadd.f32 %v537, %v729
    %731 = vmatprep.mubr.f32.mxu0 0.0
    %732 = vmatmul.mubr.f32.gmra.mrb[0].mxu0 %v587
    %v733 = vpop.f32.mrb[0].mxu0
    %v734 = vadd.f32 %v541, %v733
    %v735 = vpop.f32.mrb[0].mxu0
    %v736 = vadd.f32 %v543, %v735
    %737 = vmatprep.mubr.f32.mxu0 0.0
    %738 = vmatmul.mubr.f32.gmra.mrb[0].mxu0 %v589
    %v739 = vpop.f32.mrb[0].mxu0
    %v740 = vadd.f32 %v547, %v739
    %v741 = vpop.f32.mrb[0].mxu0
    %v742 = vadd.f32 %v549, %v741
    %743 = vmatprep.mubr.f32.mxu0 0.0
    %744 = vmatmul.mubr.f32.gmra.mrb[0].mxu0 %v591
    %v745 = vpop.f32.mrb[0].mxu0
    %v746 = vadd.f32 %v553, %v745
    %v747 = vpop.f32.mrb[0].mxu0
    %v748 = vadd.f32 %v555, %v747
    %749 = vmatprep.mubr.f32.mxu0 0.0
    %750 = vmatmul.mubr.f32.gmra.mrb[0].mxu0 %v593
    %v751 = vpop.f32.mrb[0].mxu0
    %v752 = vadd.f32 %v559, %v751
    %v753 = vpop.f32.mrb[0].mxu0
    %v754 = vadd.f32 %v561, %v753
    %755 = vdwg.mxu0
    %vm756 = vcmask 1045504
    %v757 = vrot.slane %v277, 2
    %v758 = vrot.slane %v278, 2
    %v759 = vsel %vm756, %v757, %v758
    %v760 = vrot.slane %v279, 2
    %v761 = vsel %vm756, %v758, %v760
    %v762 = vrot.slane %v280, 2
    %v763 = vsel %vm756, %v760, %v762
    %v764 = vrot.slane %v281, 2
    %v765 = vsel %vm756, %v762, %v764
    %v766 = vrot.slane %v282, 2
    %v767 = vsel %vm756, %v764, %v766
    %v768 = vrot.slane %v283, 2
    %v769 = vsel %vm756, %v766, %v768
    %v770 = vrot.slane %v284, 2
    %v771 = vsel %vm756, %v768, %v770
    %v772 = vrot.slane %v285, 2
    %v773 = vsel %vm756, %v770, %v772
    %v774 = vrot.slane %v286, 2
    %v775 = vsel %vm756, %v772, %v774
    %v776 = vrot.slane %v287, 2
    %v777 = vsel %vm756, %v774, %v776
    %v778 = vrot.slane %v288, 2
    %v779 = vsel %vm756, %v776, %v778
    %v780 = vrot.slane %v289, 2
    %v781 = vsel %vm756, %v778, %v780
    %v782 = vrot.slane %v290, 2
    %v783 = vsel %vm756, %v780, %v782
    %v784 = vrot.slane %v291, 2
    %v785 = vsel %vm756, %v782, %v784
    %v786 = vrot.slane %v292, 2
    %v787 = vsel %vm756, %v784, %v786
    %v790 = vsel %vm756, %v786, %v757
    %v791 = vld [vmem:[#allocation8] sm:$0xff]
    %v792 = vld [vmem:[#allocation8 + $0x8] sm:$0xff]
    %v793 = vld [vmem:[#allocation8 + $0x10] sm:$0xff]
    %v794 = vld [vmem:[#allocation8 + $0x18] sm:$0xff]
    %v795 = vld [vmem:[#allocation8 + $0x20] sm:$0xff]
    %v796 = vld [vmem:[#allocation8 + $0x28] sm:$0xff]
    %v797 = vld [vmem:[#allocation8 + $0x30] sm:$0xff]
    %v798 = vld [vmem:[#allocation8 + $0x38] sm:$0xff]
    %v799 = vld [vmem:[#allocation8 + $0x40] sm:$0xff]
    %v800 = vld [vmem:[#allocation8 + $0x48] sm:$0xff]
    %v801 = vld [vmem:[#allocation8 + $0x50] sm:$0xff]
    %v802 = vld [vmem:[#allocation8 + $0x58] sm:$0xff]
    %v803 = vsel %vm368, %v759, 0
    %v805 = vsel %vm368, %v761, 0
    %v807 = vsel %vm368, %v763, 0
    %v809 = vsel %vm368, %v765, 0
    %v811 = vsel %vm368, %v767, 0
    %v813 = vsel %vm368, %v769, 0
    %v815 = vsel %vm368, %v771, 0
    %v817 = vsel %vm368, %v773, 0
    %v819 = vsel %vm368, %v775, 0
    %v821 = vsel %vm368, %v777, 0
    %v823 = vsel %vm368, %v779, 0
    %v825 = vsel %vm368, %v781, 0
    %v827 = vsel %vm368, %v783, 0
    %v829 = vsel %vm368, %v785, 0
    %v831 = vsel %vm368, %v787, 0
    %v834 = vsel %vm368, %v790, 0
    %836 = vmatprep.subr.mxu0 %v792
    %837 = vmatpush1.msra.mxu0 %v791
    %838 = vmatprep.subr.mxu0 %v794
    %839 = vmatpush1.msra.mxu0 %v793
    %840 = vmatprep.subr.mxu0 %v796
    %841 = vmatpush1.msra.mxu0 %v795
    %842 = vmatprep.subr.mxu0 %v798
    %843 = vmatpush1.msra.mxu0 %v797
    %844 = vmatprep.subr.mxu0 %v800
    %845 = vmatpush1.msra.mxu0 %v799
    %846 = vmatprep.subr.mxu0 %v802
    %847 = vmatpush1.msra.mxu0 %v801
    %848 = vmatprep.subr.mxu0 0.0
    %849 = vmatpush1.msra.mxu0 0.0
    %850 = vmatprep.subr.mxu0 0.0
    %851 = vmatpush1.msra.mxu0 0.0
    %852 = vmatprep.subr.mxu0 0.0
    %853 = vmatpush1.msra.mxu0 0.0
    %854 = vmatprep.subr.mxu0 0.0
    %855 = vmatpush1.msra.mxu0 0.0
    %856 = vmatprep.subr.mxu0 0.0
    %857 = vmatpush1.msra.mxu0 0.0
    %858 = vmatprep.subr.mxu0 0.0
    %859 = vmatpush1.msra.mxu0 0.0
    %860 = vmatprep.subr.mxu0 0.0
    %861 = vmatpush1.msra.mxu0 0.0
    %862 = vmatprep.subr.mxu0 0.0
    %863 = vmatpush1.msra.mxu0 0.0
    %864 = vmatprep.subr.mxu0 0.0
    %865 = vmatpush1.msra.mxu0 0.0
    %866 = vmatprep.subr.mxu0 0.0
    %867 = vmatpush1.msra.mxu0 0.0
    %868 = vmatprep.subr.mxu0 0.0
    %869 = vmatpush1.msra.mxu0 0.0
    %870 = vmatprep.subr.mxu0 0.0
    %871 = vmatpush1.msra.mxu0 0.0
    %872 = vmatprep.subr.mxu0 0.0
    %873 = vmatpush1.msra.mxu0 0.0
    %874 = vmatprep.subr.mxu0 0.0
    %875 = vmatpush1.msra.mxu0 0.0
    %876 = vmatprep.subr.mxu0 0.0
    %877 = vmatpush1.msra.mxu0 0.0
    %878 = vmatprep.subr.mxu0 0.0
    %879 = vmatpush1.msra.mxu0 0.0
    %880 = vmatprep.subr.mxu0 0.0
    %881 = vmatpush1.msra.mxu0 0.0
    %882 = vmatprep.subr.mxu0 0.0
    %883 = vmatpush1.msra.mxu0 0.0
    %884 = vmatprep.subr.mxu0 0.0
    %885 = vmatpush1.msra.mxu0 0.0
    %886 = vmatprep.subr.mxu0 0.0
    %887 = vmatpush1.msra.mxu0 0.0
    %888 = vmatprep.subr.mxu0 0.0
    %889 = vmatpush1.msra.mxu0 0.0
    %890 = vmatprep.subr.mxu0 0.0
    %891 = vmatpush1.msra.mxu0 0.0
    %892 = vmatprep.subr.mxu0 0.0
    %893 = vmatpush1.msra.mxu0 0.0
    %894 = vmatprep.subr.mxu0 0.0
    %895 = vmatpush1.msra.mxu0 0.0
    %896 = vmatprep.subr.mxu0 0.0
    %897 = vmatpush1.msra.mxu0 0.0
    %898 = vmatprep.subr.mxu0 0.0
    %899 = vmatpush1.msra.mxu0 0.0
    %900 = vmatprep.mubr.f32.mxu0 0.0
    %901 = vmatmul.mubr.f32.gmra.mrb[0].mxu0 %v803
    %v902 = vpop.f32.mrb[0].mxu0
    %v903 = vadd.f32 0.0, %v902
    %v904 = vpop.f32.mrb[0].mxu0
    %v905 = vadd.f32 0.0, %v904
    %906 = vmatprep.mubr.f32.mxu0 0.0
    %907 = vmatmul.mubr.f32.gmra.mrb[0].mxu0 %v805
    %v908 = vpop.f32.mrb[0].mxu0
    %v909 = vadd.f32 0.0, %v908
    %v910 = vpop.f32.mrb[0].mxu0
    %v911 = vadd.f32 0.0, %v910
    %912 = vmatprep.mubr.f32.mxu0 0.0
    %913 = vmatmul.mubr.f32.gmra.mrb[0].mxu0 %v807
    %v914 = vpop.f32.mrb[0].mxu0
    %v915 = vadd.f32 0.0, %v914
    %v916 = vpop.f32.mrb[0].mxu0
    %v917 = vadd.f32 0.0, %v916
    %918 = vmatprep.mubr.f32.mxu0 0.0
    %919 = vmatmul.mubr.f32.gmra.mrb[0].mxu0 %v809
    %v920 = vpop.f32.mrb[0].mxu0
    %v921 = vadd.f32 0.0, %v920
    %v922 = vpop.f32.mrb[0].mxu0
    %v923 = vadd.f32 0.0, %v922
    %924 = vmatprep.mubr.f32.mxu0 0.0
    %925 = vmatmul.mubr.f32.gmra.mrb[0].mxu0 %v811
    %v926 = vpop.f32.mrb[0].mxu0
    %v927 = vadd.f32 0.0, %v926
    %v928 = vpop.f32.mrb[0].mxu0
    %v929 = vadd.f32 0.0, %v928
    %930 = vmatprep.mubr.f32.mxu0 0.0
    %931 = vmatmul.mubr.f32.gmra.mrb[0].mxu0 %v813
    %v932 = vpop.f32.mrb[0].mxu0
    %v933 = vadd.f32 0.0, %v932
    %v934 = vpop.f32.mrb[0].mxu0
    %v935 = vadd.f32 0.0, %v934
    %936 = vmatprep.mubr.f32.mxu0 0.0
    %937 = vmatmul.mubr.f32.gmra.mrb[0].mxu0 %v815
    %v938 = vpop.f32.mrb[0].mxu0
    %v939 = vadd.f32 0.0, %v938
    %v940 = vpop.f32.mrb[0].mxu0
    %v941 = vadd.f32 0.0, %v940
    %942 = vmatprep.mubr.f32.mxu0 0.0
    %943 = vmatmul.mubr.f32.gmra.mrb[0].mxu0 %v817
    %v944 = vpop.f32.mrb[0].mxu0
    %v945 = vadd.f32 0.0, %v944
    %v946 = vpop.f32.mrb[0].mxu0
    %v947 = vadd.f32 0.0, %v946
    %948 = vmatprep.mubr.f32.mxu0 0.0
    %949 = vmatmul.mubr.f32.gmra.mrb[0].mxu0 %v819
    %v950 = vpop.f32.mrb[0].mxu0
    %v951 = vadd.f32 0.0, %v950
    %v952 = vpop.f32.mrb[0].mxu0
    %v953 = vadd.f32 0.0, %v952
    %954 = vmatprep.mubr.f32.mxu0 0.0
    %955 = vmatmul.mubr.f32.gmra.mrb[0].mxu0 %v821
    %v956 = vpop.f32.mrb[0].mxu0
    %v957 = vadd.f32 0.0, %v956
    %v958 = vpop.f32.mrb[0].mxu0
    %v959 = vadd.f32 0.0, %v958
    %960 = vmatprep.mubr.f32.mxu0 0.0
    %961 = vmatmul.mubr.f32.gmra.mrb[0].mxu0 %v823
    %v962 = vpop.f32.mrb[0].mxu0
    %v963 = vadd.f32 0.0, %v962
    %v964 = vpop.f32.mrb[0].mxu0
    %v965 = vadd.f32 0.0, %v964
    %966 = vmatprep.mubr.f32.mxu0 0.0
    %967 = vmatmul.mubr.f32.gmra.mrb[0].mxu0 %v825
    %v968 = vpop.f32.mrb[0].mxu0
    %v969 = vadd.f32 0.0, %v968
    %v970 = vpop.f32.mrb[0].mxu0
    %v971 = vadd.f32 0.0, %v970
    %972 = vmatprep.mubr.f32.mxu0 0.0
    %973 = vmatmul.mubr.f32.gmra.mrb[0].mxu0 %v827
    %v974 = vpop.f32.mrb[0].mxu0
    %v975 = vadd.f32 0.0, %v974
    %v976 = vpop.f32.mrb[0].mxu0
    %v977 = vadd.f32 0.0, %v976
    %978 = vmatprep.mubr.f32.mxu0 0.0
    %979 = vmatmul.mubr.f32.gmra.mrb[0].mxu0 %v829
    %v980 = vpop.f32.mrb[0].mxu0
    %v981 = vadd.f32 0.0, %v980
    %v982 = vpop.f32.mrb[0].mxu0
    %v983 = vadd.f32 0.0, %v982
    %984 = vmatprep.mubr.f32.mxu0 0.0
    %985 = vmatmul.mubr.f32.gmra.mrb[0].mxu0 %v831
    %v986 = vpop.f32.mrb[0].mxu0
    %v987 = vadd.f32 0.0, %v986
    %v988 = vpop.f32.mrb[0].mxu0
    %v989 = vadd.f32 0.0, %v988
    %990 = vmatprep.mubr.f32.mxu0 0.0
    %991 = vmatmul.mubr.f32.gmra.mrb[0].mxu0 %v834
    %v992 = vpop.f32.mrb[0].mxu0
    %v993 = vadd.f32 0.0, %v992
    %v994 = vpop.f32.mrb[0].mxu0
    %v995 = vadd.f32 0.0, %v994
    %996 = vdwg.mxu0
    %v997 = vadd.f32 %v662, %v903
    %v998 = vadd.f32 %v664, %v905
    %v999 = vadd.f32 %v668, %v909
    %v1000 = vadd.f32 %v670, %v911
    %v1001 = vadd.f32 %v674, %v915
    %v1002 = vadd.f32 %v676, %v917
    %v1003 = vadd.f32 %v680, %v921
    %v1004 = vadd.f32 %v682, %v923
    %v1005 = vadd.f32 %v686, %v927
    %v1006 = vadd.f32 %v688, %v929
    %v1007 = vadd.f32 %v692, %v933
    %v1008 = vadd.f32 %v694, %v935
    %v1009 = vadd.f32 %v698, %v939
    %v1010 = vadd.f32 %v700, %v941
    %v1011 = vadd.f32 %v704, %v945
    %v1012 = vadd.f32 %v706, %v947
    %v1013 = vadd.f32 %v710, %v951
    %v1014 = vadd.f32 %v712, %v953
    %v1015 = vadd.f32 %v716, %v957
    %v1016 = vadd.f32 %v718, %v959
    %v1017 = vadd.f32 %v722, %v963
    %v1018 = vadd.f32 %v724, %v965
    %v1019 = vadd.f32 %v728, %v969
    %v1020 = vadd.f32 %v730, %v971
    %v1021 = vadd.f32 %v734, %v975
    %v1022 = vadd.f32 %v736, %v977
    %v1023 = vadd.f32 %v740, %v981
    %v1024 = vadd.f32 %v742, %v983
    %v1025 = vadd.f32 %v746, %v987
    %v1026 = vadd.f32 %v748, %v989
    %v1027 = vadd.f32 %v752, %v993
    %v1028 = vadd.f32 %v754, %v995
    %v1029 = vld [vmem:[#allocation10] sm:$0x3]
    %v1031 = vlaneseq
    %v1032 = vshrl.u32 %v1031, 7
    %v1033 = vsub.s32 0, %v1032
    %v1034 = vrot.slane %v1029, %v1033
    %v1035 = vlaneseq
    %v1036 = vshrl.u32 %v1035, 7
    %v1037 = vsub.s32 1, %v1036
    %v1038 = vrot.slane %v1029, %v1037
    %v1041 = vadd.f32 %v997, %v1034
    %v1042 = vadd.f32 %v998, %v1038
    %v1043 = vadd.f32 %v999, %v1034
    %v1044 = vadd.f32 %v1000, %v1038
    %v1045 = vadd.f32 %v1001, %v1034
    %v1046 = vadd.f32 %v1002, %v1038
    %v1047 = vadd.f32 %v1003, %v1034
    %v1048 = vadd.f32 %v1004, %v1038
    %v1049 = vadd.f32 %v1005, %v1034
    %v1050 = vadd.f32 %v1006, %v1038
    %v1051 = vadd.f32 %v1007, %v1034
    %v1052 = vadd.f32 %v1008, %v1038
    %v1053 = vadd.f32 %v1009, %v1034
    %v1054 = vadd.f32 %v1010, %v1038
    %v1055 = vadd.f32 %v1011, %v1034
    %v1056 = vadd.f32 %v1012, %v1038
    %v1057 = vadd.f32 %v1013, %v1034
    %v1058 = vadd.f32 %v1014, %v1038
    %v1059 = vadd.f32 %v1015, %v1034
    %v1060 = vadd.f32 %v1016, %v1038
    %v1061 = vadd.f32 %v1017, %v1034
    %v1062 = vadd.f32 %v1018, %v1038
    %v1063 = vadd.f32 %v1019, %v1034
    %v1064 = vadd.f32 %v1020, %v1038
    %v1065 = vadd.f32 %v1021, %v1034
    %v1066 = vadd.f32 %v1022, %v1038
    %v1067 = vadd.f32 %v1023, %v1034
    %v1068 = vadd.f32 %v1024, %v1038
    %v1069 = vadd.f32 %v1025, %v1034
    %v1070 = vadd.f32 %v1026, %v1038
    %v1071 = vadd.f32 %v1027, %v1034
    %v1072 = vadd.f32 %v1028, %v1038
    %v1073 = vmul.f32 %v1041, 0.01
    %v1074 = vmul.f32 %v1042, 0.01
    %v1075 = vmul.f32 %v1043, 0.01
    %v1076 = vmul.f32 %v1044, 0.01
    %v1077 = vmul.f32 %v1045, 0.01
    %v1078 = vmul.f32 %v1046, 0.01
    %v1079 = vmul.f32 %v1047, 0.01
    %v1080 = vmul.f32 %v1048, 0.01
    %v1081 = vmul.f32 %v1049, 0.01
    %v1082 = vmul.f32 %v1050, 0.01
    %v1083 = vmul.f32 %v1051, 0.01
    %v1084 = vmul.f32 %v1052, 0.01
    %v1085 = vmul.f32 %v1053, 0.01
    %v1086 = vmul.f32 %v1054, 0.01
    %v1087 = vmul.f32 %v1055, 0.01
    %v1088 = vmul.f32 %v1056, 0.01
    %v1089 = vmul.f32 %v1057, 0.01
    %v1090 = vmul.f32 %v1058, 0.01
    %v1091 = vmul.f32 %v1059, 0.01
    %v1092 = vmul.f32 %v1060, 0.01
    %v1093 = vmul.f32 %v1061, 0.01
    %v1094 = vmul.f32 %v1062, 0.01
    %v1095 = vmul.f32 %v1063, 0.01
    %v1096 = vmul.f32 %v1064, 0.01
    %v1097 = vmul.f32 %v1065, 0.01
    %v1098 = vmul.f32 %v1066, 0.01
    %v1099 = vmul.f32 %v1067, 0.01
    %v1100 = vmul.f32 %v1068, 0.01
    %v1101 = vmul.f32 %v1069, 0.01
    %v1102 = vmul.f32 %v1070, 0.01
    %v1103 = vmul.f32 %v1071, 0.01
    %v1104 = vmul.f32 %v1072, 0.01
    %v1105 = vmax.f32 %v1041, %v1073
    %v1106 = vmax.f32 %v1042, %v1074
    %v1107 = vmax.f32 %v1043, %v1075
    %v1108 = vmax.f32 %v1044, %v1076
    %v1109 = vmax.f32 %v1045, %v1077
    %v1110 = vmax.f32 %v1046, %v1078
    %v1111 = vmax.f32 %v1047, %v1079
    %v1112 = vmax.f32 %v1048, %v1080
    %v1113 = vmax.f32 %v1049, %v1081
    %v1114 = vmax.f32 %v1050, %v1082
    %v1115 = vmax.f32 %v1051, %v1083
    %v1116 = vmax.f32 %v1052, %v1084
    %v1117 = vmax.f32 %v1053, %v1085
    %v1118 = vmax.f32 %v1054, %v1086
    %v1119 = vmax.f32 %v1055, %v1087
    %v1120 = vmax.f32 %v1056, %v1088
    %v1121 = vmax.f32 %v1057, %v1089
    %v1122 = vmax.f32 %v1058, %v1090
    %v1123 = vmax.f32 %v1059, %v1091
    %v1124 = vmax.f32 %v1060, %v1092
    %v1125 = vmax.f32 %v1061, %v1093
    %v1126 = vmax.f32 %v1062, %v1094
    %v1127 = vmax.f32 %v1063, %v1095
    %v1128 = vmax.f32 %v1064, %v1096
    %v1129 = vmax.f32 %v1065, %v1097
    %v1130 = vmax.f32 %v1066, %v1098
    %v1131 = vmax.f32 %v1067, %v1099
    %v1132 = vmax.f32 %v1068, %v1100
    %v1133 = vmax.f32 %v1069, %v1101
    %v1134 = vmax.f32 %v1070, %v1102
    %v1135 = vmax.f32 %v1071, %v1103
    %v1136 = vmax.f32 %v1072, %v1104
    %1169 = vrot.lane.b32.xlu0 %v1105, 118
    %v1170 = vpop.permute.xlu0 %1169
    %1171 = vrot.lane.b32.xlu0 %v1106, 118
    %v1172 = vpop.permute.xlu0 %1171
    %1173 = vrot.lane.b32.xlu0 %v1107, 118
    %v1174 = vpop.permute.xlu0 %1173
    %1175 = vrot.lane.b32.xlu0 %v1108, 118
    %v1176 = vpop.permute.xlu0 %1175
    %1177 = vrot.lane.b32.xlu0 %v1109, 118
    %v1178 = vpop.permute.xlu0 %1177
    %1179 = vrot.lane.b32.xlu0 %v1110, 118
    %v1180 = vpop.permute.xlu0 %1179
    %1181 = vrot.lane.b32.xlu0 %v1111, 118
    %v1182 = vpop.permute.xlu0 %1181
    %1183 = vrot.lane.b32.xlu0 %v1112, 118
    %v1184 = vpop.permute.xlu0 %1183
    %1185 = vrot.lane.b32.xlu0 %v1113, 118
    %v1186 = vpop.permute.xlu0 %1185
    %1187 = vrot.lane.b32.xlu0 %v1114, 118
    %v1188 = vpop.permute.xlu0 %1187
    %1189 = vrot.lane.b32.xlu0 %v1115, 118
    %v1190 = vpop.permute.xlu0 %1189
    %1191 = vrot.lane.b32.xlu0 %v1116, 118
    %v1192 = vpop.permute.xlu0 %1191
    %1193 = vrot.lane.b32.xlu0 %v1117, 118
    %v1194 = vpop.permute.xlu0 %1193
    %1195 = vrot.lane.b32.xlu0 %v1118, 118
    %v1196 = vpop.permute.xlu0 %1195
    %1197 = vrot.lane.b32.xlu0 %v1119, 118
    %v1198 = vpop.permute.xlu0 %1197
    %1199 = vrot.lane.b32.xlu0 %v1120, 118
    %v1200 = vpop.permute.xlu0 %1199
    %1201 = vrot.lane.b32.xlu0 %v1121, 118
    %v1202 = vpop.permute.xlu0 %1201
    %1203 = vrot.lane.b32.xlu0 %v1122, 118
    %v1204 = vpop.permute.xlu0 %1203
    %1205 = vrot.lane.b32.xlu0 %v1123, 118
    %v1206 = vpop.permute.xlu0 %1205
    %1207 = vrot.lane.b32.xlu0 %v1124, 118
    %v1208 = vpop.permute.xlu0 %1207
    %1209 = vrot.lane.b32.xlu0 %v1125, 118
    %v1210 = vpop.permute.xlu0 %1209
    %1211 = vrot.lane.b32.xlu0 %v1126, 118
    %v1212 = vpop.permute.xlu0 %1211
    %1213 = vrot.lane.b32.xlu0 %v1127, 118
    %v1214 = vpop.permute.xlu0 %1213
    %1215 = vrot.lane.b32.xlu0 %v1128, 118
    %v1216 = vpop.permute.xlu0 %1215
    %1217 = vrot.lane.b32.xlu0 %v1129, 118
    %v1218 = vpop.permute.xlu0 %1217
    %1219 = vrot.lane.b32.xlu0 %v1130, 118
    %v1220 = vpop.permute.xlu0 %1219
    %1221 = vrot.lane.b32.xlu0 %v1131, 118
    %v1222 = vpop.permute.xlu0 %1221
    %1223 = vrot.lane.b32.xlu0 %v1132, 118
    %v1224 = vpop.permute.xlu0 %1223
    %1225 = vrot.lane.b32.xlu0 %v1133, 118
    %v1226 = vpop.permute.xlu0 %1225
    %1227 = vrot.lane.b32.xlu0 %v1134, 118
    %v1228 = vpop.permute.xlu0 %1227
    %1229 = vrot.lane.b32.xlu0 %v1135, 118
    %v1230 = vpop.permute.xlu0 %1229
    %1231 = vrot.lane.b32.xlu0 %v1136, 118
    %v1232 = vpop.permute.xlu0 %1231
    %vm1233 = vcmask 965632
    %v1234 = vsel %vm1233, %v1170, %v1172
    %v1235 = vsel %vm1233, %v1174, %v1176
    %v1236 = vsel %vm1233, %v1178, %v1180
    %v1237 = vsel %vm1233, %v1182, %v1184
    %v1238 = vsel %vm1233, %v1186, %v1188
    %v1239 = vsel %vm1233, %v1190, %v1192
    %v1240 = vsel %vm1233, %v1194, %v1196
    %v1241 = vsel %vm1233, %v1198, %v1200
    %v1242 = vsel %vm1233, %v1202, %v1204
    %v1243 = vsel %vm1233, %v1206, %v1208
    %v1244 = vsel %vm1233, %v1210, %v1212
    %v1245 = vsel %vm1233, %v1214, %v1216
    %v1246 = vsel %vm1233, %v1218, %v1220
    %v1247 = vsel %vm1233, %v1222, %v1224
    %v1248 = vsel %vm1233, %v1226, %v1228
    %v1249 = vsel %vm1233, %v1230, %v1232
    %v1282 = vmax.f32 %v1105, %v1234
    %v1283 = vmax.f32 %v1106, %v1172
    %v1284 = vmax.f32 %v1107, %v1235
    %v1285 = vmax.f32 %v1108, %v1176
    %v1286 = vmax.f32 %v1109, %v1236
    %v1287 = vmax.f32 %v1110, %v1180
    %v1288 = vmax.f32 %v1111, %v1237
    %v1289 = vmax.f32 %v1112, %v1184
    %v1290 = vmax.f32 %v1113, %v1238
    %v1291 = vmax.f32 %v1114, %v1188
    %v1292 = vmax.f32 %v1115, %v1239
    %v1293 = vmax.f32 %v1116, %v1192
    %v1294 = vmax.f32 %v1117, %v1240
    %v1295 = vmax.f32 %v1118, %v1196
    %v1296 = vmax.f32 %v1119, %v1241
    %v1297 = vmax.f32 %v1120, %v1200
    %v1298 = vmax.f32 %v1121, %v1242
    %v1299 = vmax.f32 %v1122, %v1204
    %v1300 = vmax.f32 %v1123, %v1243
    %v1301 = vmax.f32 %v1124, %v1208
    %v1302 = vmax.f32 %v1125, %v1244
    %v1303 = vmax.f32 %v1126, %v1212
    %v1304 = vmax.f32 %v1127, %v1245
    %v1305 = vmax.f32 %v1128, %v1216
    %v1306 = vmax.f32 %v1129, %v1246
    %v1307 = vmax.f32 %v1130, %v1220
    %v1308 = vmax.f32 %v1131, %v1247
    %v1309 = vmax.f32 %v1132, %v1224
    %v1310 = vmax.f32 %v1133, %v1248
    %v1311 = vmax.f32 %v1134, %v1228
    %v1312 = vmax.f32 %v1135, %v1249
    %v1313 = vmax.f32 %v1136, %v1232
    %v1346 = vrot.slane %v1282, 1
    %v1347 = vrot.slane %v1284, 1
    %v1348 = vsel %vm321, %v1346, %v1347
    %v1349 = vrot.slane %v1283, 1
    %v1350 = vrot.slane %v1285, 1
    %v1351 = vsel %vm321, %v1349, %v1350
    %v1352 = vrot.slane %v1286, 1
    %v1353 = vsel %vm321, %v1347, %v1352
    %v1354 = vrot.slane %v1287, 1
    %v1355 = vsel %vm321, %v1350, %v1354
    %v1356 = vrot.slane %v1288, 1
    %v1357 = vsel %vm321, %v1352, %v1356
    %v1358 = vrot.slane %v1289, 1
    %v1359 = vsel %vm321, %v1354, %v1358
    %v1360 = vrot.slane %v1290, 1
    %v1361 = vsel %vm321, %v1356, %v1360
    %v1362 = vrot.slane %v1291, 1
    %v1363 = vsel %vm321, %v1358, %v1362
    %v1364 = vrot.slane %v1292, 1
    %v1365 = vsel %vm321, %v1360, %v1364
    %v1366 = vrot.slane %v1293, 1
    %v1367 = vsel %vm321, %v1362, %v1366
    %v1368 = vrot.slane %v1294, 1
    %v1369 = vsel %vm321, %v1364, %v1368
    %v1370 = vrot.slane %v1295, 1
    %v1371 = vsel %vm321, %v1366, %v1370
    %v1372 = vrot.slane %v1296, 1
    %v1373 = vsel %vm321, %v1368, %v1372
    %v1374 = vrot.slane %v1297, 1
    %v1375 = vsel %vm321, %v1370, %v1374
    %v1376 = vrot.slane %v1298, 1
    %v1377 = vsel %vm321, %v1372, %v1376
    %v1378 = vrot.slane %v1299, 1
    %v1379 = vsel %vm321, %v1374, %v1378
    %v1380 = vrot.slane %v1300, 1
    %v1381 = vsel %vm321, %v1376, %v1380
    %v1382 = vrot.slane %v1301, 1
    %v1383 = vsel %vm321, %v1378, %v1382
    %v1384 = vrot.slane %v1302, 1
    %v1385 = vsel %vm321, %v1380, %v1384
    %v1386 = vrot.slane %v1303, 1
    %v1387 = vsel %vm321, %v1382, %v1386
    %v1388 = vrot.slane %v1304, 1
    %v1389 = vsel %vm321, %v1384, %v1388
    %v1390 = vrot.slane %v1305, 1
    %v1391 = vsel %vm321, %v1386, %v1390
    %v1392 = vrot.slane %v1306, 1
    %v1393 = vsel %vm321, %v1388, %v1392
    %v1394 = vrot.slane %v1307, 1
    %v1395 = vsel %vm321, %v1390, %v1394
    %v1396 = vrot.slane %v1308, 1
    %v1397 = vsel %vm321, %v1392, %v1396
    %v1398 = vrot.slane %v1309, 1
    %v1399 = vsel %vm321, %v1394, %v1398
    %v1400 = vrot.slane %v1310, 1
    %v1401 = vsel %vm321, %v1396, %v1400
    %v1402 = vrot.slane %v1311, 1
    %v1403 = vsel %vm321, %v1398, %v1402
    %v1404 = vrot.slane %v1312, 1
    %v1405 = vsel %vm321, %v1400, %v1404
    %v1406 = vrot.slane %v1313, 1
    %v1407 = vsel %vm321, %v1402, %v1406
    %v1442 = vsel %vm321, %v1404, %v1346
    %v1443 = vsel %vm321, %v1406, %v1349
    %v1444 = vmax.f32 %v1282, %v1348
    %v1445 = vmax.f32 %v1283, %v1351
    %v1446 = vmax.f32 %v1284, %v1353
    %v1447 = vmax.f32 %v1285, %v1355
    %v1448 = vmax.f32 %v1286, %v1357
    %v1449 = vmax.f32 %v1287, %v1359
    %v1450 = vmax.f32 %v1288, %v1361
    %v1451 = vmax.f32 %v1289, %v1363
    %v1452 = vmax.f32 %v1290, %v1365
    %v1453 = vmax.f32 %v1291, %v1367
    %v1454 = vmax.f32 %v1292, %v1369
    %v1455 = vmax.f32 %v1293, %v1371
    %v1456 = vmax.f32 %v1294, %v1373
    %v1457 = vmax.f32 %v1295, %v1375
    %v1458 = vmax.f32 %v1296, %v1377
    %v1459 = vmax.f32 %v1297, %v1379
    %v1460 = vmax.f32 %v1298, %v1381
    %v1461 = vmax.f32 %v1299, %v1383
    %v1462 = vmax.f32 %v1300, %v1385
    %v1463 = vmax.f32 %v1301, %v1387
    %v1464 = vmax.f32 %v1302, %v1389
    %v1465 = vmax.f32 %v1303, %v1391
    %v1466 = vmax.f32 %v1304, %v1393
    %v1467 = vmax.f32 %v1305, %v1395
    %v1468 = vmax.f32 %v1306, %v1397
    %v1469 = vmax.f32 %v1307, %v1399
    %v1470 = vmax.f32 %v1308, %v1401
    %v1471 = vmax.f32 %v1309, %v1403
    %v1472 = vmax.f32 %v1310, %v1405
    %v1473 = vmax.f32 %v1311, %v1407
    %v1474 = vmax.f32 %v1312, %v1442
    %v1475 = vmax.f32 %v1313, %v1443
    %v1476 = vld [vmem:[#allocation11] sm:$0xff]
    %v1477 = vld [vmem:[#allocation11 + $0x8] sm:$0xff]
    %v1478 = vld [vmem:[#allocation11 + $0x10] sm:$0xff]
    %v1479 = vld [vmem:[#allocation11 + $0x18] sm:$0xff]
    %v1480 = vld [vmem:[#allocation11 + $0x20] sm:$0xff]
    %v1481 = vld [vmem:[#allocation11 + $0x28] sm:$0xff]
    %v1482 = vld [vmem:[#allocation11 + $0x30] sm:$0xff]
    %v1483 = vld [vmem:[#allocation11 + $0x38] sm:$0xff]
    %v1484 = vld [vmem:[#allocation11 + $0x40] sm:$0xff]
    %v1485 = vld [vmem:[#allocation11 + $0x48] sm:$0xff]
    %v1486 = vld [vmem:[#allocation11 + $0x50] sm:$0xff]
    %v1487 = vld [vmem:[#allocation11 + $0x58] sm:$0xff]
    %v1488 = vld [vmem:[#allocation11 + $0x60] sm:$0xff]
    %v1489 = vld [vmem:[#allocation11 + $0x68] sm:$0xff]
    %v1490 = vld [vmem:[#allocation11 + $0x70] sm:$0xff]
    %v1491 = vld [vmem:[#allocation11 + $0x78] sm:$0xff]
    %v1492 = vld [vmem:[#allocation11 + $0x80] sm:$0x3]
    %v1525 = vrot.slane %v1444, 2
    %v1526 = vrot.slane %v1446, 2
    %v1527 = vsel %vm756, %v1525, %v1526
    %v1528 = vrot.slane %v1445, 2
    %v1529 = vrot.slane %v1447, 2
    %v1530 = vsel %vm756, %v1528, %v1529
    %v1531 = vrot.slane %v1448, 2
    %v1532 = vsel %vm756, %v1526, %v1531
    %v1533 = vrot.slane %v1449, 2
    %v1534 = vsel %vm756, %v1529, %v1533
    %v1535 = vrot.slane %v1450, 2
    %v1536 = vsel %vm756, %v1531, %v1535
    %v1537 = vrot.slane %v1451, 2
    %v1538 = vsel %vm756, %v1533, %v1537
    %v1539 = vrot.slane %v1452, 2
    %v1540 = vsel %vm756, %v1535, %v1539
    %v1541 = vrot.slane %v1453, 2
    %v1542 = vsel %vm756, %v1537, %v1541
    %v1543 = vrot.slane %v1454, 2
    %v1544 = vsel %vm756, %v1539, %v1543
    %v1545 = vrot.slane %v1455, 2
    %v1546 = vsel %vm756, %v1541, %v1545
    %v1547 = vrot.slane %v1456, 2
    %v1548 = vsel %vm756, %v1543, %v1547
    %v1549 = vrot.slane %v1457, 2
    %v1550 = vsel %vm756, %v1545, %v1549
    %v1551 = vrot.slane %v1458, 2
    %v1552 = vsel %vm756, %v1547, %v1551
    %v1553 = vrot.slane %v1459, 2
    %v1554 = vsel %vm756, %v1549, %v1553
    %v1555 = vrot.slane %v1460, 2
    %v1556 = vsel %vm756, %v1551, %v1555
    %v1557 = vrot.slane %v1461, 2
    %v1558 = vsel %vm756, %v1553, %v1557
    %v1559 = vrot.slane %v1462, 2
    %v1560 = vsel %vm756, %v1555, %v1559
    %v1561 = vrot.slane %v1463, 2
    %v1562 = vsel %vm756, %v1557, %v1561
    %v1563 = vrot.slane %v1464, 2
    %v1564 = vsel %vm756, %v1559, %v1563
    %v1565 = vrot.slane %v1465, 2
    %v1566 = vsel %vm756, %v1561, %v1565
    %v1567 = vrot.slane %v1466, 2
    %v1568 = vsel %vm756, %v1563, %v1567
    %v1569 = vrot.slane %v1467, 2
    %v1570 = vsel %vm756, %v1565, %v1569
    %v1571 = vrot.slane %v1468, 2
    %v1572 = vsel %vm756, %v1567, %v1571
    %v1573 = vrot.slane %v1469, 2
    %v1574 = vsel %vm756, %v1569, %v1573
    %v1575 = vrot.slane %v1470, 2
    %v1576 = vsel %vm756, %v1571, %v1575
    %v1577 = vrot.slane %v1471, 2
    %v1578 = vsel %vm756, %v1573, %v1577
    %v1579 = vrot.slane %v1472, 2
    %v1580 = vsel %vm756, %v1575, %v1579
    %v1581 = vrot.slane %v1473, 2
    %v1582 = vsel %vm756, %v1577, %v1581
    %v1583 = vrot.slane %v1474, 2
    %v1584 = vsel %vm756, %v1579, %v1583
    %v1585 = vrot.slane %v1475, 2
    %v1586 = vsel %vm756, %v1581, %v1585
    %v1606 = vsel %vm756, %v1583, %v1525
    %v1607 = vsel %vm756, %v1585, %v1528
    %v1608 = vld [vmem:[#allocation13] sm:$0xff]
    %v1609 = vld [vmem:[#allocation13 + $0x8] sm:$0xff]
    %v1610 = vld [vmem:[#allocation13 + $0x10] sm:$0xff]
    %v1611 = vld [vmem:[#allocation13 + $0x18] sm:$0xff]
    %v1612 = vld [vmem:[#allocation13 + $0x20] sm:$0xff]
    %v1613 = vld [vmem:[#allocation13 + $0x28] sm:$0xff]
    %v1614 = vld [vmem:[#allocation13 + $0x30] sm:$0xff]
    %v1615 = vld [vmem:[#allocation13 + $0x38] sm:$0xff]
    %v1616 = vld [vmem:[#allocation13 + $0x40] sm:$0xff]
    %v1617 = vld [vmem:[#allocation13 + $0x48] sm:$0xff]
    %v1618 = vld [vmem:[#allocation13 + $0x50] sm:$0xff]
    %v1619 = vld [vmem:[#allocation13 + $0x58] sm:$0xff]
    %v1620 = vld [vmem:[#allocation13 + $0x60] sm:$0xff]
    %v1621 = vld [vmem:[#allocation13 + $0x68] sm:$0xff]
    %v1622 = vld [vmem:[#allocation13 + $0x70] sm:$0xff]
    %v1623 = vld [vmem:[#allocation13 + $0x78] sm:$0xff]
    %v1624 = vld [vmem:[#allocation13 + $0x80] sm:$0x3]
    %vm1625 = vcmask 15360
    %v1626 = vsel %vm1625, %v1530, 0
    %v1628 = vsel %vm1625, %v1534, 0
    %v1630 = vsel %vm1625, %v1538, 0
    %v1632 = vsel %vm1625, %v1542, 0
    %v1634 = vsel %vm1625, %v1546, 0
    %v1636 = vsel %vm1625, %v1550, 0
    %v1638 = vsel %vm1625, %v1554, 0
    %v1640 = vsel %vm1625, %v1558, 0
    %v1642 = vsel %vm1625, %v1562, 0
    %v1644 = vsel %vm1625, %v1566, 0
    %v1646 = vsel %vm1625, %v1570, 0
    %v1648 = vsel %vm1625, %v1574, 0
    %v1650 = vsel %vm1625, %v1578, 0
    %v1652 = vsel %vm1625, %v1582, 0
    %v1654 = vsel %vm1625, %v1586, 0
    %v1657 = vsel %vm1625, %v1607, 0
    %vm1659 = vcmask 1041408
    %v1661 = vsel %vm1659, %v1624, 0
    %1663 = vmatprep.subr.mxu0 0.0
    %1664 = vmatpush1.msra.mxu0 %v1608
    %1665 = vmatprep.subr.mxu0 0.0
    %1666 = vmatpush1.msra.mxu0 %v1609
    %1667 = vmatprep.subr.mxu0 0.0
    %1668 = vmatpush1.msra.mxu0 %v1610
    %1669 = vmatprep.subr.mxu0 0.0
    %1670 = vmatpush1.msra.mxu0 %v1611
    %1671 = vmatprep.subr.mxu0 0.0
    %1672 = vmatpush1.msra.mxu0 %v1612
    %1673 = vmatprep.subr.mxu0 0.0
    %1674 = vmatpush1.msra.mxu0 %v1613
    %1675 = vmatprep.subr.mxu0 0.0
    %1676 = vmatpush1.msra.mxu0 %v1614
    %1677 = vmatprep.subr.mxu0 0.0
    %1678 = vmatpush1.msra.mxu0 %v1615
    %1679 = vmatprep.subr.mxu0 0.0
    %1680 = vmatpush1.msra.mxu0 %v1616
    %1681 = vmatprep.subr.mxu0 0.0
    %1682 = vmatpush1.msra.mxu0 %v1617
    %1683 = vmatprep.subr.mxu0 0.0
    %1684 = vmatpush1.msra.mxu0 %v1618
    %1685 = vmatprep.subr.mxu0 0.0
    %1686 = vmatpush1.msra.mxu0 %v1619
    %1687 = vmatprep.subr.mxu0 0.0
    %1688 = vmatpush1.msra.mxu0 %v1620
    %1689 = vmatprep.subr.mxu0 0.0
    %1690 = vmatpush1.msra.mxu0 %v1621
    %1691 = vmatprep.subr.mxu0 0.0
    %1692 = vmatpush1.msra.mxu0 %v1622
    %1693 = vmatprep.subr.mxu0 0.0
    %1694 = vmatpush1.msra.mxu0 %v1623
    %1695 = vmatprep.subr.mxu0 0.0
    %1696 = vmatpush1.msra.mxu0 %v1661
    %1697 = vmatprep.subr.mxu0 0.0
    %1698 = vmatpush1.msra.mxu0 0.0
    %1699 = vmatprep.subr.mxu0 0.0
    %1700 = vmatpush1.msra.mxu0 0.0
    %1701 = vmatprep.subr.mxu0 0.0
    %1702 = vmatpush1.msra.mxu0 0.0
    %1703 = vmatprep.subr.mxu0 0.0
    %1704 = vmatpush1.msra.mxu0 0.0
    %1705 = vmatprep.subr.mxu0 0.0
    %1706 = vmatpush1.msra.mxu0 0.0
    %1707 = vmatprep.subr.mxu0 0.0
    %1708 = vmatpush1.msra.mxu0 0.0
    %1709 = vmatprep.subr.mxu0 0.0
    %1710 = vmatpush1.msra.mxu0 0.0
    %1711 = vmatprep.subr.mxu0 0.0
    %1712 = vmatpush1.msra.mxu0 0.0
    %1713 = vmatprep.subr.mxu0 0.0
    %1714 = vmatpush1.msra.mxu0 0.0
    %1715 = vmatprep.subr.mxu0 0.0
    %1716 = vmatpush1.msra.mxu0 0.0
    %1717 = vmatprep.subr.mxu0 0.0
    %1718 = vmatpush1.msra.mxu0 0.0
    %1719 = vmatprep.subr.mxu0 0.0
    %1720 = vmatpush1.msra.mxu0 0.0
    %1721 = vmatprep.subr.mxu0 0.0
    %1722 = vmatpush1.msra.mxu0 0.0
    %1723 = vmatprep.subr.mxu0 0.0
    %1724 = vmatpush1.msra.mxu0 0.0
    %1725 = vmatprep.subr.mxu0 0.0
    %1726 = vmatpush1.msra.mxu0 0.0
    %1727 = vmatprep.mubr.f32.mxu0 %v1626
    %1728 = vmatmul.mubr.f32.gmra.mrb[0].mxu0 %v1527
    %v1729 = vpop.f32.mrb[0].mxu0
    %v1730 = vadd.f32 0.0, %v1729
    %v1731 = vpop.f32.mrb[0].mxu0
    %1732 = vmatprep.mubr.f32.mxu0 %v1628
    %1733 = vmatmul.mubr.f32.gmra.mrb[0].mxu0 %v1532
    %v1734 = vpop.f32.mrb[0].mxu0
    %v1735 = vadd.f32 0.0, %v1734
    %v1736 = vpop.f32.mrb[0].mxu0
    %1737 = vmatprep.mubr.f32.mxu0 %v1630
    %1738 = vmatmul.mubr.f32.gmra.mrb[0].mxu0 %v1536
    %v1739 = vpop.f32.mrb[0].mxu0
    %v1740 = vadd.f32 0.0, %v1739
    %v1741 = vpop.f32.mrb[0].mxu0
    %1742 = vmatprep.mubr.f32.mxu0 %v1632
    %1743 = vmatmul.mubr.f32.gmra.mrb[0].mxu0 %v1540
    %v1744 = vpop.f32.mrb[0].mxu0
    %v1745 = vadd.f32 0.0, %v1744
    %v1746 = vpop.f32.mrb[0].mxu0
    %1747 = vmatprep.mubr.f32.mxu0 %v1634
    %1748 = vmatmul.mubr.f32.gmra.mrb[0].mxu0 %v1544
    %v1749 = vpop.f32.mrb[0].mxu0
    %v1750 = vadd.f32 0.0, %v1749
    %v1751 = vpop.f32.mrb[0].mxu0
    %1752 = vmatprep.mubr.f32.mxu0 %v1636
    %1753 = vmatmul.mubr.f32.gmra.mrb[0].mxu0 %v1548
    %v1754 = vpop.f32.mrb[0].mxu0
    %v1755 = vadd.f32 0.0, %v1754
    %v1756 = vpop.f32.mrb[0].mxu0
    %1757 = vmatprep.mubr.f32.mxu0 %v1638
    %1758 = vmatmul.mubr.f32.gmra.mrb[0].mxu0 %v1552
    %v1759 = vpop.f32.mrb[0].mxu0
    %v1760 = vadd.f32 0.0, %v1759
    %v1761 = vpop.f32.mrb[0].mxu0
    %1762 = vmatprep.mubr.f32.mxu0 %v1640
    %1763 = vmatmul.mubr.f32.gmra.mrb[0].mxu0 %v1556
    %v1764 = vpop.f32.mrb[0].mxu0
    %v1765 = vadd.f32 0.0, %v1764
    %v1766 = vpop.f32.mrb[0].mxu0
    %1767 = vmatprep.mubr.f32.mxu0 %v1642
    %1768 = vmatmul.mubr.f32.gmra.mrb[0].mxu0 %v1560
    %v1769 = vpop.f32.mrb[0].mxu0
    %v1770 = vadd.f32 0.0, %v1769
    %v1771 = vpop.f32.mrb[0].mxu0
    %1772 = vmatprep.mubr.f32.mxu0 %v1644
    %1773 = vmatmul.mubr.f32.gmra.mrb[0].mxu0 %v1564
    %v1774 = vpop.f32.mrb[0].mxu0
    %v1775 = vadd.f32 0.0, %v1774
    %v1776 = vpop.f32.mrb[0].mxu0
    %1777 = vmatprep.mubr.f32.mxu0 %v1646
    %1778 = vmatmul.mubr.f32.gmra.mrb[0].mxu0 %v1568
    %v1779 = vpop.f32.mrb[0].mxu0
    %v1780 = vadd.f32 0.0, %v1779
    %v1781 = vpop.f32.mrb[0].mxu0
    %1782 = vmatprep.mubr.f32.mxu0 %v1648
    %1783 = vmatmul.mubr.f32.gmra.mrb[0].mxu0 %v1572
    %v1784 = vpop.f32.mrb[0].mxu0
    %v1785 = vadd.f32 0.0, %v1784
    %v1786 = vpop.f32.mrb[0].mxu0
    %1787 = vmatprep.mubr.f32.mxu0 %v1650
    %1788 = vmatmul.mubr.f32.gmra.mrb[0].mxu0 %v1576
    %v1789 = vpop.f32.mrb[0].mxu0
    %v1790 = vadd.f32 0.0, %v1789
    %v1791 = vpop.f32.mrb[0].mxu0
    %1792 = vmatprep.mubr.f32.mxu0 %v1652
    %1793 = vmatmul.mubr.f32.gmra.mrb[0].mxu0 %v1580
    %v1794 = vpop.f32.mrb[0].mxu0
    %v1795 = vadd.f32 0.0, %v1794
    %v1796 = vpop.f32.mrb[0].mxu0
    %1797 = vmatprep.mubr.f32.mxu0 %v1654
    %1798 = vmatmul.mubr.f32.gmra.mrb[0].mxu0 %v1584
    %v1799 = vpop.f32.mrb[0].mxu0
    %v1800 = vadd.f32 0.0, %v1799
    %v1801 = vpop.f32.mrb[0].mxu0
    %1802 = vmatprep.mubr.f32.mxu0 %v1657
    %1803 = vmatmul.mubr.f32.gmra.mrb[0].mxu0 %v1606
    %v1804 = vpop.f32.mrb[0].mxu0
    %v1805 = vadd.f32 0.0, %v1804
    %v1806 = vpop.f32.mrb[0].mxu0
    %1807 = vdwg.mxu0
    %v1808 = vsel %vm1625, %v1445, 0
    %v1810 = vsel %vm1625, %v1447, 0
    %v1812 = vsel %vm1625, %v1449, 0
    %v1814 = vsel %vm1625, %v1451, 0
    %v1816 = vsel %vm1625, %v1453, 0
    %v1818 = vsel %vm1625, %v1455, 0
    %v1820 = vsel %vm1625, %v1457, 0
    %v1822 = vsel %vm1625, %v1459, 0
    %v1824 = vsel %vm1625, %v1461, 0
    %v1826 = vsel %vm1625, %v1463, 0
    %v1828 = vsel %vm1625, %v1465, 0
    %v1830 = vsel %vm1625, %v1467, 0
    %v1832 = vsel %vm1625, %v1469, 0
    %v1834 = vsel %vm1625, %v1471, 0
    %v1836 = vsel %vm1625, %v1473, 0
    %v1838 = vsel %vm1625, %v1475, 0
    %v1841 = vsel %vm1659, %v1492, 0
    %1843 = vmatprep.subr.mxu0 0.0
    %1844 = vmatpush1.msra.mxu0 %v1476
    %1845 = vmatprep.subr.mxu0 0.0
    %1846 = vmatpush1.msra.mxu0 %v1477
    %1847 = vmatprep.subr.mxu0 0.0
    %1848 = vmatpush1.msra.mxu0 %v1478
    %1849 = vmatprep.subr.mxu0 0.0
    %1850 = vmatpush1.msra.mxu0 %v1479
    %1851 = vmatprep.subr.mxu0 0.0
    %1852 = vmatpush1.msra.mxu0 %v1480
    %1853 = vmatprep.subr.mxu0 0.0
    %1854 = vmatpush1.msra.mxu0 %v1481
    %1855 = vmatprep.subr.mxu0 0.0
    %1856 = vmatpush1.msra.mxu0 %v1482
    %1857 = vmatprep.subr.mxu0 0.0
    %1858 = vmatpush1.msra.mxu0 %v1483
    %1859 = vmatprep.subr.mxu0 0.0
    %1860 = vmatpush1.msra.mxu0 %v1484
    %1861 = vmatprep.subr.mxu0 0.0
    %1862 = vmatpush1.msra.mxu0 %v1485
    %1863 = vmatprep.subr.mxu0 0.0
    %1864 = vmatpush1.msra.mxu0 %v1486
    %1865 = vmatprep.subr.mxu0 0.0
    %1866 = vmatpush1.msra.mxu0 %v1487
    %1867 = vmatprep.subr.mxu0 0.0
    %1868 = vmatpush1.msra.mxu0 %v1488
    %1869 = vmatprep.subr.mxu0 0.0
    %1870 = vmatpush1.msra.mxu0 %v1489
    %1871 = vmatprep.subr.mxu0 0.0
    %1872 = vmatpush1.msra.mxu0 %v1490
    %1873 = vmatprep.subr.mxu0 0.0
    %1874 = vmatpush1.msra.mxu0 %v1491
    %1875 = vmatprep.subr.mxu0 0.0
    %1876 = vmatpush1.msra.mxu0 %v1841
    %1877 = vmatprep.subr.mxu0 0.0
    %1878 = vmatpush1.msra.mxu0 0.0
    %1879 = vmatprep.subr.mxu0 0.0
    %1880 = vmatpush1.msra.mxu0 0.0
    %1881 = vmatprep.subr.mxu0 0.0
    %1882 = vmatpush1.msra.mxu0 0.0
    %1883 = vmatprep.subr.mxu0 0.0
    %1884 = vmatpush1.msra.mxu0 0.0
    %1885 = vmatprep.subr.mxu0 0.0
    %1886 = vmatpush1.msra.mxu0 0.0
    %1887 = vmatprep.subr.mxu0 0.0
    %1888 = vmatpush1.msra.mxu0 0.0
    %1889 = vmatprep.subr.mxu0 0.0
    %1890 = vmatpush1.msra.mxu0 0.0
    %1891 = vmatprep.subr.mxu0 0.0
    %1892 = vmatpush1.msra.mxu0 0.0
    %1893 = vmatprep.subr.mxu0 0.0
    %1894 = vmatpush1.msra.mxu0 0.0
    %1895 = vmatprep.subr.mxu0 0.0
    %1896 = vmatpush1.msra.mxu0 0.0
    %1897 = vmatprep.subr.mxu0 0.0
    %1898 = vmatpush1.msra.mxu0 0.0
    %1899 = vmatprep.subr.mxu0 0.0
    %1900 = vmatpush1.msra.mxu0 0.0
    %1901 = vmatprep.subr.mxu0 0.0
    %1902 = vmatpush1.msra.mxu0 0.0
    %1903 = vmatprep.subr.mxu0 0.0
    %1904 = vmatpush1.msra.mxu0 0.0
    %1905 = vmatprep.subr.mxu0 0.0
    %1906 = vmatpush1.msra.mxu0 0.0
    %1907 = vmatprep.mubr.f32.mxu0 %v1808
    %1908 = vmatmul.mubr.f32.gmra.mrb[0].mxu0 %v1444
    %v1909 = vpop.f32.mrb[0].mxu0
    %v1910 = vadd.f32 %v1730, %v1909
    %v1911 = vpop.f32.mrb[0].mxu0
    %1912 = vmatprep.mubr.f32.mxu0 %v1810
    %1913 = vmatmul.mubr.f32.gmra.mrb[0].mxu0 %v1446
    %v1914 = vpop.f32.mrb[0].mxu0
    %v1915 = vadd.f32 %v1735, %v1914
    %v1916 = vpop.f32.mrb[0].mxu0
    %1917 = vmatprep.mubr.f32.mxu0 %v1812
    %1918 = vmatmul.mubr.f32.gmra.mrb[0].mxu0 %v1448
    %v1919 = vpop.f32.mrb[0].mxu0
    %v1920 = vadd.f32 %v1740, %v1919
    %v1921 = vpop.f32.mrb[0].mxu0
    %1922 = vmatprep.mubr.f32.mxu0 %v1814
    %1923 = vmatmul.mubr.f32.gmra.mrb[0].mxu0 %v1450
    %v1924 = vpop.f32.mrb[0].mxu0
    %v1925 = vadd.f32 %v1745, %v1924
    %v1926 = vpop.f32.mrb[0].mxu0
    %1927 = vmatprep.mubr.f32.mxu0 %v1816
    %1928 = vmatmul.mubr.f32.gmra.mrb[0].mxu0 %v1452
    %v1929 = vpop.f32.mrb[0].mxu0
    %v1930 = vadd.f32 %v1750, %v1929
    %v1931 = vpop.f32.mrb[0].mxu0
    %1932 = vmatprep.mubr.f32.mxu0 %v1818
    %1933 = vmatmul.mubr.f32.gmra.mrb[0].mxu0 %v1454
    %v1934 = vpop.f32.mrb[0].mxu0
    %v1935 = vadd.f32 %v1755, %v1934
    %v1936 = vpop.f32.mrb[0].mxu0
    %1937 = vmatprep.mubr.f32.mxu0 %v1820
    %1938 = vmatmul.mubr.f32.gmra.mrb[0].mxu0 %v1456
    %v1939 = vpop.f32.mrb[0].mxu0
    %v1940 = vadd.f32 %v1760, %v1939
    %v1941 = vpop.f32.mrb[0].mxu0
    %1942 = vmatprep.mubr.f32.mxu0 %v1822
    %1943 = vmatmul.mubr.f32.gmra.mrb[0].mxu0 %v1458
    %v1944 = vpop.f32.mrb[0].mxu0
    %v1945 = vadd.f32 %v1765, %v1944
    %v1946 = vpop.f32.mrb[0].mxu0
    %1947 = vmatprep.mubr.f32.mxu0 %v1824
    %1948 = vmatmul.mubr.f32.gmra.mrb[0].mxu0 %v1460
    %v1949 = vpop.f32.mrb[0].mxu0
    %v1950 = vadd.f32 %v1770, %v1949
    %v1951 = vpop.f32.mrb[0].mxu0
    %1952 = vmatprep.mubr.f32.mxu0 %v1826
    %1953 = vmatmul.mubr.f32.gmra.mrb[0].mxu0 %v1462
    %v1954 = vpop.f32.mrb[0].mxu0
    %v1955 = vadd.f32 %v1775, %v1954
    %v1956 = vpop.f32.mrb[0].mxu0
    %1957 = vmatprep.mubr.f32.mxu0 %v1828
    %1958 = vmatmul.mubr.f32.gmra.mrb[0].mxu0 %v1464
    %v1959 = vpop.f32.mrb[0].mxu0
    %v1960 = vadd.f32 %v1780, %v1959
    %v1961 = vpop.f32.mrb[0].mxu0
    %1962 = vmatprep.mubr.f32.mxu0 %v1830
    %1963 = vmatmul.mubr.f32.gmra.mrb[0].mxu0 %v1466
    %v1964 = vpop.f32.mrb[0].mxu0
    %v1965 = vadd.f32 %v1785, %v1964
    %v1966 = vpop.f32.mrb[0].mxu0
    %1967 = vmatprep.mubr.f32.mxu0 %v1832
    %1968 = vmatmul.mubr.f32.gmra.mrb[0].mxu0 %v1468
    %v1969 = vpop.f32.mrb[0].mxu0
    %v1970 = vadd.f32 %v1790, %v1969
    %v1971 = vpop.f32.mrb[0].mxu0
    %1972 = vmatprep.mubr.f32.mxu0 %v1834
    %1973 = vmatmul.mubr.f32.gmra.mrb[0].mxu0 %v1470
    %v1974 = vpop.f32.mrb[0].mxu0
    %v1975 = vadd.f32 %v1795, %v1974
    %v1976 = vpop.f32.mrb[0].mxu0
    %1977 = vmatprep.mubr.f32.mxu0 %v1836
    %1978 = vmatmul.mubr.f32.gmra.mrb[0].mxu0 %v1472
    %v1979 = vpop.f32.mrb[0].mxu0
    %v1980 = vadd.f32 %v1800, %v1979
    %v1981 = vpop.f32.mrb[0].mxu0
    %1982 = vmatprep.mubr.f32.mxu0 %v1838
    %1983 = vmatmul.mubr.f32.gmra.mrb[0].mxu0 %v1474
    %v1984 = vpop.f32.mrb[0].mxu0
    %v1985 = vadd.f32 %v1805, %v1984
    %v1986 = vpop.f32.mrb[0].mxu0
    %1987 = vdwg.mxu0
    %vm1988 = vcmask 1043456
    %v1989 = vrot.slane %v1444, 4
    %v1990 = vrot.slane %v1446, 4
    %v1991 = vsel %vm1988, %v1989, %v1990
    %v1992 = vrot.slane %v1445, 4
    %v1993 = vrot.slane %v1447, 4
    %v1994 = vsel %vm1988, %v1992, %v1993
    %v1995 = vrot.slane %v1448, 4
    %v1996 = vsel %vm1988, %v1990, %v1995
    %v1997 = vrot.slane %v1449, 4
    %v1998 = vsel %vm1988, %v1993, %v1997
    %v1999 = vrot.slane %v1450, 4
    %v2000 = vsel %vm1988, %v1995, %v1999
    %v2001 = vrot.slane %v1451, 4
    %v2002 = vsel %vm1988, %v1997, %v2001
    %v2003 = vrot.slane %v1452, 4
    %v2004 = vsel %vm1988, %v1999, %v2003
    %v2005 = vrot.slane %v1453, 4
    %v2006 = vsel %vm1988, %v2001, %v2005
    %v2007 = vrot.slane %v1454, 4
    %v2008 = vsel %vm1988, %v2003, %v2007
    %v2009 = vrot.slane %v1455, 4
    %v2010 = vsel %vm1988, %v2005, %v2009
    %v2011 = vrot.slane %v1456, 4
    %v2012 = vsel %vm1988, %v2007, %v2011
    %v2013 = vrot.slane %v1457, 4
    %v2014 = vsel %vm1988, %v2009, %v2013
    %v2015 = vrot.slane %v1458, 4
    %v2016 = vsel %vm1988, %v2011, %v2015
    %v2017 = vrot.slane %v1459, 4
    %v2018 = vsel %vm1988, %v2013, %v2017
    %v2019 = vrot.slane %v1460, 4
    %v2020 = vsel %vm1988, %v2015, %v2019
    %v2021 = vrot.slane %v1461, 4
    %v2022 = vsel %vm1988, %v2017, %v2021
    %v2023 = vrot.slane %v1462, 4
    %v2024 = vsel %vm1988, %v2019, %v2023
    %v2025 = vrot.slane %v1463, 4
    %v2026 = vsel %vm1988, %v2021, %v2025
    %v2027 = vrot.slane %v1464, 4
    %v2028 = vsel %vm1988, %v2023, %v2027
    %v2029 = vrot.slane %v1465, 4
    %v2030 = vsel %vm1988, %v2025, %v2029
    %v2031 = vrot.slane %v1466, 4
    %v2032 = vsel %vm1988, %v2027, %v2031
    %v2033 = vrot.slane %v1467, 4
    %v2034 = vsel %vm1988, %v2029, %v2033
    %v2035 = vrot.slane %v1468, 4
    %v2036 = vsel %vm1988, %v2031, %v2035
    %v2037 = vrot.slane %v1469, 4
    %v2038 = vsel %vm1988, %v2033, %v2037
    %v2039 = vrot.slane %v1470, 4
    %v2040 = vsel %vm1988, %v2035, %v2039
    %v2041 = vrot.slane %v1471, 4
    %v2042 = vsel %vm1988, %v2037, %v2041
    %v2043 = vrot.slane %v1472, 4
    %v2044 = vsel %vm1988, %v2039, %v2043
    %v2045 = vrot.slane %v1473, 4
    %v2046 = vsel %vm1988, %v2041, %v2045
    %v2047 = vrot.slane %v1474, 4
    %v2048 = vsel %vm1988, %v2043, %v2047
    %v2049 = vrot.slane %v1475, 4
    %v2050 = vsel %vm1988, %v2045, %v2049
    %v2070 = vsel %vm1988, %v2047, %v1989
    %v2071 = vsel %vm1988, %v2049, %v1992
    %v2072 = vld [vmem:[#allocation14] sm:$0xff]
    %v2073 = vld [vmem:[#allocation14 + $0x8] sm:$0xff]
    %v2074 = vld [vmem:[#allocation14 + $0x10] sm:$0xff]
    %v2075 = vld [vmem:[#allocation14 + $0x18] sm:$0xff]
    %v2076 = vld [vmem:[#allocation14 + $0x20] sm:$0xff]
    %v2077 = vld [vmem:[#allocation14 + $0x28] sm:$0xff]
    %v2078 = vld [vmem:[#allocation14 + $0x30] sm:$0xff]
    %v2079 = vld [vmem:[#allocation14 + $0x38] sm:$0xff]
    %v2080 = vld [vmem:[#allocation14 + $0x40] sm:$0xff]
    %v2081 = vld [vmem:[#allocation14 + $0x48] sm:$0xff]
    %v2082 = vld [vmem:[#allocation14 + $0x50] sm:$0xff]
    %v2083 = vld [vmem:[#allocation14 + $0x58] sm:$0xff]
    %v2084 = vld [vmem:[#allocation14 + $0x60] sm:$0xff]
    %v2085 = vld [vmem:[#allocation14 + $0x68] sm:$0xff]
    %v2086 = vld [vmem:[#allocation14 + $0x70] sm:$0xff]
    %v2087 = vld [vmem:[#allocation14 + $0x78] sm:$0xff]
    %v2088 = vld [vmem:[#allocation14 + $0x80] sm:$0x3]
    %v2089 = vsel %vm1625, %v1994, 0
    %v2091 = vsel %vm1625, %v1998, 0
    %v2093 = vsel %vm1625, %v2002, 0
    %v2095 = vsel %vm1625, %v2006, 0
    %v2097 = vsel %vm1625, %v2010, 0
    %v2099 = vsel %vm1625, %v2014, 0
    %v2101 = vsel %vm1625, %v2018, 0
    %v2103 = vsel %vm1625, %v2022, 0
    %v2105 = vsel %vm1625, %v2026, 0
    %v2107 = vsel %vm1625, %v2030, 0
    %v2109 = vsel %vm1625, %v2034, 0
    %v2111 = vsel %vm1625, %v2038, 0
    %v2113 = vsel %vm1625, %v2042, 0
    %v2115 = vsel %vm1625, %v2046, 0
    %v2117 = vsel %vm1625, %v2050, 0
    %v2120 = vsel %vm1625, %v2071, 0
    %v2123 = vsel %vm1659, %v2088, 0
    %2125 = vmatprep.subr.mxu0 0.0
    %2126 = vmatpush1.msra.mxu0 %v2072
    %2127 = vmatprep.subr.mxu0 0.0
    %2128 = vmatpush1.msra.mxu0 %v2073
    %2129 = vmatprep.subr.mxu0 0.0
    %2130 = vmatpush1.msra.mxu0 %v2074
    %2131 = vmatprep.subr.mxu0 0.0
    %2132 = vmatpush1.msra.mxu0 %v2075
    %2133 = vmatprep.subr.mxu0 0.0
    %2134 = vmatpush1.msra.mxu0 %v2076
    %2135 = vmatprep.subr.mxu0 0.0
    %2136 = vmatpush1.msra.mxu0 %v2077
    %2137 = vmatprep.subr.mxu0 0.0
    %2138 = vmatpush1.msra.mxu0 %v2078
    %2139 = vmatprep.subr.mxu0 0.0
    %2140 = vmatpush1.msra.mxu0 %v2079
    %2141 = vmatprep.subr.mxu0 0.0
    %2142 = vmatpush1.msra.mxu0 %v2080
    %2143 = vmatprep.subr.mxu0 0.0
    %2144 = vmatpush1.msra.mxu0 %v2081
    %2145 = vmatprep.subr.mxu0 0.0
    %2146 = vmatpush1.msra.mxu0 %v2082
    %2147 = vmatprep.subr.mxu0 0.0
    %2148 = vmatpush1.msra.mxu0 %v2083
    %2149 = vmatprep.subr.mxu0 0.0
    %2150 = vmatpush1.msra.mxu0 %v2084
    %2151 = vmatprep.subr.mxu0 0.0
    %2152 = vmatpush1.msra.mxu0 %v2085
    %2153 = vmatprep.subr.mxu0 0.0
    %2154 = vmatpush1.msra.mxu0 %v2086
    %2155 = vmatprep.subr.mxu0 0.0
    %2156 = vmatpush1.msra.mxu0 %v2087
    %2157 = vmatprep.subr.mxu0 0.0
    %2158 = vmatpush1.msra.mxu0 %v2123
    %2159 = vmatprep.subr.mxu0 0.0
    %2160 = vmatpush1.msra.mxu0 0.0
    %2161 = vmatprep.subr.mxu0 0.0
    %2162 = vmatpush1.msra.mxu0 0.0
    %2163 = vmatprep.subr.mxu0 0.0
    %2164 = vmatpush1.msra.mxu0 0.0
    %2165 = vmatprep.subr.mxu0 0.0
    %2166 = vmatpush1.msra.mxu0 0.0
    %2167 = vmatprep.subr.mxu0 0.0
    %2168 = vmatpush1.msra.mxu0 0.0
    %2169 = vmatprep.subr.mxu0 0.0
    %2170 = vmatpush1.msra.mxu0 0.0
    %2171 = vmatprep.subr.mxu0 0.0
    %2172 = vmatpush1.msra.mxu0 0.0
    %2173 = vmatprep.subr.mxu0 0.0
    %2174 = vmatpush1.msra.mxu0 0.0
    %2175 = vmatprep.subr.mxu0 0.0
    %2176 = vmatpush1.msra.mxu0 0.0
    %2177 = vmatprep.subr.mxu0 0.0
    %2178 = vmatpush1.msra.mxu0 0.0
    %2179 = vmatprep.subr.mxu0 0.0
    %2180 = vmatpush1.msra.mxu0 0.0
    %2181 = vmatprep.subr.mxu0 0.0
    %2182 = vmatpush1.msra.mxu0 0.0
    %2183 = vmatprep.subr.mxu0 0.0
    %2184 = vmatpush1.msra.mxu0 0.0
    %2185 = vmatprep.subr.mxu0 0.0
    %2186 = vmatpush1.msra.mxu0 0.0
    %2187 = vmatprep.subr.mxu0 0.0
    %2188 = vmatpush1.msra.mxu0 0.0
    %2189 = vmatprep.mubr.f32.mxu0 %v2089
    %2190 = vmatmul.mubr.f32.gmra.mrb[0].mxu0 %v1991
    %v2191 = vpop.f32.mrb[0].mxu0
    %v2192 = vadd.f32 0.0, %v2191
    %v2193 = vpop.f32.mrb[0].mxu0
    %2194 = vmatprep.mubr.f32.mxu0 %v2091
    %2195 = vmatmul.mubr.f32.gmra.mrb[0].mxu0 %v1996
    %v2196 = vpop.f32.mrb[0].mxu0
    %v2197 = vadd.f32 0.0, %v2196
    %v2198 = vpop.f32.mrb[0].mxu0
    %2199 = vmatprep.mubr.f32.mxu0 %v2093
    %2200 = vmatmul.mubr.f32.gmra.mrb[0].mxu0 %v2000
    %v2201 = vpop.f32.mrb[0].mxu0
    %v2202 = vadd.f32 0.0, %v2201
    %v2203 = vpop.f32.mrb[0].mxu0
    %2204 = vmatprep.mubr.f32.mxu0 %v2095
    %2205 = vmatmul.mubr.f32.gmra.mrb[0].mxu0 %v2004
    %v2206 = vpop.f32.mrb[0].mxu0
    %v2207 = vadd.f32 0.0, %v2206
    %v2208 = vpop.f32.mrb[0].mxu0
    %2209 = vmatprep.mubr.f32.mxu0 %v2097
    %2210 = vmatmul.mubr.f32.gmra.mrb[0].mxu0 %v2008
    %v2211 = vpop.f32.mrb[0].mxu0
    %v2212 = vadd.f32 0.0, %v2211
    %v2213 = vpop.f32.mrb[0].mxu0
    %2214 = vmatprep.mubr.f32.mxu0 %v2099
    %2215 = vmatmul.mubr.f32.gmra.mrb[0].mxu0 %v2012
    %v2216 = vpop.f32.mrb[0].mxu0
    %v2217 = vadd.f32 0.0, %v2216
    %v2218 = vpop.f32.mrb[0].mxu0
    %2219 = vmatprep.mubr.f32.mxu0 %v2101
    %2220 = vmatmul.mubr.f32.gmra.mrb[0].mxu0 %v2016
    %v2221 = vpop.f32.mrb[0].mxu0
    %v2222 = vadd.f32 0.0, %v2221
    %v2223 = vpop.f32.mrb[0].mxu0
    %2224 = vmatprep.mubr.f32.mxu0 %v2103
    %2225 = vmatmul.mubr.f32.gmra.mrb[0].mxu0 %v2020
    %v2226 = vpop.f32.mrb[0].mxu0
    %v2227 = vadd.f32 0.0, %v2226
    %v2228 = vpop.f32.mrb[0].mxu0
    %2229 = vmatprep.mubr.f32.mxu0 %v2105
    %2230 = vmatmul.mubr.f32.gmra.mrb[0].mxu0 %v2024
    %v2231 = vpop.f32.mrb[0].mxu0
    %v2232 = vadd.f32 0.0, %v2231
    %v2233 = vpop.f32.mrb[0].mxu0
    %2234 = vmatprep.mubr.f32.mxu0 %v2107
    %2235 = vmatmul.mubr.f32.gmra.mrb[0].mxu0 %v2028
    %v2236 = vpop.f32.mrb[0].mxu0
    %v2237 = vadd.f32 0.0, %v2236
    %v2238 = vpop.f32.mrb[0].mxu0
    %2239 = vmatprep.mubr.f32.mxu0 %v2109
    %2240 = vmatmul.mubr.f32.gmra.mrb[0].mxu0 %v2032
    %v2241 = vpop.f32.mrb[0].mxu0
    %v2242 = vadd.f32 0.0, %v2241
    %v2243 = vpop.f32.mrb[0].mxu0
    %2244 = vmatprep.mubr.f32.mxu0 %v2111
    %2245 = vmatmul.mubr.f32.gmra.mrb[0].mxu0 %v2036
    %v2246 = vpop.f32.mrb[0].mxu0
    %v2247 = vadd.f32 0.0, %v2246
    %v2248 = vpop.f32.mrb[0].mxu0
    %2249 = vmatprep.mubr.f32.mxu0 %v2113
    %2250 = vmatmul.mubr.f32.gmra.mrb[0].mxu0 %v2040
    %v2251 = vpop.f32.mrb[0].mxu0
    %v2252 = vadd.f32 0.0, %v2251
    %v2253 = vpop.f32.mrb[0].mxu0
    %2254 = vmatprep.mubr.f32.mxu0 %v2115
    %2255 = vmatmul.mubr.f32.gmra.mrb[0].mxu0 %v2044
    %v2256 = vpop.f32.mrb[0].mxu0
    %v2257 = vadd.f32 0.0, %v2256
    %v2258 = vpop.f32.mrb[0].mxu0
    %2259 = vmatprep.mubr.f32.mxu0 %v2117
    %2260 = vmatmul.mubr.f32.gmra.mrb[0].mxu0 %v2048
    %v2261 = vpop.f32.mrb[0].mxu0
    %v2262 = vadd.f32 0.0, %v2261
    %v2263 = vpop.f32.mrb[0].mxu0
    %2264 = vmatprep.mubr.f32.mxu0 %v2120
    %2265 = vmatmul.mubr.f32.gmra.mrb[0].mxu0 %v2070
    %v2266 = vpop.f32.mrb[0].mxu0
    %v2267 = vadd.f32 0.0, %v2266
    %v2268 = vpop.f32.mrb[0].mxu0
    %2269 = vdwg.mxu0
    %v2270 = vadd.f32 %v1910, %v2192
    %v2271 = vadd.f32 %v1915, %v2197
    %v2272 = vadd.f32 %v1920, %v2202
    %v2273 = vadd.f32 %v1925, %v2207
    %v2274 = vadd.f32 %v1930, %v2212
    %v2275 = vadd.f32 %v1935, %v2217
    %v2276 = vadd.f32 %v1940, %v2222
    %v2277 = vadd.f32 %v1945, %v2227
    %v2278 = vadd.f32 %v1950, %v2232
    %v2279 = vadd.f32 %v1955, %v2237
    %v2280 = vadd.f32 %v1960, %v2242
    %v2281 = vadd.f32 %v1965, %v2247
    %v2282 = vadd.f32 %v1970, %v2252
    %v2283 = vadd.f32 %v1975, %v2257
    %v2284 = vadd.f32 %v1980, %v2262
    %v2285 = vadd.f32 %v1985, %v2267
    %v2286 = vld [vmem:[#allocation16] sm:$0x1]
    %v2288 = vlaneseq
    %v2289 = vshrl.u32 %v2288, 7
    %v2290 = vsub.s32 0, %v2289
    %v2291 = vrot.slane %v2286, %v2290
    %v2293 = vadd.f32 %v2270, %v2291
    %v2294 = vadd.f32 %v2271, %v2291
    %v2295 = vadd.f32 %v2272, %v2291
    %v2296 = vadd.f32 %v2273, %v2291
    %v2297 = vadd.f32 %v2274, %v2291
    %v2298 = vadd.f32 %v2275, %v2291
    %v2299 = vadd.f32 %v2276, %v2291
    %v2300 = vadd.f32 %v2277, %v2291
    %v2301 = vadd.f32 %v2278, %v2291
    %v2302 = vadd.f32 %v2279, %v2291
    %v2303 = vadd.f32 %v2280, %v2291
    %v2304 = vadd.f32 %v2281, %v2291
    %v2305 = vadd.f32 %v2282, %v2291
    %v2306 = vadd.f32 %v2283, %v2291
    %v2307 = vadd.f32 %v2284, %v2291
    %v2308 = vadd.f32 %v2285, %v2291
    %v2309 = vmul.f32 %v2293, 0.01
    %v2310 = vmul.f32 %v2294, 0.01
    %v2311 = vmul.f32 %v2295, 0.01
    %v2312 = vmul.f32 %v2296, 0.01
    %v2313 = vmul.f32 %v2297, 0.01
    %v2314 = vmul.f32 %v2298, 0.01
    %v2315 = vmul.f32 %v2299, 0.01
    %v2316 = vmul.f32 %v2300, 0.01
    %v2317 = vmul.f32 %v2301, 0.01
    %v2318 = vmul.f32 %v2302, 0.01
    %v2319 = vmul.f32 %v2303, 0.01
    %v2320 = vmul.f32 %v2304, 0.01
    %v2321 = vmul.f32 %v2305, 0.01
    %v2322 = vmul.f32 %v2306, 0.01
    %v2323 = vmul.f32 %v2307, 0.01
    %v2324 = vmul.f32 %v2308, 0.01
    %v2325 = vmax.f32 %v2293, %v2309
    %v2326 = vmax.f32 %v2294, %v2310
    %v2327 = vmax.f32 %v2295, %v2311
    %v2328 = vmax.f32 %v2296, %v2312
    %v2329 = vmax.f32 %v2297, %v2313
    %v2330 = vmax.f32 %v2298, %v2314
    %v2331 = vmax.f32 %v2299, %v2315
    %v2332 = vmax.f32 %v2300, %v2316
    %v2333 = vmax.f32 %v2301, %v2317
    %v2334 = vmax.f32 %v2302, %v2318
    %v2335 = vmax.f32 %v2303, %v2319
    %v2336 = vmax.f32 %v2304, %v2320
    %v2337 = vmax.f32 %v2305, %v2321
    %v2338 = vmax.f32 %v2306, %v2322
    %v2339 = vmax.f32 %v2307, %v2323
    %v2340 = vmax.f32 %v2308, %v2324
    %v2341 = vld [vmem:[#allocation17] sm:$0xff]
    %v2342 = vld [vmem:[#allocation17 + $0x8] sm:$0xff]
    %v2343 = vld [vmem:[#allocation17 + $0x10] sm:$0xff]
    %v2344 = vld [vmem:[#allocation17 + $0x18] sm:$0xff]
    %v2345 = vld [vmem:[#allocation17 + $0x20] sm:$0xff]
    %v2346 = vld [vmem:[#allocation17 + $0x28] sm:$0xff]
    %v2347 = vld [vmem:[#allocation17 + $0x30] sm:$0xff]
    %v2348 = vld [vmem:[#allocation17 + $0x38] sm:$0xff]
    %v2349 = vld [vmem:[#allocation17 + $0x40] sm:$0xff]
    %v2350 = vld [vmem:[#allocation17 + $0x48] sm:$0xff]
    %v2367 = vrot.slane %v2325, 2
    %v2368 = vrot.slane %v2326, 2
    %v2369 = vsel %vm756, %v2367, %v2368
    %v2370 = vrot.slane %v2327, 2
    %v2371 = vsel %vm756, %v2368, %v2370
    %v2372 = vrot.slane %v2328, 2
    %v2373 = vsel %vm756, %v2370, %v2372
    %v2374 = vrot.slane %v2329, 2
    %v2375 = vsel %vm756, %v2372, %v2374
    %v2376 = vrot.slane %v2330, 2
    %v2377 = vsel %vm756, %v2374, %v2376
    %v2378 = vrot.slane %v2331, 2
    %v2379 = vsel %vm756, %v2376, %v2378
    %v2380 = vrot.slane %v2332, 2
    %v2381 = vsel %vm756, %v2378, %v2380
    %v2382 = vrot.slane %v2333, 2
    %v2383 = vsel %vm756, %v2380, %v2382
    %v2384 = vrot.slane %v2334, 2
    %v2385 = vsel %vm756, %v2382, %v2384
    %v2386 = vrot.slane %v2335, 2
    %v2387 = vsel %vm756, %v2384, %v2386
    %v2388 = vrot.slane %v2336, 2
    %v2389 = vsel %vm756, %v2386, %v2388
    %v2390 = vrot.slane %v2337, 2
    %v2391 = vsel %vm756, %v2388, %v2390
    %v2392 = vrot.slane %v2338, 2
    %v2393 = vsel %vm756, %v2390, %v2392
    %v2394 = vrot.slane %v2339, 2
    %v2395 = vsel %vm756, %v2392, %v2394
    %v2396 = vrot.slane %v2340, 2
    %v2397 = vsel %vm756, %v2394, %v2396
    %v2400 = vsel %vm756, %v2396, %v2367
    %v2401 = vld [vmem:[#allocation19] sm:$0xff]
    %v2402 = vld [vmem:[#allocation19 + $0x8] sm:$0xff]
    %v2403 = vld [vmem:[#allocation19 + $0x10] sm:$0xff]
    %v2404 = vld [vmem:[#allocation19 + $0x18] sm:$0xff]
    %v2405 = vld [vmem:[#allocation19 + $0x20] sm:$0xff]
    %v2406 = vld [vmem:[#allocation19 + $0x28] sm:$0xff]
    %v2407 = vld [vmem:[#allocation19 + $0x30] sm:$0xff]
    %v2408 = vld [vmem:[#allocation19 + $0x38] sm:$0xff]
    %v2409 = vld [vmem:[#allocation19 + $0x40] sm:$0xff]
    %v2410 = vld [vmem:[#allocation19 + $0x48] sm:$0xff]
    %vm2411 = vcmask 654336
    %v2412 = vsel %vm2411, %v2369, 0
    %v2414 = vsel %vm2411, %v2371, 0
    %v2416 = vsel %vm2411, %v2373, 0
    %v2418 = vsel %vm2411, %v2375, 0
    %v2420 = vsel %vm2411, %v2377, 0
    %v2422 = vsel %vm2411, %v2379, 0
    %v2424 = vsel %vm2411, %v2381, 0
    %v2426 = vsel %vm2411, %v2383, 0
    %v2428 = vsel %vm2411, %v2385, 0
    %v2430 = vsel %vm2411, %v2387, 0
    %v2432 = vsel %vm2411, %v2389, 0
    %v2434 = vsel %vm2411, %v2391, 0
    %v2436 = vsel %vm2411, %v2393, 0
    %v2438 = vsel %vm2411, %v2395, 0
    %v2440 = vsel %vm2411, %v2397, 0
    %v2443 = vsel %vm2411, %v2400, 0
    %2445 = vmatprep.subr.mxu0 0.0
    %2446 = vmatpush1.msra.mxu0 %v2401
    %2447 = vmatprep.subr.mxu0 0.0
    %2448 = vmatpush1.msra.mxu0 %v2402
    %2449 = vmatprep.subr.mxu0 0.0
    %2450 = vmatpush1.msra.mxu0 %v2403
    %2451 = vmatprep.subr.mxu0 0.0
    %2452 = vmatpush1.msra.mxu0 %v2404
    %2453 = vmatprep.subr.mxu0 0.0
    %2454 = vmatpush1.msra.mxu0 %v2405
    %2455 = vmatprep.subr.mxu0 0.0
    %2456 = vmatpush1.msra.mxu0 %v2406
    %2457 = vmatprep.subr.mxu0 0.0
    %2458 = vmatpush1.msra.mxu0 %v2407
    %2459 = vmatprep.subr.mxu0 0.0
    %2460 = vmatpush1.msra.mxu0 %v2408
    %2461 = vmatprep.subr.mxu0 0.0
    %2462 = vmatpush1.msra.mxu0 %v2409
    %2463 = vmatprep.subr.mxu0 0.0
    %2464 = vmatpush1.msra.mxu0 %v2410
    %2465 = vmatprep.subr.mxu0 0.0
    %2466 = vmatpush1.msra.mxu0 0.0
    %2467 = vmatprep.subr.mxu0 0.0
    %2468 = vmatpush1.msra.mxu0 0.0
    %2469 = vmatprep.subr.mxu0 0.0
    %2470 = vmatpush1.msra.mxu0 0.0
    %2471 = vmatprep.subr.mxu0 0.0
    %2472 = vmatpush1.msra.mxu0 0.0
    %2473 = vmatprep.subr.mxu0 0.0
    %2474 = vmatpush1.msra.mxu0 0.0
    %2475 = vmatprep.subr.mxu0 0.0
    %2476 = vmatpush1.msra.mxu0 0.0
    %2477 = vmatprep.subr.mxu0 0.0
    %2478 = vmatpush1.msra.mxu0 0.0
    %2479 = vmatprep.subr.mxu0 0.0
    %2480 = vmatpush1.msra.mxu0 0.0
    %2481 = vmatprep.subr.mxu0 0.0
    %2482 = vmatpush1.msra.mxu0 0.0
    %2483 = vmatprep.subr.mxu0 0.0
    %2484 = vmatpush1.msra.mxu0 0.0
    %2485 = vmatprep.subr.mxu0 0.0
    %2486 = vmatpush1.msra.mxu0 0.0
    %2487 = vmatprep.subr.mxu0 0.0
    %2488 = vmatpush1.msra.mxu0 0.0
    %2489 = vmatprep.subr.mxu0 0.0
    %2490 = vmatpush1.msra.mxu0 0.0
    %2491 = vmatprep.subr.mxu0 0.0
    %2492 = vmatpush1.msra.mxu0 0.0
    %2493 = vmatprep.subr.mxu0 0.0
    %2494 = vmatpush1.msra.mxu0 0.0
    %2495 = vmatprep.subr.mxu0 0.0
    %2496 = vmatpush1.msra.mxu0 0.0
    %2497 = vmatprep.subr.mxu0 0.0
    %2498 = vmatpush1.msra.mxu0 0.0
    %2499 = vmatprep.subr.mxu0 0.0
    %2500 = vmatpush1.msra.mxu0 0.0
    %2501 = vmatprep.subr.mxu0 0.0
    %2502 = vmatpush1.msra.mxu0 0.0
    %2503 = vmatprep.subr.mxu0 0.0
    %2504 = vmatpush1.msra.mxu0 0.0
    %2505 = vmatprep.subr.mxu0 0.0
    %2506 = vmatpush1.msra.mxu0 0.0
    %2507 = vmatprep.subr.mxu0 0.0
    %2508 = vmatpush1.msra.mxu0 0.0
    %2509 = vmatprep.mubr.f32.mxu0 0.0
    %2510 = vmatmul.mubr.f32.gmra.mrb[0].mxu0 %v2412
    %v2511 = vpop.f32.mrb[0].mxu0
    %v2512 = vadd.f32 0.0, %v2511
    %v2513 = vpop.f32.mrb[0].mxu0
    %2514 = vmatprep.mubr.f32.mxu0 0.0
    %2515 = vmatmul.mubr.f32.gmra.mrb[0].mxu0 %v2414
    %v2516 = vpop.f32.mrb[0].mxu0
    %v2517 = vadd.f32 0.0, %v2516
    %v2518 = vpop.f32.mrb[0].mxu0
    %2519 = vmatprep.mubr.f32.mxu0 0.0
    %2520 = vmatmul.mubr.f32.gmra.mrb[0].mxu0 %v2416
    %v2521 = vpop.f32.mrb[0].mxu0
    %v2522 = vadd.f32 0.0, %v2521
    %v2523 = vpop.f32.mrb[0].mxu0
    %2524 = vmatprep.mubr.f32.mxu0 0.0
    %2525 = vmatmul.mubr.f32.gmra.mrb[0].mxu0 %v2418
    %v2526 = vpop.f32.mrb[0].mxu0
    %v2527 = vadd.f32 0.0, %v2526
    %v2528 = vpop.f32.mrb[0].mxu0
    %2529 = vmatprep.mubr.f32.mxu0 0.0
    %2530 = vmatmul.mubr.f32.gmra.mrb[0].mxu0 %v2420
    %v2531 = vpop.f32.mrb[0].mxu0
    %v2532 = vadd.f32 0.0, %v2531
    %v2533 = vpop.f32.mrb[0].mxu0
    %2534 = vmatprep.mubr.f32.mxu0 0.0
    %2535 = vmatmul.mubr.f32.gmra.mrb[0].mxu0 %v2422
    %v2536 = vpop.f32.mrb[0].mxu0
    %v2537 = vadd.f32 0.0, %v2536
    %v2538 = vpop.f32.mrb[0].mxu0
    %2539 = vmatprep.mubr.f32.mxu0 0.0
    %2540 = vmatmul.mubr.f32.gmra.mrb[0].mxu0 %v2424
    %v2541 = vpop.f32.mrb[0].mxu0
    %v2542 = vadd.f32 0.0, %v2541
    %v2543 = vpop.f32.mrb[0].mxu0
    %2544 = vmatprep.mubr.f32.mxu0 0.0
    %2545 = vmatmul.mubr.f32.gmra.mrb[0].mxu0 %v2426
    %v2546 = vpop.f32.mrb[0].mxu0
    %v2547 = vadd.f32 0.0, %v2546
    %v2548 = vpop.f32.mrb[0].mxu0
    %2549 = vmatprep.mubr.f32.mxu0 0.0
    %2550 = vmatmul.mubr.f32.gmra.mrb[0].mxu0 %v2428
    %v2551 = vpop.f32.mrb[0].mxu0
    %v2552 = vadd.f32 0.0, %v2551
    %v2553 = vpop.f32.mrb[0].mxu0
    %2554 = vmatprep.mubr.f32.mxu0 0.0
    %2555 = vmatmul.mubr.f32.gmra.mrb[0].mxu0 %v2430
    %v2556 = vpop.f32.mrb[0].mxu0
    %v2557 = vadd.f32 0.0, %v2556
    %v2558 = vpop.f32.mrb[0].mxu0
    %2559 = vmatprep.mubr.f32.mxu0 0.0
    %2560 = vmatmul.mubr.f32.gmra.mrb[0].mxu0 %v2432
    %v2561 = vpop.f32.mrb[0].mxu0
    %v2562 = vadd.f32 0.0, %v2561
    %v2563 = vpop.f32.mrb[0].mxu0
    %2564 = vmatprep.mubr.f32.mxu0 0.0
    %2565 = vmatmul.mubr.f32.gmra.mrb[0].mxu0 %v2434
    %v2566 = vpop.f32.mrb[0].mxu0
    %v2567 = vadd.f32 0.0, %v2566
    %v2568 = vpop.f32.mrb[0].mxu0
    %2569 = vmatprep.mubr.f32.mxu0 0.0
    %2570 = vmatmul.mubr.f32.gmra.mrb[0].mxu0 %v2436
    %v2571 = vpop.f32.mrb[0].mxu0
    %v2572 = vadd.f32 0.0, %v2571
    %v2573 = vpop.f32.mrb[0].mxu0
    %2574 = vmatprep.mubr.f32.mxu0 0.0
    %2575 = vmatmul.mubr.f32.gmra.mrb[0].mxu0 %v2438
    %v2576 = vpop.f32.mrb[0].mxu0
    %v2577 = vadd.f32 0.0, %v2576
    %v2578 = vpop.f32.mrb[0].mxu0
    %2579 = vmatprep.mubr.f32.mxu0 0.0
    %2580 = vmatmul.mubr.f32.gmra.mrb[0].mxu0 %v2440
    %v2581 = vpop.f32.mrb[0].mxu0
    %v2582 = vadd.f32 0.0, %v2581
    %v2583 = vpop.f32.mrb[0].mxu0
    %2584 = vmatprep.mubr.f32.mxu0 0.0
    %2585 = vmatmul.mubr.f32.gmra.mrb[0].mxu0 %v2443
    %v2586 = vpop.f32.mrb[0].mxu0
    %v2587 = vadd.f32 0.0, %v2586
    %v2588 = vpop.f32.mrb[0].mxu0
    %2589 = vdwg.mxu0
    %v2590 = vsel %vm2411, %v2325, 0
    %v2592 = vsel %vm2411, %v2326, 0
    %v2594 = vsel %vm2411, %v2327, 0
    %v2596 = vsel %vm2411, %v2328, 0
    %v2598 = vsel %vm2411, %v2329, 0
    %v2600 = vsel %vm2411, %v2330, 0
    %v2602 = vsel %vm2411, %v2331, 0
    %v2604 = vsel %vm2411, %v2332, 0
    %v2606 = vsel %vm2411, %v2333, 0
    %v2608 = vsel %vm2411, %v2334, 0
    %v2610 = vsel %vm2411, %v2335, 0
    %v2612 = vsel %vm2411, %v2336, 0
    %v2614 = vsel %vm2411, %v2337, 0
    %v2616 = vsel %vm2411, %v2338, 0
    %v2618 = vsel %vm2411, %v2339, 0
    %v2620 = vsel %vm2411, %v2340, 0
    %2622 = vmatprep.subr.mxu0 0.0
    %2623 = vmatpush1.msra.mxu0 %v2341
    %2624 = vmatprep.subr.mxu0 0.0
    %2625 = vmatpush1.msra.mxu0 %v2342
    %2626 = vmatprep.subr.mxu0 0.0
    %2627 = vmatpush1.msra.mxu0 %v2343
    %2628 = vmatprep.subr.mxu0 0.0
    %2629 = vmatpush1.msra.mxu0 %v2344
    %2630 = vmatprep.subr.mxu0 0.0
    %2631 = vmatpush1.msra.mxu0 %v2345
    %2632 = vmatprep.subr.mxu0 0.0
    %2633 = vmatpush1.msra.mxu0 %v2346
    %2634 = vmatprep.subr.mxu0 0.0
    %2635 = vmatpush1.msra.mxu0 %v2347
    %2636 = vmatprep.subr.mxu0 0.0
    %2637 = vmatpush1.msra.mxu0 %v2348
    %2638 = vmatprep.subr.mxu0 0.0
    %2639 = vmatpush1.msra.mxu0 %v2349
    %2640 = vmatprep.subr.mxu0 0.0
    %2641 = vmatpush1.msra.mxu0 %v2350
    %2642 = vmatprep.subr.mxu0 0.0
    %2643 = vmatpush1.msra.mxu0 0.0
    %2644 = vmatprep.subr.mxu0 0.0
    %2645 = vmatpush1.msra.mxu0 0.0
    %2646 = vmatprep.subr.mxu0 0.0
    %2647 = vmatpush1.msra.mxu0 0.0
    %2648 = vmatprep.subr.mxu0 0.0
    %2649 = vmatpush1.msra.mxu0 0.0
    %2650 = vmatprep.subr.mxu0 0.0
    %2651 = vmatpush1.msra.mxu0 0.0
    %2652 = vmatprep.subr.mxu0 0.0
    %2653 = vmatpush1.msra.mxu0 0.0
    %2654 = vmatprep.subr.mxu0 0.0
    %2655 = vmatpush1.msra.mxu0 0.0
    %2656 = vmatprep.subr.mxu0 0.0
    %2657 = vmatpush1.msra.mxu0 0.0
    %2658 = vmatprep.subr.mxu0 0.0
    %2659 = vmatpush1.msra.mxu0 0.0
    %2660 = vmatprep.subr.mxu0 0.0
    %2661 = vmatpush1.msra.mxu0 0.0
    %2662 = vmatprep.subr.mxu0 0.0
    %2663 = vmatpush1.msra.mxu0 0.0
    %2664 = vmatprep.subr.mxu0 0.0
    %2665 = vmatpush1.msra.mxu0 0.0
    %2666 = vmatprep.subr.mxu0 0.0
    %2667 = vmatpush1.msra.mxu0 0.0
    %2668 = vmatprep.subr.mxu0 0.0
    %2669 = vmatpush1.msra.mxu0 0.0
    %2670 = vmatprep.subr.mxu0 0.0
    %2671 = vmatpush1.msra.mxu0 0.0
    %2672 = vmatprep.subr.mxu0 0.0
    %2673 = vmatpush1.msra.mxu0 0.0
    %2674 = vmatprep.subr.mxu0 0.0
    %2675 = vmatpush1.msra.mxu0 0.0
    %2676 = vmatprep.subr.mxu0 0.0
    %2677 = vmatpush1.msra.mxu0 0.0
    %2678 = vmatprep.subr.mxu0 0.0
    %2679 = vmatpush1.msra.mxu0 0.0
    %2680 = vmatprep.subr.mxu0 0.0
    %2681 = vmatpush1.msra.mxu0 0.0
    %2682 = vmatprep.subr.mxu0 0.0
    %2683 = vmatpush1.msra.mxu0 0.0
    %2684 = vmatprep.subr.mxu0 0.0
    %2685 = vmatpush1.msra.mxu0 0.0
    %2686 = vmatprep.mubr.f32.mxu0 0.0
    %2687 = vmatmul.mubr.f32.gmra.mrb[0].mxu0 %v2590
    %v2688 = vpop.f32.mrb[0].mxu0
    %v2689 = vadd.f32 %v2512, %v2688
    %v2690 = vpop.f32.mrb[0].mxu0
    %2691 = vmatprep.mubr.f32.mxu0 0.0
    %2692 = vmatmul.mubr.f32.gmra.mrb[0].mxu0 %v2592
    %v2693 = vpop.f32.mrb[0].mxu0
    %v2694 = vadd.f32 %v2517, %v2693
    %v2695 = vpop.f32.mrb[0].mxu0
    %2696 = vmatprep.mubr.f32.mxu0 0.0
    %2697 = vmatmul.mubr.f32.gmra.mrb[0].mxu0 %v2594
    %v2698 = vpop.f32.mrb[0].mxu0
    %v2699 = vadd.f32 %v2522, %v2698
    %v2700 = vpop.f32.mrb[0].mxu0
    %2701 = vmatprep.mubr.f32.mxu0 0.0
    %2702 = vmatmul.mubr.f32.gmra.mrb[0].mxu0 %v2596
    %v2703 = vpop.f32.mrb[0].mxu0
    %v2704 = vadd.f32 %v2527, %v2703
    %v2705 = vpop.f32.mrb[0].mxu0
    %2706 = vmatprep.mubr.f32.mxu0 0.0
    %2707 = vmatmul.mubr.f32.gmra.mrb[0].mxu0 %v2598
    %v2708 = vpop.f32.mrb[0].mxu0
    %v2709 = vadd.f32 %v2532, %v2708
    %v2710 = vpop.f32.mrb[0].mxu0
    %2711 = vmatprep.mubr.f32.mxu0 0.0
    %2712 = vmatmul.mubr.f32.gmra.mrb[0].mxu0 %v2600
    %v2713 = vpop.f32.mrb[0].mxu0
    %v2714 = vadd.f32 %v2537, %v2713
    %v2715 = vpop.f32.mrb[0].mxu0
    %2716 = vmatprep.mubr.f32.mxu0 0.0
    %2717 = vmatmul.mubr.f32.gmra.mrb[0].mxu0 %v2602
    %v2718 = vpop.f32.mrb[0].mxu0
    %v2719 = vadd.f32 %v2542, %v2718
    %v2720 = vpop.f32.mrb[0].mxu0
    %2721 = vmatprep.mubr.f32.mxu0 0.0
    %2722 = vmatmul.mubr.f32.gmra.mrb[0].mxu0 %v2604
    %v2723 = vpop.f32.mrb[0].mxu0
    %v2724 = vadd.f32 %v2547, %v2723
    %v2725 = vpop.f32.mrb[0].mxu0
    %2726 = vmatprep.mubr.f32.mxu0 0.0
    %2727 = vmatmul.mubr.f32.gmra.mrb[0].mxu0 %v2606
    %v2728 = vpop.f32.mrb[0].mxu0
    %v2729 = vadd.f32 %v2552, %v2728
    %v2730 = vpop.f32.mrb[0].mxu0
    %2731 = vmatprep.mubr.f32.mxu0 0.0
    %2732 = vmatmul.mubr.f32.gmra.mrb[0].mxu0 %v2608
    %v2733 = vpop.f32.mrb[0].mxu0
    %v2734 = vadd.f32 %v2557, %v2733
    %v2735 = vpop.f32.mrb[0].mxu0
    %2736 = vmatprep.mubr.f32.mxu0 0.0
    %2737 = vmatmul.mubr.f32.gmra.mrb[0].mxu0 %v2610
    %v2738 = vpop.f32.mrb[0].mxu0
    %v2739 = vadd.f32 %v2562, %v2738
    %v2740 = vpop.f32.mrb[0].mxu0
    %2741 = vmatprep.mubr.f32.mxu0 0.0
    %2742 = vmatmul.mubr.f32.gmra.mrb[0].mxu0 %v2612
    %v2743 = vpop.f32.mrb[0].mxu0
    %v2744 = vadd.f32 %v2567, %v2743
    %v2745 = vpop.f32.mrb[0].mxu0
    %2746 = vmatprep.mubr.f32.mxu0 0.0
    %2747 = vmatmul.mubr.f32.gmra.mrb[0].mxu0 %v2614
    %v2748 = vpop.f32.mrb[0].mxu0
    %v2749 = vadd.f32 %v2572, %v2748
    %v2750 = vpop.f32.mrb[0].mxu0
    %2751 = vmatprep.mubr.f32.mxu0 0.0
    %2752 = vmatmul.mubr.f32.gmra.mrb[0].mxu0 %v2616
    %v2753 = vpop.f32.mrb[0].mxu0
    %v2754 = vadd.f32 %v2577, %v2753
    %v2755 = vpop.f32.mrb[0].mxu0
    %2756 = vmatprep.mubr.f32.mxu0 0.0
    %2757 = vmatmul.mubr.f32.gmra.mrb[0].mxu0 %v2618
    %v2758 = vpop.f32.mrb[0].mxu0
    %v2759 = vadd.f32 %v2582, %v2758
    %v2760 = vpop.f32.mrb[0].mxu0
    %2761 = vmatprep.mubr.f32.mxu0 0.0
    %2762 = vmatmul.mubr.f32.gmra.mrb[0].mxu0 %v2620
    %v2763 = vpop.f32.mrb[0].mxu0
    %v2764 = vadd.f32 %v2587, %v2763
    %v2765 = vpop.f32.mrb[0].mxu0
    %2766 = vdwg.mxu0
    %v2767 = vrot.slane %v2325, 4
    %v2768 = vrot.slane %v2326, 4
    %v2769 = vsel %vm1988, %v2767, %v2768
    %v2770 = vrot.slane %v2327, 4
    %v2771 = vsel %vm1988, %v2768, %v2770
    %v2772 = vrot.slane %v2328, 4
    %v2773 = vsel %vm1988, %v2770, %v2772
    %v2774 = vrot.slane %v2329, 4
    %v2775 = vsel %vm1988, %v2772, %v2774
    %v2776 = vrot.slane %v2330, 4
    %v2777 = vsel %vm1988, %v2774, %v2776
    %v2778 = vrot.slane %v2331, 4
    %v2779 = vsel %vm1988, %v2776, %v2778
    %v2780 = vrot.slane %v2332, 4
    %v2781 = vsel %vm1988, %v2778, %v2780
    %v2782 = vrot.slane %v2333, 4
    %v2783 = vsel %vm1988, %v2780, %v2782
    %v2784 = vrot.slane %v2334, 4
    %v2785 = vsel %vm1988, %v2782, %v2784
    %v2786 = vrot.slane %v2335, 4
    %v2787 = vsel %vm1988, %v2784, %v2786
    %v2788 = vrot.slane %v2336, 4
    %v2789 = vsel %vm1988, %v2786, %v2788
    %v2790 = vrot.slane %v2337, 4
    %v2791 = vsel %vm1988, %v2788, %v2790
    %v2792 = vrot.slane %v2338, 4
    %v2793 = vsel %vm1988, %v2790, %v2792
    %v2794 = vrot.slane %v2339, 4
    %v2795 = vsel %vm1988, %v2792, %v2794
    %v2796 = vrot.slane %v2340, 4
    %v2797 = vsel %vm1988, %v2794, %v2796
    %v2800 = vsel %vm1988, %v2796, %v2767
    %v2801 = vld [vmem:[#allocation20] sm:$0xff]
    %v2802 = vld [vmem:[#allocation20 + $0x8] sm:$0xff]
    %v2803 = vld [vmem:[#allocation20 + $0x10] sm:$0xff]
    %v2804 = vld [vmem:[#allocation20 + $0x18] sm:$0xff]
    %v2805 = vld [vmem:[#allocation20 + $0x20] sm:$0xff]
    %v2806 = vld [vmem:[#allocation20 + $0x28] sm:$0xff]
    %v2807 = vld [vmem:[#allocation20 + $0x30] sm:$0xff]
    %v2808 = vld [vmem:[#allocation20 + $0x38] sm:$0xff]
    %v2809 = vld [vmem:[#allocation20 + $0x40] sm:$0xff]
    %v2810 = vld [vmem:[#allocation20 + $0x48] sm:$0xff]
    %v2811 = vsel %vm2411, %v2769, 0
    %v2813 = vsel %vm2411, %v2771, 0
    %v2815 = vsel %vm2411, %v2773, 0
    %v2817 = vsel %vm2411, %v2775, 0
    %v2819 = vsel %vm2411, %v2777, 0
    %v2821 = vsel %vm2411, %v2779, 0
    %v2823 = vsel %vm2411, %v2781, 0
    %v2825 = vsel %vm2411, %v2783, 0
    %v2827 = vsel %vm2411, %v2785, 0
    %v2829 = vsel %vm2411, %v2787, 0
    %v2831 = vsel %vm2411, %v2789, 0
    %v2833 = vsel %vm2411, %v2791, 0
    %v2835 = vsel %vm2411, %v2793, 0
    %v2837 = vsel %vm2411, %v2795, 0
    %v2839 = vsel %vm2411, %v2797, 0
    %v2842 = vsel %vm2411, %v2800, 0
    %2844 = vmatprep.subr.mxu0 0.0
    %2845 = vmatpush1.msra.mxu0 %v2801
    %2846 = vmatprep.subr.mxu0 0.0
    %2847 = vmatpush1.msra.mxu0 %v2802
    %2848 = vmatprep.subr.mxu0 0.0
    %2849 = vmatpush1.msra.mxu0 %v2803
    %2850 = vmatprep.subr.mxu0 0.0
    %2851 = vmatpush1.msra.mxu0 %v2804
    %2852 = vmatprep.subr.mxu0 0.0
    %2853 = vmatpush1.msra.mxu0 %v2805
    %2854 = vmatprep.subr.mxu0 0.0
    %2855 = vmatpush1.msra.mxu0 %v2806
    %2856 = vmatprep.subr.mxu0 0.0
    %2857 = vmatpush1.msra.mxu0 %v2807
    %2858 = vmatprep.subr.mxu0 0.0
    %2859 = vmatpush1.msra.mxu0 %v2808
    %2860 = vmatprep.subr.mxu0 0.0
    %2861 = vmatpush1.msra.mxu0 %v2809
    %2862 = vmatprep.subr.mxu0 0.0
    %2863 = vmatpush1.msra.mxu0 %v2810
    %2864 = vmatprep.subr.mxu0 0.0
    %2865 = vmatpush1.msra.mxu0 0.0
    %2866 = vmatprep.subr.mxu0 0.0
    %2867 = vmatpush1.msra.mxu0 0.0
    %2868 = vmatprep.subr.mxu0 0.0
    %2869 = vmatpush1.msra.mxu0 0.0
    %2870 = vmatprep.subr.mxu0 0.0
    %2871 = vmatpush1.msra.mxu0 0.0
    %2872 = vmatprep.subr.mxu0 0.0
    %2873 = vmatpush1.msra.mxu0 0.0
    %2874 = vmatprep.subr.mxu0 0.0
    %2875 = vmatpush1.msra.mxu0 0.0
    %2876 = vmatprep.subr.mxu0 0.0
    %2877 = vmatpush1.msra.mxu0 0.0
    %2878 = vmatprep.subr.mxu0 0.0
    %2879 = vmatpush1.msra.mxu0 0.0
    %2880 = vmatprep.subr.mxu0 0.0
    %2881 = vmatpush1.msra.mxu0 0.0
    %2882 = vmatprep.subr.mxu0 0.0
    %2883 = vmatpush1.msra.mxu0 0.0
    %2884 = vmatprep.subr.mxu0 0.0
    %2885 = vmatpush1.msra.mxu0 0.0
    %2886 = vmatprep.subr.mxu0 0.0
    %2887 = vmatpush1.msra.mxu0 0.0
    %2888 = vmatprep.subr.mxu0 0.0
    %2889 = vmatpush1.msra.mxu0 0.0
    %2890 = vmatprep.subr.mxu0 0.0
    %2891 = vmatpush1.msra.mxu0 0.0
    %2892 = vmatprep.subr.mxu0 0.0
    %2893 = vmatpush1.msra.mxu0 0.0
    %2894 = vmatprep.subr.mxu0 0.0
    %2895 = vmatpush1.msra.mxu0 0.0
    %2896 = vmatprep.subr.mxu0 0.0
    %2897 = vmatpush1.msra.mxu0 0.0
    %2898 = vmatprep.subr.mxu0 0.0
    %2899 = vmatpush1.msra.mxu0 0.0
    %2900 = vmatprep.subr.mxu0 0.0
    %2901 = vmatpush1.msra.mxu0 0.0
    %2902 = vmatprep.subr.mxu0 0.0
    %2903 = vmatpush1.msra.mxu0 0.0
    %2904 = vmatprep.subr.mxu0 0.0
    %2905 = vmatpush1.msra.mxu0 0.0
    %2906 = vmatprep.subr.mxu0 0.0
    %2907 = vmatpush1.msra.mxu0 0.0
    %2908 = vmatprep.mubr.f32.mxu0 0.0
    %2909 = vmatmul.mubr.f32.gmra.mrb[0].mxu0 %v2811
    %v2910 = vpop.f32.mrb[0].mxu0
    %v2911 = vadd.f32 0.0, %v2910
    %v2912 = vpop.f32.mrb[0].mxu0
    %2913 = vmatprep.mubr.f32.mxu0 0.0
    %2914 = vmatmul.mubr.f32.gmra.mrb[0].mxu0 %v2813
    %v2915 = vpop.f32.mrb[0].mxu0
    %v2916 = vadd.f32 0.0, %v2915
    %v2917 = vpop.f32.mrb[0].mxu0
    %2918 = vmatprep.mubr.f32.mxu0 0.0
    %2919 = vmatmul.mubr.f32.gmra.mrb[0].mxu0 %v2815
    %v2920 = vpop.f32.mrb[0].mxu0
    %v2921 = vadd.f32 0.0, %v2920
    %v2922 = vpop.f32.mrb[0].mxu0
    %2923 = vmatprep.mubr.f32.mxu0 0.0
    %2924 = vmatmul.mubr.f32.gmra.mrb[0].mxu0 %v2817
    %v2925 = vpop.f32.mrb[0].mxu0
    %v2926 = vadd.f32 0.0, %v2925
    %v2927 = vpop.f32.mrb[0].mxu0
    %2928 = vmatprep.mubr.f32.mxu0 0.0
    %2929 = vmatmul.mubr.f32.gmra.mrb[0].mxu0 %v2819
    %v2930 = vpop.f32.mrb[0].mxu0
    %v2931 = vadd.f32 0.0, %v2930
    %v2932 = vpop.f32.mrb[0].mxu0
    %2933 = vmatprep.mubr.f32.mxu0 0.0
    %2934 = vmatmul.mubr.f32.gmra.mrb[0].mxu0 %v2821
    %v2935 = vpop.f32.mrb[0].mxu0
    %v2936 = vadd.f32 0.0, %v2935
    %v2937 = vpop.f32.mrb[0].mxu0
    %2938 = vmatprep.mubr.f32.mxu0 0.0
    %2939 = vmatmul.mubr.f32.gmra.mrb[0].mxu0 %v2823
    %v2940 = vpop.f32.mrb[0].mxu0
    %v2941 = vadd.f32 0.0, %v2940
    %v2942 = vpop.f32.mrb[0].mxu0
    %2943 = vmatprep.mubr.f32.mxu0 0.0
    %2944 = vmatmul.mubr.f32.gmra.mrb[0].mxu0 %v2825
    %v2945 = vpop.f32.mrb[0].mxu0
    %v2946 = vadd.f32 0.0, %v2945
    %v2947 = vpop.f32.mrb[0].mxu0
    %2948 = vmatprep.mubr.f32.mxu0 0.0
    %2949 = vmatmul.mubr.f32.gmra.mrb[0].mxu0 %v2827
    %v2950 = vpop.f32.mrb[0].mxu0
    %v2951 = vadd.f32 0.0, %v2950
    %v2952 = vpop.f32.mrb[0].mxu0
    %2953 = vmatprep.mubr.f32.mxu0 0.0
    %2954 = vmatmul.mubr.f32.gmra.mrb[0].mxu0 %v2829
    %v2955 = vpop.f32.mrb[0].mxu0
    %v2956 = vadd.f32 0.0, %v2955
    %v2957 = vpop.f32.mrb[0].mxu0
    %2958 = vmatprep.mubr.f32.mxu0 0.0
    %2959 = vmatmul.mubr.f32.gmra.mrb[0].mxu0 %v2831
    %v2960 = vpop.f32.mrb[0].mxu0
    %v2961 = vadd.f32 0.0, %v2960
    %v2962 = vpop.f32.mrb[0].mxu0
    %2963 = vmatprep.mubr.f32.mxu0 0.0
    %2964 = vmatmul.mubr.f32.gmra.mrb[0].mxu0 %v2833
    %v2965 = vpop.f32.mrb[0].mxu0
    %v2966 = vadd.f32 0.0, %v2965
    %v2967 = vpop.f32.mrb[0].mxu0
    %2968 = vmatprep.mubr.f32.mxu0 0.0
    %2969 = vmatmul.mubr.f32.gmra.mrb[0].mxu0 %v2835
    %v2970 = vpop.f32.mrb[0].mxu0
    %v2971 = vadd.f32 0.0, %v2970
    %v2972 = vpop.f32.mrb[0].mxu0
    %2973 = vmatprep.mubr.f32.mxu0 0.0
    %2974 = vmatmul.mubr.f32.gmra.mrb[0].mxu0 %v2837
    %v2975 = vpop.f32.mrb[0].mxu0
    %v2976 = vadd.f32 0.0, %v2975
    %v2977 = vpop.f32.mrb[0].mxu0
    %2978 = vmatprep.mubr.f32.mxu0 0.0
    %2979 = vmatmul.mubr.f32.gmra.mrb[0].mxu0 %v2839
    %v2980 = vpop.f32.mrb[0].mxu0
    %v2981 = vadd.f32 0.0, %v2980
    %v2982 = vpop.f32.mrb[0].mxu0
    %2983 = vmatprep.mubr.f32.mxu0 0.0
    %2984 = vmatmul.mubr.f32.gmra.mrb[0].mxu0 %v2842
    %v2985 = vpop.f32.mrb[0].mxu0
    %v2986 = vadd.f32 0.0, %v2985
    %v2987 = vpop.f32.mrb[0].mxu0
    %2988 = vdwg.mxu0
    %v2989 = vadd.f32 %v2689, %v2911
    %v2990 = vadd.f32 %v2694, %v2916
    %v2991 = vadd.f32 %v2699, %v2921
    %v2992 = vadd.f32 %v2704, %v2926
    %v2993 = vadd.f32 %v2709, %v2931
    %v2994 = vadd.f32 %v2714, %v2936
    %v2995 = vadd.f32 %v2719, %v2941
    %v2996 = vadd.f32 %v2724, %v2946
    %v2997 = vadd.f32 %v2729, %v2951
    %v2998 = vadd.f32 %v2734, %v2956
    %v2999 = vadd.f32 %v2739, %v2961
    %v3000 = vadd.f32 %v2744, %v2966
    %v3001 = vadd.f32 %v2749, %v2971
    %v3002 = vadd.f32 %v2754, %v2976
    %v3003 = vadd.f32 %v2759, %v2981
    %v3004 = vadd.f32 %v2764, %v2986
    %v3005 = vld [vmem:[#allocation22] sm:$0x1]
    %v3007 = vlaneseq
    %v3008 = vshrl.u32 %v3007, 7
    %v3009 = vsub.s32 0, %v3008
    %v3010 = vrot.slane %v3005, %v3009
    %v3012 = vadd.f32 %v2989, %v3010
    %v3013 = vadd.f32 %v2990, %v3010
    %v3014 = vadd.f32 %v2991, %v3010
    %v3015 = vadd.f32 %v2992, %v3010
    %v3016 = vadd.f32 %v2993, %v3010
    %v3017 = vadd.f32 %v2994, %v3010
    %v3018 = vadd.f32 %v2995, %v3010
    %v3019 = vadd.f32 %v2996, %v3010
    %v3020 = vadd.f32 %v2997, %v3010
    %v3021 = vadd.f32 %v2998, %v3010
    %v3022 = vadd.f32 %v2999, %v3010
    %v3023 = vadd.f32 %v3000, %v3010
    %v3024 = vadd.f32 %v3001, %v3010
    %v3025 = vadd.f32 %v3002, %v3010
    %v3026 = vadd.f32 %v3003, %v3010
    %v3027 = vadd.f32 %v3004, %v3010
    %v3028 = vmul.f32 %v3012, 0.01
    %v3029 = vmul.f32 %v3013, 0.01
    %v3030 = vmul.f32 %v3014, 0.01
    %v3031 = vmul.f32 %v3015, 0.01
    %v3032 = vmul.f32 %v3016, 0.01
    %v3033 = vmul.f32 %v3017, 0.01
    %v3034 = vmul.f32 %v3018, 0.01
    %v3035 = vmul.f32 %v3019, 0.01
    %v3036 = vmul.f32 %v3020, 0.01
    %v3037 = vmul.f32 %v3021, 0.01
    %v3038 = vmul.f32 %v3022, 0.01
    %v3039 = vmul.f32 %v3023, 0.01
    %v3040 = vmul.f32 %v3024, 0.01
    %v3041 = vmul.f32 %v3025, 0.01
    %v3042 = vmul.f32 %v3026, 0.01
    %v3043 = vmul.f32 %v3027, 0.01
    %v3044 = vmax.f32 %v3012, %v3028
    %v3045 = vmax.f32 %v3013, %v3029
    %v3046 = vmax.f32 %v3014, %v3030
    %v3047 = vmax.f32 %v3015, %v3031
    %v3048 = vmax.f32 %v3016, %v3032
    %v3049 = vmax.f32 %v3017, %v3033
    %v3050 = vmax.f32 %v3018, %v3034
    %v3051 = vmax.f32 %v3019, %v3035
    %v3052 = vmax.f32 %v3020, %v3036
    %v3053 = vmax.f32 %v3021, %v3037
    %v3054 = vmax.f32 %v3022, %v3038
    %v3055 = vmax.f32 %v3023, %v3039
    %v3056 = vmax.f32 %v3024, %v3040
    %v3057 = vmax.f32 %v3025, %v3041
    %v3058 = vmax.f32 %v3026, %v3042
    %v3059 = vmax.f32 %v3027, %v3043
    %v3060 = vld [vmem:[#allocation23] sm:$0xff]
    %v3061 = vld [vmem:[#allocation23 + $0x8] sm:$0xff]
    %v3062 = vld [vmem:[#allocation23 + $0x10] sm:$0xff]
    %v3063 = vld [vmem:[#allocation23 + $0x18] sm:$0xff]
    %v3064 = vld [vmem:[#allocation23 + $0x20] sm:$0xff]
    %v3065 = vld [vmem:[#allocation23 + $0x28] sm:$0xff]
    %v3066 = vld [vmem:[#allocation23 + $0x30] sm:$0xff]
    %v3067 = vld [vmem:[#allocation23 + $0x38] sm:$0xff]
    %v3068 = vld [vmem:[#allocation23 + $0x40] sm:$0xff]
    %v3069 = vld [vmem:[#allocation23 + $0x48] sm:$0xff]
    %v3070 = vld [vmem:[#allocation23 + $0x50] sm:$0xff]
    %v3071 = vld [vmem:[#allocation23 + $0x58] sm:$0xff]
    %v3072 = vld [vmem:[#allocation25] sm:$0x1]
    %v3074 = vlaneseq
    %v3075 = vshrl.u32 %v3074, 7
    %v3076 = vsub.s32 0, %v3075
    %v3077 = vrot.slane %v3072, %v3076
    %vm3079 = vcmask 785408
    %v3081 = vsel %vm3079, %v3044, 0
    %v3084 = vsel %vm3079, %v3045, 0
    %v3087 = vsel %vm3079, %v3046, 0
    %v3090 = vsel %vm3079, %v3047, 0
    %v3093 = vsel %vm3079, %v3048, 0
    %v3096 = vsel %vm3079, %v3049, 0
    %v3099 = vsel %vm3079, %v3050, 0
    %v3102 = vsel %vm3079, %v3051, 0
    %v3105 = vsel %vm3079, %v3052, 0
    %v3108 = vsel %vm3079, %v3053, 0
    %v3111 = vsel %vm3079, %v3054, 0
    %v3114 = vsel %vm3079, %v3055, 0
    %v3117 = vsel %vm3079, %v3056, 0
    %v3120 = vsel %vm3079, %v3057, 0
    %v3123 = vsel %vm3079, %v3058, 0
    %v3126 = vsel %vm3079, %v3059, 0
    %3128 = vmatprep.subr.mxu0 0.0
    %3129 = vmatpush1.msra.mxu0 %v3060
    %3130 = vmatprep.subr.mxu0 0.0
    %3131 = vmatpush1.msra.mxu0 %v3061
    %3132 = vmatprep.subr.mxu0 0.0
    %3133 = vmatpush1.msra.mxu0 %v3062
    %3134 = vmatprep.subr.mxu0 0.0
    %3135 = vmatpush1.msra.mxu0 %v3063
    %3136 = vmatprep.subr.mxu0 0.0
    %3137 = vmatpush1.msra.mxu0 %v3064
    %3138 = vmatprep.subr.mxu0 0.0
    %3139 = vmatpush1.msra.mxu0 %v3065
    %3140 = vmatprep.subr.mxu0 0.0
    %3141 = vmatpush1.msra.mxu0 %v3066
    %3142 = vmatprep.subr.mxu0 0.0
    %3143 = vmatpush1.msra.mxu0 %v3067
    %3144 = vmatprep.subr.mxu0 0.0
    %3145 = vmatpush1.msra.mxu0 %v3068
    %3146 = vmatprep.subr.mxu0 0.0
    %3147 = vmatpush1.msra.mxu0 %v3069
    %3148 = vmatprep.subr.mxu0 0.0
    %3149 = vmatpush1.msra.mxu0 %v3070
    %3150 = vmatprep.subr.mxu0 0.0
    %3151 = vmatpush1.msra.mxu0 %v3071
    %3152 = vmatprep.subr.mxu0 0.0
    %3153 = vmatpush1.msra.mxu0 0.0
    %3154 = vmatprep.subr.mxu0 0.0
    %3155 = vmatpush1.msra.mxu0 0.0
    %3156 = vmatprep.subr.mxu0 0.0
    %3157 = vmatpush1.msra.mxu0 0.0
    %3158 = vmatprep.subr.mxu0 0.0
    %3159 = vmatpush1.msra.mxu0 0.0
    %3160 = vmatprep.subr.mxu0 0.0
    %3161 = vmatpush1.msra.mxu0 0.0
    %3162 = vmatprep.subr.mxu0 0.0
    %3163 = vmatpush1.msra.mxu0 0.0
    %3164 = vmatprep.subr.mxu0 0.0
    %3165 = vmatpush1.msra.mxu0 0.0
    %3166 = vmatprep.subr.mxu0 0.0
    %3167 = vmatpush1.msra.mxu0 0.0
    %3168 = vmatprep.subr.mxu0 0.0
    %3169 = vmatpush1.msra.mxu0 0.0
    %3170 = vmatprep.subr.mxu0 0.0
    %3171 = vmatpush1.msra.mxu0 0.0
    %3172 = vmatprep.subr.mxu0 0.0
    %3173 = vmatpush1.msra.mxu0 0.0
    %3174 = vmatprep.subr.mxu0 0.0
    %3175 = vmatpush1.msra.mxu0 0.0
    %3176 = vmatprep.subr.mxu0 0.0
    %3177 = vmatpush1.msra.mxu0 0.0
    %3178 = vmatprep.subr.mxu0 0.0
    %3179 = vmatpush1.msra.mxu0 0.0
    %3180 = vmatprep.subr.mxu0 0.0
    %3181 = vmatpush1.msra.mxu0 0.0
    %3182 = vmatprep.subr.mxu0 0.0
    %3183 = vmatpush1.msra.mxu0 0.0
    %3184 = vmatprep.subr.mxu0 0.0
    %3185 = vmatpush1.msra.mxu0 0.0
    %3186 = vmatprep.subr.mxu0 0.0
    %3187 = vmatpush1.msra.mxu0 0.0
    %3188 = vmatprep.subr.mxu0 0.0
    %3189 = vmatpush1.msra.mxu0 0.0
    %3190 = vmatprep.subr.mxu0 0.0
    %3191 = vmatpush1.msra.mxu0 0.0
    %3192 = vmatprep.mubr.f32.mxu0 0.0
    %3193 = vmatmul.mubr.f32.gmra.mrb[0].mxu0 %v3081
    %v3194 = vpop.f32.mrb[0].mxu0
    %v3195 = vadd.f32 %v3077, %v3194
    %v3196 = vpop.f32.mrb[0].mxu0
    %3197 = vmatprep.mubr.f32.mxu0 0.0
    %3198 = vmatmul.mubr.f32.gmra.mrb[0].mxu0 %v3084
    %v3199 = vpop.f32.mrb[0].mxu0
    %v3200 = vadd.f32 %v3077, %v3199
    %v3201 = vpop.f32.mrb[0].mxu0
    %3202 = vmatprep.mubr.f32.mxu0 0.0
    %3203 = vmatmul.mubr.f32.gmra.mrb[0].mxu0 %v3087
    %v3204 = vpop.f32.mrb[0].mxu0
    %v3205 = vadd.f32 %v3077, %v3204
    %v3206 = vpop.f32.mrb[0].mxu0
    %3207 = vmatprep.mubr.f32.mxu0 0.0
    %3208 = vmatmul.mubr.f32.gmra.mrb[0].mxu0 %v3090
    %v3209 = vpop.f32.mrb[0].mxu0
    %v3210 = vadd.f32 %v3077, %v3209
    %v3211 = vpop.f32.mrb[0].mxu0
    %3212 = vmatprep.mubr.f32.mxu0 0.0
    %3213 = vmatmul.mubr.f32.gmra.mrb[0].mxu0 %v3093
    %v3214 = vpop.f32.mrb[0].mxu0
    %v3215 = vadd.f32 %v3077, %v3214
    %v3216 = vpop.f32.mrb[0].mxu0
    %3217 = vmatprep.mubr.f32.mxu0 0.0
    %3218 = vmatmul.mubr.f32.gmra.mrb[0].mxu0 %v3096
    %v3219 = vpop.f32.mrb[0].mxu0
    %v3220 = vadd.f32 %v3077, %v3219
    %v3221 = vpop.f32.mrb[0].mxu0
    %3222 = vmatprep.mubr.f32.mxu0 0.0
    %3223 = vmatmul.mubr.f32.gmra.mrb[0].mxu0 %v3099
    %v3224 = vpop.f32.mrb[0].mxu0
    %v3225 = vadd.f32 %v3077, %v3224
    %v3226 = vpop.f32.mrb[0].mxu0
    %3227 = vmatprep.mubr.f32.mxu0 0.0
    %3228 = vmatmul.mubr.f32.gmra.mrb[0].mxu0 %v3102
    %v3229 = vpop.f32.mrb[0].mxu0
    %v3230 = vadd.f32 %v3077, %v3229
    %v3231 = vpop.f32.mrb[0].mxu0
    %3232 = vmatprep.mubr.f32.mxu0 0.0
    %3233 = vmatmul.mubr.f32.gmra.mrb[0].mxu0 %v3105
    %v3234 = vpop.f32.mrb[0].mxu0
    %v3235 = vadd.f32 %v3077, %v3234
    %v3236 = vpop.f32.mrb[0].mxu0
    %3237 = vmatprep.mubr.f32.mxu0 0.0
    %3238 = vmatmul.mubr.f32.gmra.mrb[0].mxu0 %v3108
    %v3239 = vpop.f32.mrb[0].mxu0
    %v3240 = vadd.f32 %v3077, %v3239
    %v3241 = vpop.f32.mrb[0].mxu0
    %3242 = vmatprep.mubr.f32.mxu0 0.0
    %3243 = vmatmul.mubr.f32.gmra.mrb[0].mxu0 %v3111
    %v3244 = vpop.f32.mrb[0].mxu0
    %v3245 = vadd.f32 %v3077, %v3244
    %v3246 = vpop.f32.mrb[0].mxu0
    %3247 = vmatprep.mubr.f32.mxu0 0.0
    %3248 = vmatmul.mubr.f32.gmra.mrb[0].mxu0 %v3114
    %v3249 = vpop.f32.mrb[0].mxu0
    %v3250 = vadd.f32 %v3077, %v3249
    %v3251 = vpop.f32.mrb[0].mxu0
    %3252 = vmatprep.mubr.f32.mxu0 0.0
    %3253 = vmatmul.mubr.f32.gmra.mrb[0].mxu0 %v3117
    %v3254 = vpop.f32.mrb[0].mxu0
    %v3255 = vadd.f32 %v3077, %v3254
    %v3256 = vpop.f32.mrb[0].mxu0
    %3257 = vmatprep.mubr.f32.mxu0 0.0
    %3258 = vmatmul.mubr.f32.gmra.mrb[0].mxu0 %v3120
    %v3259 = vpop.f32.mrb[0].mxu0
    %v3260 = vadd.f32 %v3077, %v3259
    %v3261 = vpop.f32.mrb[0].mxu0
    %3262 = vmatprep.mubr.f32.mxu0 0.0
    %3263 = vmatmul.mubr.f32.gmra.mrb[0].mxu0 %v3123
    %v3264 = vpop.f32.mrb[0].mxu0
    %v3265 = vadd.f32 %v3077, %v3264
    %v3266 = vpop.f32.mrb[0].mxu0
    %3267 = vmatprep.mubr.f32.mxu0 0.0
    %3268 = vmatmul.mubr.f32.gmra.mrb[0].mxu0 %v3126
    %v3269 = vpop.f32.mrb[0].mxu0
    %v3270 = vadd.f32 %v3077, %v3269
    %v3271 = vpop.f32.mrb[0].mxu0
    %3272 = vdwg.mxu0
    %v3273 = vld [vmem:[#allocation26] sm:$0xff]
    %v3274 = vld [vmem:[#allocation26 + $0x8] sm:$0xff]
    %v3275 = vld [vmem:[#allocation26 + $0x10] sm:$0xff]
    %v3276 = vld [vmem:[#allocation26 + $0x18] sm:$0xff]
    %v3277 = vld [vmem:[#allocation26 + $0x20] sm:$0xff]
    %v3278 = vld [vmem:[#allocation26 + $0x28] sm:$0xff]
    %v3279 = vld [vmem:[#allocation26 + $0x30] sm:$0xff]
    %v3280 = vld [vmem:[#allocation26 + $0x38] sm:$0xff]
    %v3281 = vld [vmem:[#allocation26 + $0x40] sm:$0xff]
    %v3282 = vld [vmem:[#allocation26 + $0x48] sm:$0xff]
    %v3283 = vld [vmem:[#allocation26 + $0x50] sm:$0xff]
    %v3284 = vld [vmem:[#allocation26 + $0x58] sm:$0xff]
    %v3285 = vld [vmem:[#allocation28] sm:$0x1]
    %v3287 = vlaneseq
    %v3288 = vshrl.u32 %v3287, 7
    %v3289 = vsub.s32 0, %v3288
    %v3290 = vrot.slane %v3285, %v3289
    %3292 = vmatprep.subr.mxu0 0.0
    %3293 = vmatpush1.msra.mxu0 %v3273
    %3294 = vmatprep.subr.mxu0 0.0
    %3295 = vmatpush1.msra.mxu0 %v3274
    %3296 = vmatprep.subr.mxu0 0.0
    %3297 = vmatpush1.msra.mxu0 %v3275
    %3298 = vmatprep.subr.mxu0 0.0
    %3299 = vmatpush1.msra.mxu0 %v3276
    %3300 = vmatprep.subr.mxu0 0.0
    %3301 = vmatpush1.msra.mxu0 %v3277
    %3302 = vmatprep.subr.mxu0 0.0
    %3303 = vmatpush1.msra.mxu0 %v3278
    %3304 = vmatprep.subr.mxu0 0.0
    %3305 = vmatpush1.msra.mxu0 %v3279
    %3306 = vmatprep.subr.mxu0 0.0
    %3307 = vmatpush1.msra.mxu0 %v3280
    %3308 = vmatprep.subr.mxu0 0.0
    %3309 = vmatpush1.msra.mxu0 %v3281
    %3310 = vmatprep.subr.mxu0 0.0
    %3311 = vmatpush1.msra.mxu0 %v3282
    %3312 = vmatprep.subr.mxu0 0.0
    %3313 = vmatpush1.msra.mxu0 %v3283
    %3314 = vmatprep.subr.mxu0 0.0
    %3315 = vmatpush1.msra.mxu0 %v3284
    %3316 = vmatprep.subr.mxu0 0.0
    %3317 = vmatpush1.msra.mxu0 0.0
    %3318 = vmatprep.subr.mxu0 0.0
    %3319 = vmatpush1.msra.mxu0 0.0
    %3320 = vmatprep.subr.mxu0 0.0
    %3321 = vmatpush1.msra.mxu0 0.0
    %3322 = vmatprep.subr.mxu0 0.0
    %3323 = vmatpush1.msra.mxu0 0.0
    %3324 = vmatprep.subr.mxu0 0.0
    %3325 = vmatpush1.msra.mxu0 0.0
    %3326 = vmatprep.subr.mxu0 0.0
    %3327 = vmatpush1.msra.mxu0 0.0
    %3328 = vmatprep.subr.mxu0 0.0
    %3329 = vmatpush1.msra.mxu0 0.0
    %3330 = vmatprep.subr.mxu0 0.0
    %3331 = vmatpush1.msra.mxu0 0.0
    %3332 = vmatprep.subr.mxu0 0.0
    %3333 = vmatpush1.msra.mxu0 0.0
    %3334 = vmatprep.subr.mxu0 0.0
    %3335 = vmatpush1.msra.mxu0 0.0
    %3336 = vmatprep.subr.mxu0 0.0
    %3337 = vmatpush1.msra.mxu0 0.0
    %3338 = vmatprep.subr.mxu0 0.0
    %3339 = vmatpush1.msra.mxu0 0.0
    %3340 = vmatprep.subr.mxu0 0.0
    %3341 = vmatpush1.msra.mxu0 0.0
    %3342 = vmatprep.subr.mxu0 0.0
    %3343 = vmatpush1.msra.mxu0 0.0
    %3344 = vmatprep.subr.mxu0 0.0
    %3345 = vmatpush1.msra.mxu0 0.0
    %3346 = vmatprep.subr.mxu0 0.0
    %3347 = vmatpush1.msra.mxu0 0.0
    %3348 = vmatprep.subr.mxu0 0.0
    %3349 = vmatpush1.msra.mxu0 0.0
    %3350 = vmatprep.subr.mxu0 0.0
    %3351 = vmatpush1.msra.mxu0 0.0
    %3352 = vmatprep.subr.mxu0 0.0
    %3353 = vmatpush1.msra.mxu0 0.0
    %3354 = vmatprep.subr.mxu0 0.0
    %3355 = vmatpush1.msra.mxu0 0.0
    %3356 = vmatprep.mubr.f32.mxu0 0.0
    %3357 = vmatmul.mubr.f32.gmra.mrb[0].mxu0 %v3081
    %v3358 = vpop.f32.mrb[0].mxu0
    %v3359 = vadd.f32 %v3290, %v3358
    %v3360 = vpop.f32.mrb[0].mxu0
    %3361 = vmatprep.mubr.f32.mxu0 0.0
    %3362 = vmatmul.mubr.f32.gmra.mrb[0].mxu0 %v3084
    %v3363 = vpop.f32.mrb[0].mxu0
    %v3364 = vadd.f32 %v3290, %v3363
    %v3365 = vpop.f32.mrb[0].mxu0
    %3366 = vmatprep.mubr.f32.mxu0 0.0
    %3367 = vmatmul.mubr.f32.gmra.mrb[0].mxu0 %v3087
    %v3368 = vpop.f32.mrb[0].mxu0
    %v3369 = vadd.f32 %v3290, %v3368
    %v3370 = vpop.f32.mrb[0].mxu0
    %3371 = vmatprep.mubr.f32.mxu0 0.0
    %3372 = vmatmul.mubr.f32.gmra.mrb[0].mxu0 %v3090
    %v3373 = vpop.f32.mrb[0].mxu0
    %v3374 = vadd.f32 %v3290, %v3373
    %v3375 = vpop.f32.mrb[0].mxu0
    %3376 = vmatprep.mubr.f32.mxu0 0.0
    %3377 = vmatmul.mubr.f32.gmra.mrb[0].mxu0 %v3093
    %v3378 = vpop.f32.mrb[0].mxu0
    %v3379 = vadd.f32 %v3290, %v3378
    %v3380 = vpop.f32.mrb[0].mxu0
    %3381 = vmatprep.mubr.f32.mxu0 0.0
    %3382 = vmatmul.mubr.f32.gmra.mrb[0].mxu0 %v3096
    %v3383 = vpop.f32.mrb[0].mxu0
    %v3384 = vadd.f32 %v3290, %v3383
    %v3385 = vpop.f32.mrb[0].mxu0
    %3386 = vmatprep.mubr.f32.mxu0 0.0
    %3387 = vmatmul.mubr.f32.gmra.mrb[0].mxu0 %v3099
    %v3388 = vpop.f32.mrb[0].mxu0
    %v3389 = vadd.f32 %v3290, %v3388
    %v3390 = vpop.f32.mrb[0].mxu0
    %3391 = vmatprep.mubr.f32.mxu0 0.0
    %3392 = vmatmul.mubr.f32.gmra.mrb[0].mxu0 %v3102
    %v3393 = vpop.f32.mrb[0].mxu0
    %v3394 = vadd.f32 %v3290, %v3393
    %v3395 = vpop.f32.mrb[0].mxu0
    %3396 = vmatprep.mubr.f32.mxu0 0.0
    %3397 = vmatmul.mubr.f32.gmra.mrb[0].mxu0 %v3105
    %v3398 = vpop.f32.mrb[0].mxu0
    %v3399 = vadd.f32 %v3290, %v3398
    %v3400 = vpop.f32.mrb[0].mxu0
    %3401 = vmatprep.mubr.f32.mxu0 0.0
    %3402 = vmatmul.mubr.f32.gmra.mrb[0].mxu0 %v3108
    %v3403 = vpop.f32.mrb[0].mxu0
    %v3404 = vadd.f32 %v3290, %v3403
    %v3405 = vpop.f32.mrb[0].mxu0
    %3406 = vmatprep.mubr.f32.mxu0 0.0
    %3407 = vmatmul.mubr.f32.gmra.mrb[0].mxu0 %v3111
    %v3408 = vpop.f32.mrb[0].mxu0
    %v3409 = vadd.f32 %v3290, %v3408
    %v3410 = vpop.f32.mrb[0].mxu0
    %3411 = vmatprep.mubr.f32.mxu0 0.0
    %3412 = vmatmul.mubr.f32.gmra.mrb[0].mxu0 %v3114
    %v3413 = vpop.f32.mrb[0].mxu0
    %v3414 = vadd.f32 %v3290, %v3413
    %v3415 = vpop.f32.mrb[0].mxu0
    %3416 = vmatprep.mubr.f32.mxu0 0.0
    %3417 = vmatmul.mubr.f32.gmra.mrb[0].mxu0 %v3117
    %v3418 = vpop.f32.mrb[0].mxu0
    %v3419 = vadd.f32 %v3290, %v3418
    %v3420 = vpop.f32.mrb[0].mxu0
    %3421 = vmatprep.mubr.f32.mxu0 0.0
    %3422 = vmatmul.mubr.f32.gmra.mrb[0].mxu0 %v3120
    %v3423 = vpop.f32.mrb[0].mxu0
    %v3424 = vadd.f32 %v3290, %v3423
    %v3425 = vpop.f32.mrb[0].mxu0
    %3426 = vmatprep.mubr.f32.mxu0 0.0
    %3427 = vmatmul.mubr.f32.gmra.mrb[0].mxu0 %v3123
    %v3428 = vpop.f32.mrb[0].mxu0
    %v3429 = vadd.f32 %v3290, %v3428
    %v3430 = vpop.f32.mrb[0].mxu0
    %3431 = vmatprep.mubr.f32.mxu0 0.0
    %3432 = vmatmul.mubr.f32.gmra.mrb[0].mxu0 %v3126
    %v3433 = vpop.f32.mrb[0].mxu0
    %v3434 = vadd.f32 %v3290, %v3433
    %v3435 = vpop.f32.mrb[0].mxu0
    %3436 = vdwg.mxu0
    %v3437 = vmax.f32 %v3359, 0.0
    %v3438 = vmax.f32 %v3364, 0.0
    %v3439 = vmax.f32 %v3369, 0.0
    %v3440 = vmax.f32 %v3374, 0.0
    %v3441 = vmax.f32 %v3379, 0.0
    %v3442 = vmax.f32 %v3384, 0.0
    %v3443 = vmax.f32 %v3389, 0.0
    %v3444 = vmax.f32 %v3394, 0.0
    %v3445 = vmax.f32 %v3399, 0.0
    %v3446 = vmax.f32 %v3404, 0.0
    %v3447 = vmax.f32 %v3409, 0.0
    %v3448 = vmax.f32 %v3414, 0.0
    %v3449 = vmax.f32 %v3419, 0.0
    %v3450 = vmax.f32 %v3424, 0.0
    %v3451 = vmax.f32 %v3429, 0.0
    %v3452 = vmax.f32 %v3434, 0.0
    %v3453 = vand.u32 2147483647, %v3359
    %v3454 = vand.u32 2147483647, %v3364
    %v3455 = vand.u32 2147483647, %v3369
    %v3456 = vand.u32 2147483647, %v3374
    %v3457 = vand.u32 2147483647, %v3379
    %v3458 = vand.u32 2147483647, %v3384
    %v3459 = vand.u32 2147483647, %v3389
    %v3460 = vand.u32 2147483647, %v3394
    %v3461 = vand.u32 2147483647, %v3399
    %v3462 = vand.u32 2147483647, %v3404
    %v3463 = vand.u32 2147483647, %v3409
    %v3464 = vand.u32 2147483647, %v3414
    %v3465 = vand.u32 2147483647, %v3419
    %v3466 = vand.u32 2147483647, %v3424
    %v3467 = vand.u32 2147483647, %v3429
    %v3468 = vand.u32 2147483647, %v3434
    %v3469 = vsub.f32 0.0, %v3453
    %v3470 = vsub.f32 0.0, %v3454
    %v3471 = vsub.f32 0.0, %v3455
    %v3472 = vsub.f32 0.0, %v3456
    %v3473 = vsub.f32 0.0, %v3457
    %v3474 = vsub.f32 0.0, %v3458
    %v3475 = vsub.f32 0.0, %v3459
    %v3476 = vsub.f32 0.0, %v3460
    %v3477 = vsub.f32 0.0, %v3461
    %v3478 = vsub.f32 0.0, %v3462
    %v3479 = vsub.f32 0.0, %v3463
    %v3480 = vsub.f32 0.0, %v3464
    %v3481 = vsub.f32 0.0, %v3465
    %v3482 = vsub.f32 0.0, %v3466
    %v3483 = vsub.f32 0.0, %v3467
    %v3484 = vsub.f32 0.0, %v3468
    %v3485 = vmul.f32 %v3469, 1.442695
    %v3486 = vpow.pop %v3485
    %v3487 = vmul.f32 %v3470, 1.442695
    %v3488 = vpow.pop %v3487
    %v3489 = vmul.f32 %v3471, 1.442695
    %v3490 = vpow.pop %v3489
    %v3491 = vmul.f32 %v3472, 1.442695
    %v3492 = vpow.pop %v3491
    %v3493 = vmul.f32 %v3473, 1.442695
    %v3494 = vpow.pop %v3493
    %v3495 = vmul.f32 %v3474, 1.442695
    %v3496 = vpow.pop %v3495
    %v3497 = vmul.f32 %v3475, 1.442695
    %v3498 = vpow.pop %v3497
    %v3499 = vmul.f32 %v3476, 1.442695
    %v3500 = vpow.pop %v3499
    %v3501 = vmul.f32 %v3477, 1.442695
    %v3502 = vpow.pop %v3501
    %v3503 = vmul.f32 %v3478, 1.442695
    %v3504 = vpow.pop %v3503
    %v3505 = vmul.f32 %v3479, 1.442695
    %v3506 = vpow.pop %v3505
    %v3507 = vmul.f32 %v3480, 1.442695
    %v3508 = vpow.pop %v3507
    %v3509 = vmul.f32 %v3481, 1.442695
    %v3510 = vpow.pop %v3509
    %v3511 = vmul.f32 %v3482, 1.442695
    %v3512 = vpow.pop %v3511
    %v3513 = vmul.f32 %v3483, 1.442695
    %v3514 = vpow.pop %v3513
    %v3515 = vmul.f32 %v3484, 1.442695
    %v3516 = vpow.pop %v3515
    %v3517 = vadd.f32 %v3486, 1.0
    %v3518 = vadd.f32 %v3488, 1.0
    %v3519 = vadd.f32 %v3490, 1.0
    %v3520 = vadd.f32 %v3492, 1.0
    %v3521 = vadd.f32 %v3494, 1.0
    %v3522 = vadd.f32 %v3496, 1.0
    %v3523 = vadd.f32 %v3498, 1.0
    %v3524 = vadd.f32 %v3500, 1.0
    %v3525 = vadd.f32 %v3502, 1.0
    %v3526 = vadd.f32 %v3504, 1.0
    %v3527 = vadd.f32 %v3506, 1.0
    %v3528 = vadd.f32 %v3508, 1.0
    %v3529 = vadd.f32 %v3510, 1.0
    %v3530 = vadd.f32 %v3512, 1.0
    %v3531 = vadd.f32 %v3514, 1.0
    %v3532 = vadd.f32 %v3516, 1.0
    %v3533 = vlog2.pop %v3517
    %v3534 = vmul.f32 %v3533, 0.6931472
    %v3535 = vlog2.pop %v3518
    %v3536 = vmul.f32 %v3535, 0.6931472
    %v3537 = vlog2.pop %v3519
    %v3538 = vmul.f32 %v3537, 0.6931472
    %v3539 = vlog2.pop %v3520
    %v3540 = vmul.f32 %v3539, 0.6931472
    %v3541 = vlog2.pop %v3521
    %v3542 = vmul.f32 %v3541, 0.6931472
    %v3543 = vlog2.pop %v3522
    %v3544 = vmul.f32 %v3543, 0.6931472
    %v3545 = vlog2.pop %v3523
    %v3546 = vmul.f32 %v3545, 0.6931472
    %v3547 = vlog2.pop %v3524
    %v3548 = vmul.f32 %v3547, 0.6931472
    %v3549 = vlog2.pop %v3525
    %v3550 = vmul.f32 %v3549, 0.6931472
    %v3551 = vlog2.pop %v3526
    %v3552 = vmul.f32 %v3551, 0.6931472
    %v3553 = vlog2.pop %v3527
    %v3554 = vmul.f32 %v3553, 0.6931472
    %v3555 = vlog2.pop %v3528
    %v3556 = vmul.f32 %v3555, 0.6931472
    %v3557 = vlog2.pop %v3529
    %v3558 = vmul.f32 %v3557, 0.6931472
    %v3559 = vlog2.pop %v3530
    %v3560 = vmul.f32 %v3559, 0.6931472
    %v3561 = vlog2.pop %v3531
    %v3562 = vmul.f32 %v3561, 0.6931472
    %v3563 = vlog2.pop %v3532
    %v3564 = vmul.f32 %v3563, 0.6931472
    %v3565 = vadd.f32 %v3437, %v3534
    %v3566 = vadd.f32 %v3438, %v3536
    %v3567 = vadd.f32 %v3439, %v3538
    %v3568 = vadd.f32 %v3440, %v3540
    %v3569 = vadd.f32 %v3441, %v3542
    %v3570 = vadd.f32 %v3442, %v3544
    %v3571 = vadd.f32 %v3443, %v3546
    %v3572 = vadd.f32 %v3444, %v3548
    %v3573 = vadd.f32 %v3445, %v3550
    %v3574 = vadd.f32 %v3446, %v3552
    %v3575 = vadd.f32 %v3447, %v3554
    %v3576 = vadd.f32 %v3448, %v3556
    %v3577 = vadd.f32 %v3449, %v3558
    %v3578 = vadd.f32 %v3450, %v3560
    %v3579 = vadd.f32 %v3451, %v3562
    %v3580 = vadd.f32 %v3452, %v3564
    %v3581 = vsub.f32 0.0, %v3565
    %v3582 = vsub.f32 0.0, %v3566
    %v3583 = vsub.f32 0.0, %v3567
    %v3584 = vsub.f32 0.0, %v3568
    %v3585 = vsub.f32 0.0, %v3569
    %v3586 = vsub.f32 0.0, %v3570
    %v3587 = vsub.f32 0.0, %v3571
    %v3588 = vsub.f32 0.0, %v3572
    %v3589 = vsub.f32 0.0, %v3573
    %v3590 = vsub.f32 0.0, %v3574
    %v3591 = vsub.f32 0.0, %v3575
    %v3592 = vsub.f32 0.0, %v3576
    %v3593 = vsub.f32 0.0, %v3577
    %v3594 = vsub.f32 0.0, %v3578
    %v3595 = vsub.f32 0.0, %v3579
    %v3596 = vsub.f32 0.0, %v3580
    %v3597 = vsub.f32 0.0, %v3195
    %v3598 = vsub.f32 0.0, %v3200
    %v3599 = vsub.f32 0.0, %v3205
    %v3600 = vsub.f32 0.0, %v3210
    %v3601 = vsub.f32 0.0, %v3215
    %v3602 = vsub.f32 0.0, %v3220
    %v3603 = vsub.f32 0.0, %v3225
    %v3604 = vsub.f32 0.0, %v3230
    %v3605 = vsub.f32 0.0, %v3235
    %v3606 = vsub.f32 0.0, %v3240
    %v3607 = vsub.f32 0.0, %v3245
    %v3608 = vsub.f32 0.0, %v3250
    %v3609 = vsub.f32 0.0, %v3255
    %v3610 = vsub.f32 0.0, %v3260
    %v3611 = vsub.f32 0.0, %v3265
    %v3612 = vsub.f32 0.0, %v3270
    %v3613 = vmul.f32 %v3597, 1.442695
    %v3614 = vpow.pop %v3613
    %v3615 = vmul.f32 %v3598, 1.442695
    %v3616 = vpow.pop %v3615
    %v3617 = vmul.f32 %v3599, 1.442695
    %v3618 = vpow.pop %v3617
    %v3619 = vmul.f32 %v3600, 1.442695
    %v3620 = vpow.pop %v3619
    %v3621 = vmul.f32 %v3601, 1.442695
    %v3622 = vpow.pop %v3621
    %v3623 = vmul.f32 %v3602, 1.442695
    %v3624 = vpow.pop %v3623
    %v3625 = vmul.f32 %v3603, 1.442695
    %v3626 = vpow.pop %v3625
    %v3627 = vmul.f32 %v3604, 1.442695
    %v3628 = vpow.pop %v3627
    %v3629 = vmul.f32 %v3605, 1.442695
    %v3630 = vpow.pop %v3629
    %v3631 = vmul.f32 %v3606, 1.442695
    %v3632 = vpow.pop %v3631
    %v3633 = vmul.f32 %v3607, 1.442695
    %v3634 = vpow.pop %v3633
    %v3635 = vmul.f32 %v3608, 1.442695
    %v3636 = vpow.pop %v3635
    %v3637 = vmul.f32 %v3609, 1.442695
    %v3638 = vpow.pop %v3637
    %v3639 = vmul.f32 %v3610, 1.442695
    %v3640 = vpow.pop %v3639
    %v3641 = vmul.f32 %v3611, 1.442695
    %v3642 = vpow.pop %v3641
    %v3643 = vmul.f32 %v3612, 1.442695
    %v3644 = vpow.pop %v3643
    %v3645 = vadd.f32 %v3614, 1.0
    %v3646 = vadd.f32 %v3616, 1.0
    %v3647 = vadd.f32 %v3618, 1.0
    %v3648 = vadd.f32 %v3620, 1.0
    %v3649 = vadd.f32 %v3622, 1.0
    %v3650 = vadd.f32 %v3624, 1.0
    %v3651 = vadd.f32 %v3626, 1.0
    %v3652 = vadd.f32 %v3628, 1.0
    %v3653 = vadd.f32 %v3630, 1.0
    %v3654 = vadd.f32 %v3632, 1.0
    %v3655 = vadd.f32 %v3634, 1.0
    %v3656 = vadd.f32 %v3636, 1.0
    %v3657 = vadd.f32 %v3638, 1.0
    %v3658 = vadd.f32 %v3640, 1.0
    %v3659 = vadd.f32 %v3642, 1.0
    %v3660 = vadd.f32 %v3644, 1.0
    %v3661 = vrcp.pop %v3645
    %v3662 = vmul.f32 1.0, %v3661
    %v3663 = vrcp.pop %v3646
    %v3664 = vmul.f32 1.0, %v3663
    %v3665 = vrcp.pop %v3647
    %v3666 = vmul.f32 1.0, %v3665
    %v3667 = vrcp.pop %v3648
    %v3668 = vmul.f32 1.0, %v3667
    %v3669 = vrcp.pop %v3649
    %v3670 = vmul.f32 1.0, %v3669
    %v3671 = vrcp.pop %v3650
    %v3672 = vmul.f32 1.0, %v3671
    %v3673 = vrcp.pop %v3651
    %v3674 = vmul.f32 1.0, %v3673
    %v3675 = vrcp.pop %v3652
    %v3676 = vmul.f32 1.0, %v3675
    %v3677 = vrcp.pop %v3653
    %v3678 = vmul.f32 1.0, %v3677
    %v3679 = vrcp.pop %v3654
    %v3680 = vmul.f32 1.0, %v3679
    %v3681 = vrcp.pop %v3655
    %v3682 = vmul.f32 1.0, %v3681
    %v3683 = vrcp.pop %v3656
    %v3684 = vmul.f32 1.0, %v3683
    %v3685 = vrcp.pop %v3657
    %v3686 = vmul.f32 1.0, %v3685
    %v3687 = vrcp.pop %v3658
    %v3688 = vmul.f32 1.0, %v3687
    %v3689 = vrcp.pop %v3659
    %v3690 = vmul.f32 1.0, %v3689
    %v3691 = vrcp.pop %v3660
    %v3692 = vmul.f32 1.0, %v3691
    %v3693 = vlaneseq
    %v3694 = vand.u32 %v3693, 127
    %v3695 = vand.u32 %v3694, 15
    %vm3696 = vcmp.lt.s32.totalorder %v3695, 2
    %v3697 = vsel %vm3696, 1, 0
    %vm3698 = vcmp.eq.s32.totalorder %v3697, 1
    %v3699 = vsel %vm3698, %v3581, %v3662
    %v3700 = vsel %vm3698, %v3582, %v3664
    %v3701 = vsel %vm3698, %v3583, %v3666
    %v3702 = vsel %vm3698, %v3584, %v3668
    %v3703 = vsel %vm3698, %v3585, %v3670
    %v3704 = vsel %vm3698, %v3586, %v3672
    %v3705 = vsel %vm3698, %v3587, %v3674
    %v3706 = vsel %vm3698, %v3588, %v3676
    %v3707 = vsel %vm3698, %v3589, %v3678
    %v3708 = vsel %vm3698, %v3590, %v3680
    %v3709 = vsel %vm3698, %v3591, %v3682
    %v3710 = vsel %vm3698, %v3592, %v3684
    %v3711 = vsel %vm3698, %v3593, %v3686
    %v3712 = vsel %vm3698, %v3594, %v3688
    %v3713 = vsel %vm3698, %v3595, %v3690
    %v3714 = vsel %vm3698, %v3596, %v3692
    %v3715 = vsel %vm368, %v3699, 0.0
    %v3716 = vsel %vm368, %v3700, 0.0
    %v3717 = vsel %vm368, %v3701, 0.0
    %v3718 = vsel %vm368, %v3702, 0.0
    %v3719 = vsel %vm368, %v3703, 0.0
    %v3720 = vsel %vm368, %v3704, 0.0
    %v3721 = vsel %vm368, %v3705, 0.0
    %v3722 = vsel %vm368, %v3706, 0.0
    %v3723 = vsel %vm368, %v3707, 0.0
    %v3724 = vsel %vm368, %v3708, 0.0
    %v3725 = vsel %vm368, %v3709, 0.0
    %v3726 = vsel %vm368, %v3710, 0.0
    %v3727 = vsel %vm368, %v3711, 0.0
    %v3728 = vsel %vm368, %v3712, 0.0
    %v3729 = vsel %vm368, %v3713, 0.0
    %v3730 = vsel %vm368, %v3714, 0.0
    %3731 = vst [vmem:[#allocation29] sm:$0xff] %v3715
    %3732 = vst [vmem:[#allocation29 + $0x8] sm:$0xff] %v3716
    %3733 = vst [vmem:[#allocation29 + $0x10] sm:$0xff] %v3717
    %3734 = vst [vmem:[#allocation29 + $0x18] sm:$0xff] %v3718
    %3735 = vst [vmem:[#allocation29 + $0x20] sm:$0xff] %v3719
    %3736 = vst [vmem:[#allocation29 + $0x28] sm:$0xff] %v3720
    %3737 = vst [vmem:[#allocation29 + $0x30] sm:$0xff] %v3721
    %3738 = vst [vmem:[#allocation29 + $0x38] sm:$0xff] %v3722
    %3739 = vst [vmem:[#allocation29 + $0x40] sm:$0xff] %v3723
    %3740 = vst [vmem:[#allocation29 + $0x48] sm:$0xff] %v3724
    %3741 = vst [vmem:[#allocation29 + $0x50] sm:$0xff] %v3725
    %3742 = vst [vmem:[#allocation29 + $0x58] sm:$0xff] %v3726
    %3743 = vst [vmem:[#allocation29 + $0x60] sm:$0xff] %v3727
    %3744 = vst [vmem:[#allocation29 + $0x68] sm:$0xff] %v3728
    %3745 = vst [vmem:[#allocation29 + $0x70] sm:$0xff] %v3729
    %3746 = vst [vmem:[#allocation29 + $0x78] sm:$0xff] %v3730
    // Predicated region
    $region138: #{pnet_forward.1} parent=1 // pred_check
      _
    $region139: #{pnet_forward.1} parent=1 // pred_check_branch
      %3748 = sbr.rel (0) target = $region141
    $region140: #{pnet_forward.1} parent=1 // pred_region
      %s3750 = ssub.s32 2048, 2048
      %3751 = vsyncadd [#allocation4], %s3750
      %s3752 = sshll.u32 [#allocation29], 4
      %s3753 = int_to_ptr.vmem [resolvable:$true] %s3752
      %3758 = dma.vmem_to_hbm [thread:$0]  %s3753, 2048, %s17, [#allocation4], 128, 128, 8
    $region141: #{pnet_forward.1} parent=1 // pred_fallthru
      _
    // Predicated region
    $region142: #{pnet_forward.1} parent=1 // pred_check
      _
    $region143: #{pnet_forward.1} parent=1 // pred_check_branch
      %3760 = sbr.rel (0) target = $region145
    $region144: #{pnet_forward.1} parent=1 // pred_region
      %3761 = dma.done [#allocation4], 2048
    $region145: #{pnet_forward.1} parent=1 // pred_fallthru
      _
    %3762 = vsyncpa [#allocation3], 1
    %3763 = vsyncpa [#allocation6], 1
    %3764 = vsyncpa [#allocation9], 1
    %3765 = vsyncpa [#allocation12], 1
    %3766 = vsyncpa [#allocation15], 1
    %3767 = vsyncpa [#allocation18], 1
    %3768 = vsyncpa [#allocation21], 1
    %3769 = vsyncpa [#allocation24], 1
    %3770 = vsyncpa [#allocation27], 1
    %3771 = vsyncpa [#allocation4], 1

</llo_original>
